<compile_context>
chip_gen: v5e
topology: v5e:2x2
jax: 0.10.0
libtpu: 0.0.40
codegen_flags: <defaults>
</compile_context>

<pallas_src>
from functools import partial

import jax
import jax.numpy as jnp
from jax.experimental import pallas as pl
from jax.experimental.pallas import tpu as pltpu


FEAT = 784                      # flattened MNIST image
FEAT_PAD = 896                  # 784 padded up to a multiple of 128
N_CLASSES = 10
H1, H2, H3 = 1024, 512, 256
LANE = 128
G_LO = (FEAT // LANE) * LANE    # 768: start of the lane group shared by x-tail & one-hot


# ----------------------------------------------------------------------------
# Pallas kernel: one batch tile of the fused 4-layer MLP.
#   h1  = leaky( [x | onehot(label) | 0] @ W1x + b1 )    (class bias folded in W1x)
#   h2  = leaky( h1 @ W2 + b2 )
#   h3  = leaky( h2 @ W3 + b3 )
#   out = sigmoid( sum(h3 * w4_row, -1) + b4 )           (VPU head, no N=1 GEMM)
# Matmul inputs are bf16, accumulation and activations are f32.
# ----------------------------------------------------------------------------
def _disc_kernel(lbl_ref, x_ref,
                 w1_ref, b1_ref,
                 w2_ref, b2_ref,
                 w3_ref, b3_ref,
                 w4_ref, b4_ref,
                 o_ref, xin_ref):
    def leaky_relu(h):
        return jnp.where(h > 0, h, 0.2 * h)

    tb = x_ref.shape[0]

    # ---- Build the fused (TB, 896) bf16 layer-1 operand in VMEM -------------
    #   cols   0:784  image pixels (f32 -> bf16)
    #   cols 784:794  one-hot(label)  -> selects the class-bias row of W1x
    #   cols 794:896  zeros
    # Store order matters: the aligned 128-lane group [768:896) is written with
    # the one-hot/zeros first; the x store then overwrites lanes 768:784 with
    # the pixel tail, leaving the one-hot intact in 784:896.  Both stores are
    # lane-aligned (no misaligned relayouts).
    lane = jax.lax.broadcasted_iota(jnp.int32, (tb, LANE), 1)
    onehot = jnp.where(lane == lbl_ref[...] + (FEAT - G_LO), 1.0, 0.0)
    xin_ref[:, G_LO:] = onehot.astype(jnp.bfloat16)
    xin_ref[:, :FEAT] = x_ref[...].astype(jnp.bfloat16)

    # ---- Layer 1: (TB,896) @ (896,1024), f32 accumulation --------------------
    h1 = jnp.dot(xin_ref[...], w1_ref[...],
                 preferred_element_type=jnp.float32) + b1_ref[...]
    h1 = leaky_relu(h1).astype(jnp.bfloat16)          # Dropout(0.3) -> identity (eval)

    h2 = jnp.dot(h1, w2_ref[...],
                 preferred_element_type=jnp.float32) + b2_ref[...]
    h2 = leaky_relu(h2).astype(jnp.bfloat16)          # Dropout(0.3) -> identity (eval)

    h3 = jnp.dot(h2, w3_ref[...],
                 preferred_element_type=jnp.float32) + b3_ref[...]
    h3 = leaky_relu(h3)                               # stays f32 for the VPU head

    # ---- N=1 head: VPU multiply + lane reduce; lane-dense (1, TB) writeback --
    logits = jnp.sum(h3 * w4_ref[...], axis=-1)[None, :] + b4_ref[...]
    o_ref[...] = jax.nn.sigmoid(logits)


def _round_up(n, m):
    return (n + m - 1) // m * m


# ----------------------------------------------------------------------------
# One-time parameter preparation (outside the per-batch forward).
#   * W1 split into image rows + embedding rows; embedding rows are
#     pre-multiplied by the embedding table, giving a (10, 1024) class-bias
#     table folded into rows 784:794 of the padded (896, 1024) W1.
#   * Matmul weights -> bf16 (halves weight DMA, native MXU rate); biases and
#     the 256-wide head row stay f32 (exact).
# ----------------------------------------------------------------------------
def prepare_params(params):
    w1 = params["w1"]                                        # (794, 1024), (in, out)
    ctab = params["emb"] @ w1[FEAT:FEAT + N_CLASSES]         # (10, 1024) = emb @ W1_emb
    w1x = jnp.concatenate(
        [w1[:FEAT], ctab,
         jnp.zeros((FEAT_PAD - FEAT - N_CLASSES, H1), jnp.float32)], axis=0)
    return {
        "w1x":   w1x.astype(jnp.bfloat16),                   # (896, 1024)
        "b1":    params["b1"].astype(jnp.float32),           # (1, 1024)
        "w2":    params["w2"].astype(jnp.bfloat16),          # (1024, 512)
        "b2":    params["b2"].astype(jnp.float32),
        "w3":    params["w3"].astype(jnp.bfloat16),          # (512, 256)
        "b3":    params["b3"].astype(jnp.float32),
        "w4row": params["w4"].T.astype(jnp.float32),         # (1, 256)
        "b4":    params["b4"].astype(jnp.float32),           # (1, 1)
    }


@partial(jax.jit, static_argnames=("max_tile",))
def discriminator_forward(x, labels, prep, *, max_tile=256):
    """Reproduces DiscriminatorModel.forward (inference mode).

    x:      (B, 784) float32 flattened images
    labels: (B,)     integer class ids in [0, 10)
    returns (B, 1)   float32 in (0, 1)

    max_tile: batch-tile cap. 256 (default) suits v7x (64 MiB VMEM, 2 TCs);
    512 is a sensible choice for large-batch inference on v5e/v6e.
    """
    B = x.shape[0]
    if B <= max_tile:
        # Weight-DMA bound regime: keep a single grid step (don't duplicate the
        # ~3 MiB weight fetch across tiles/cores).
        TB = _round_up(B, 16)
    else:
        # Balanced tiles, >= 2 grid steps so the "parallel" batch axis can be
        # sharded across v7x's two TensorCores; 16-row granularity for bf16
        # sublane packing and minimal padding waste.
        TB = _round_up(pl.cdiv(B, pl.cdiv(B, max_tile)), 16)
    B_pad = _round_up(B, TB)
    num_tiles = B_pad // TB

    lbl = labels.reshape(-1, 1).astype(jnp.int32)
    x = x.astype(jnp.float32)
    if B_pad != B:
        # Row padding only when B doesn't divide the tile; aligned large
        # batches pass straight through (no wrapper HBM round trip).
        x = jnp.pad(x, ((0, B_pad - B), (0, 0)))
        lbl = jnp.pad(lbl, ((0, B_pad - B), (0, 0)))

    def tile_map(i):        # batch-tiled operands / output
        return (i, 0)

    def const_map(i):       # weights & biases stay resident in VMEM across tiles
        return (0, 0)

    in_specs = [
        pl.BlockSpec((TB, 1), tile_map),               # labels
        pl.BlockSpec((TB, FEAT), tile_map),            # x (raw f32; cast+pad in-kernel)
        pl.BlockSpec((FEAT_PAD, H1), const_map),       # w1x (class table folded in)
        pl.BlockSpec((1, H1), const_map),              # b1
        pl.BlockSpec((H1, H2), const_map),             # w2
        pl.BlockSpec((1, H2), const_map),              # b2
        pl.BlockSpec((H2, H3), const_map),             # w3
        pl.BlockSpec((1, H3), const_map),              # b3
        pl.BlockSpec((1, H3), const_map),              # w4 row
        pl.BlockSpec((1, 1), const_map),               # b4
    ]
    # TODO(synk): pipeline_mode=pl.Buffered(1) on the const-map weight specs would
    # drop their unused second pipeline buffer (~3 MiB) for extra v7x headroom.

    out = pl.pallas_call(
        _disc_kernel,
        out_shape=jax.ShapeDtypeStruct((num_tiles, TB), jnp.float32),
        grid=(num_tiles,),
        in_specs=in_specs,
        out_specs=pl.BlockSpec((1, TB), tile_map),     # lane-dense writeback
        scratch_shapes=[pltpu.VMEM((TB, FEAT_PAD), jnp.bfloat16)],
        compiler_params=pltpu.CompilerParams(
            dimension_semantics=("parallel",),
            vmem_limit_bytes=(64 << 20) if TB > 256 else (32 << 20),
        ),
    )(lbl, x,
      prep["w1x"], prep["b1"],
      prep["w2"], prep["b2"],
      prep["w3"], prep["b3"],
      prep["w4row"], prep["b4"])

    return out.reshape(-1)[:B, None]


# ----------------------------------------------------------------------------
# Deterministic parameter construction (matches the PyTorch module's shapes).
# nn.Linear default init: U(-1/sqrt(fan_in), 1/sqrt(fan_in)) for W and b.
# nn.Embedding default init: N(0, 1).
# Weights are stored as (in, out) for the x @ W convention used above.
# ----------------------------------------------------------------------------
def make_params(key):
    input_dim = FEAT + N_CLASSES
    dims = [(input_dim, H1), (H1, H2), (H2, H3), (H3, 1)]
    keys = jax.random.split(key, 1 + 2 * len(dims))

    params = {"emb": jax.random.normal(keys[0], (N_CLASSES, N_CLASSES), dtype=jnp.float32)}
    for i, (fan_in, fan_out) in enumerate(dims):
        bound = 1.0 / (fan_in ** 0.5)
        wk, bk = keys[1 + 2 * i], keys[2 + 2 * i]
        params[f"w{i + 1}"] = jax.random.uniform(
            wk, (fan_in, fan_out), minval=-bound, maxval=bound, dtype=jnp.float32)
        params[f"b{i + 1}"] = jax.random.uniform(
            bk, (1, fan_out), minval=-bound, maxval=bound, dtype=jnp.float32)
    return params


def _reference_forward(x, labels, params):
    """Pure-f32 JAX reference mirroring the PyTorch module."""
    emb = jnp.take(params["emb"], labels, axis=0)
    h = jnp.concatenate([x, emb], axis=1)
    for i in range(1, 4):
        h = h @ params[f"w{i}"] + params[f"b{i}"]
        h = jnp.where(h > 0, h, 0.2 * h)
    logits = h @ params["w4"] + params["b4"]
    return jax.nn.sigmoid(logits)


if __name__ == "__main__":
    key = jax.random.PRNGKey(0)
    k_params, k_x, k_lbl = jax.random.split(key, 3)

    batch = 8
    params = make_params(k_params)
    prep = prepare_params(params)

    x = jax.random.normal(k_x, (batch, FEAT), dtype=jnp.float32)      # MNIST-like flat images
    labels = jax.random.randint(k_lbl, (batch,), 0, N_CLASSES, dtype=jnp.int32)

    out = jax.block_until_ready(discriminator_forward(x, labels, prep))

    ref = _reference_forward(x, labels, params)
    assert out.shape == (batch, 1), out.shape
    # bf16 weights with f32 accumulation vs. the f32 reference -> loosened tolerance.
    assert jnp.allclose(out, ref, atol=2e-2, rtol=2e-2), "mismatch vs. JAX reference"

    print("KERNEL_OK")
</pallas_src>

<mosaic_0001>
module attributes {stable_mosaic.version = 11 : i64} {
  func.func @_disc_kernel(%arg0: i32, %arg1: memref<16x1xi32, #tpu.memory_space<vmem>>, %arg2: memref<16x784xf32, #tpu.memory_space<vmem>>, %arg3: memref<896x1024xbf16, #tpu.memory_space<vmem>>, %arg4: memref<1x1024xf32, #tpu.memory_space<vmem>>, %arg5: memref<1024x512xbf16, #tpu.memory_space<vmem>>, %arg6: memref<1x512xf32, #tpu.memory_space<vmem>>, %arg7: memref<512x256xbf16, #tpu.memory_space<vmem>>, %arg8: memref<1x256xf32, #tpu.memory_space<vmem>>, %arg9: memref<1x256xf32, #tpu.memory_space<vmem>>, %arg10: memref<1x1xf32, #tpu.memory_space<vmem>>, %arg11: memref<1x16xf32, #tpu.memory_space<vmem>>, %arg12: memref<16x896xbf16, #tpu.memory_space<vmem>>) attributes {dimension_semantics = [#tpu.dimension_semantics<parallel>], iteration_bounds = array<i64: 1>, scalar_prefetch = 0 : i64, scratch_operands = 1 : i64, tpu.core_type = #tpu.core_type<tc>, window_params = [{transform_indices = @transform_0, window_bounds = array<i64: 16, 1>}, {transform_indices = @transform_1, window_bounds = array<i64: 16, 784>}, {pipeline_mode = #tpu.pipeline_mode<synchronous>, transform_indices = @transform_2, window_bounds = array<i64: 896, 1024>}, {pipeline_mode = #tpu.pipeline_mode<synchronous>, transform_indices = @transform_3, window_bounds = array<i64: 1, 1024>}, {pipeline_mode = #tpu.pipeline_mode<synchronous>, transform_indices = @transform_4, window_bounds = array<i64: 1024, 512>}, {pipeline_mode = #tpu.pipeline_mode<synchronous>, transform_indices = @transform_5, window_bounds = array<i64: 1, 512>}, {pipeline_mode = #tpu.pipeline_mode<synchronous>, transform_indices = @transform_6, window_bounds = array<i64: 512, 256>}, {pipeline_mode = #tpu.pipeline_mode<synchronous>, transform_indices = @transform_7, window_bounds = array<i64: 1, 256>}, {pipeline_mode = #tpu.pipeline_mode<synchronous>, transform_indices = @transform_8, window_bounds = array<i64: 1, 256>}, {pipeline_mode = #tpu.pipeline_mode<synchronous>, transform_indices = @transform_9, window_bounds = array<i64: 1, 1>}, {transform_indices = @transform_10, window_bounds = array<i64: 1, 16>}]} {
    %0 = tpu.iota {dimensions = array<i32: 1>} : vector<16x128xi32>
    %c0 = arith.constant 0 : index
    %c0_0 = arith.constant 0 : index
    %1 = vector.load %arg1[%c0, %c0_0] : memref<16x1xi32, #tpu.memory_space<vmem>>, vector<16x1xi32>
    %c16_i32 = arith.constant 16 : i32
    %2 = vector.broadcast %c16_i32 : i32 to vector<16x1xi32>
    %3 = arith.addi %1, %2 : vector<16x1xi32>
    %4 = vector.broadcast %3 : vector<16x1xi32> to vector<16x128xi32>
    %5 = arith.cmpi eq, %0, %4 : vector<16x128xi32>
    %cst = arith.constant 1.000000e+00 : f32
    %cst_1 = arith.constant 0.000000e+00 : f32
    %6 = vector.broadcast %cst : f32 to vector<16x128xf32>
    %7 = vector.broadcast %cst_1 : f32 to vector<16x128xf32>
    %8 = arith.select %5, %6, %7 : vector<16x128xi1>, vector<16x128xf32>
    %9 = arith.truncf %8 : vector<16x128xf32> to vector<16x128xbf16>
    %c0_2 = arith.constant 0 : index
    %c768 = arith.constant 768 : index
    %10 = vector.load %arg12[%c0_2, %c768] : memref<16x896xbf16, #tpu.memory_space<vmem>>, vector<16x128xbf16>
    tpu.vector_store %arg12[%c0_2, %c768], %9 {strides = array<i32>} : memref<16x896xbf16, #tpu.memory_space<vmem>>, vector<16x128xbf16>,
    %c0_3 = arith.constant 0 : index
    %c0_4 = arith.constant 0 : index
    %11 = vector.load %arg2[%c0_3, %c0_4] : memref<16x784xf32, #tpu.memory_space<vmem>>, vector<16x784xf32>
    %12 = arith.truncf %11 : vector<16x784xf32> to vector<16x784xbf16>
    %c0_5 = arith.constant 0 : index
    %c0_6 = arith.constant 0 : index
    %13 = vector.load %arg12[%c0_5, %c0_6] : memref<16x896xbf16, #tpu.memory_space<vmem>>, vector<16x784xbf16>
    tpu.vector_store %arg12[%c0_5, %c0_6], %12 {strides = array<i32>} : memref<16x896xbf16, #tpu.memory_space<vmem>>, vector<16x784xbf16>,
    %c0_7 = arith.constant 0 : index
    %c0_8 = arith.constant 0 : index
    %14 = vector.load %arg12[%c0_7, %c0_8] : memref<16x896xbf16, #tpu.memory_space<vmem>>, vector<16x896xbf16>
    %c0_9 = arith.constant 0 : index
    %c0_10 = arith.constant 0 : index
    %15 = vector.load %arg3[%c0_9, %c0_10] : memref<896x1024xbf16, #tpu.memory_space<vmem>>, vector<896x1024xbf16>
    %cst_11 = arith.constant dense<0.000000e+00> : vector<16x1024xf32>
    %16 = tpu.matmul %14, %15, %cst_11 {dimension_numbers = #tpu.dot_dimension_numbers<[1], [0], [0], [1], [0, 0, 1, 1], [], []>} : vector<16x896xbf16>, vector<896x1024xbf16>, vector<16x1024xf32> -> vector<16x1024xf32>
    %c0_12 = arith.constant 0 : index
    %c0_13 = arith.constant 0 : index
    %17 = vector.load %arg4[%c0_12, %c0_13] : memref<1x1024xf32, #tpu.memory_space<vmem>>, vector<1x1024xf32>
    %18 = vector.broadcast %17 : vector<1x1024xf32> to vector<16x1024xf32>
    %19 = arith.addf %16, %18 : vector<16x1024xf32>
    %cst_14 = arith.constant 0.000000e+00 : f32
    %20 = vector.broadcast %cst_14 : f32 to vector<16x1024xf32>
    %21 = arith.cmpf ogt, %19, %20 : vector<16x1024xf32>
    %cst_15 = arith.constant 2.000000e-01 : f32
    %22 = vector.broadcast %cst_15 : f32 to vector<16x1024xf32>
    %23 = arith.mulf %22, %19 : vector<16x1024xf32>
    %24 = arith.select %21, %19, %23 : vector<16x1024xi1>, vector<16x1024xf32>
    %25 = arith.truncf %24 : vector<16x1024xf32> to vector<16x1024xbf16>
    %c0_16 = arith.constant 0 : index
    %c0_17 = arith.constant 0 : index
    %26 = vector.load %arg5[%c0_16, %c0_17] : memref<1024x512xbf16, #tpu.memory_space<vmem>>, vector<1024x512xbf16>
    %cst_18 = arith.constant dense<0.000000e+00> : vector<16x512xf32>
    %27 = tpu.matmul %25, %26, %cst_18 {dimension_numbers = #tpu.dot_dimension_numbers<[1], [0], [0], [1], [0, 0, 1, 1], [], []>} : vector<16x1024xbf16>, vector<1024x512xbf16>, vector<16x512xf32> -> vector<16x512xf32>
    %c0_19 = arith.constant 0 : index
    %c0_20 = arith.constant 0 : index
    %28 = vector.load %arg6[%c0_19, %c0_20] : memref<1x512xf32, #tpu.memory_space<vmem>>, vector<1x512xf32>
    %29 = vector.broadcast %28 : vector<1x512xf32> to vector<16x512xf32>
    %30 = arith.addf %27, %29 : vector<16x512xf32>
    %cst_21 = arith.constant 0.000000e+00 : f32
    %31 = vector.broadcast %cst_21 : f32 to vector<16x512xf32>
    %32 = arith.cmpf ogt, %30, %31 : vector<16x512xf32>
    %cst_22 = arith.constant 2.000000e-01 : f32
    %33 = vector.broadcast %cst_22 : f32 to vector<16x512xf32>
    %34 = arith.mulf %33, %30 : vector<16x512xf32>
    %35 = arith.select %32, %30, %34 : vector<16x512xi1>, vector<16x512xf32>
    %36 = arith.truncf %35 : vector<16x512xf32> to vector<16x512xbf16>
    %c0_23 = arith.constant 0 : index
    %c0_24 = arith.constant 0 : index
    %37 = vector.load %arg7[%c0_23, %c0_24] : memref<512x256xbf16, #tpu.memory_space<vmem>>, vector<512x256xbf16>
    %cst_25 = arith.constant dense<0.000000e+00> : vector<16x256xf32>
    %38 = tpu.matmul %36, %37, %cst_25 {dimension_numbers = #tpu.dot_dimension_numbers<[1], [0], [0], [1], [0, 0, 1, 1], [], []>} : vector<16x512xbf16>, vector<512x256xbf16>, vector<16x256xf32> -> vector<16x256xf32>
    %c0_26 = arith.constant 0 : index
    %c0_27 = arith.constant 0 : index
    %39 = vector.load %arg8[%c0_26, %c0_27] : memref<1x256xf32, #tpu.memory_space<vmem>>, vector<1x256xf32>
    %40 = vector.broadcast %39 : vector<1x256xf32> to vector<16x256xf32>
    %41 = arith.addf %38, %40 : vector<16x256xf32>
    %cst_28 = arith.constant 0.000000e+00 : f32
    %42 = vector.broadcast %cst_28 : f32 to vector<16x256xf32>
    %43 = arith.cmpf ogt, %41, %42 : vector<16x256xf32>
    %cst_29 = arith.constant 2.000000e-01 : f32
    %44 = vector.broadcast %cst_29 : f32 to vector<16x256xf32>
    %45 = arith.mulf %44, %41 : vector<16x256xf32>
    %46 = arith.select %43, %41, %45 : vector<16x256xi1>, vector<16x256xf32>
    %c0_30 = arith.constant 0 : index
    %c0_31 = arith.constant 0 : index
    %47 = vector.load %arg9[%c0_30, %c0_31] : memref<1x256xf32, #tpu.memory_space<vmem>>, vector<1x256xf32>
    %48 = vector.broadcast %47 : vector<1x256xf32> to vector<16x256xf32>
    %49 = arith.mulf %46, %48 : vector<16x256xf32>
    %cst_32 = arith.constant dense<0.000000e+00> : vector<16xf32>
    %50 = vector.multi_reduction <add>, %49, %cst_32 [1] : vector<16x256xf32> to vector<16xf32>
    %51 = vector.shape_cast %50 : vector<16xf32> to vector<1x16xf32>
    %c0_33 = arith.constant 0 : index
    %c0_34 = arith.constant 0 : index
    %52 = vector.load %arg10[%c0_33, %c0_34] : memref<1x1xf32, #tpu.memory_space<vmem>>, vector<1x1xf32>
    %53 = vector.broadcast %52 : vector<1x1xf32> to vector<1x16xf32>
    %54 = arith.addf %51, %53 : vector<1x16xf32>
    %55 = arith.negf %54 : vector<1x16xf32>
    %56 = math.exp %55 : vector<1x16xf32>
    %cst_35 = arith.constant 1.000000e+00 : f32
    %57 = vector.broadcast %cst_35 : f32 to vector<1x16xf32>
    %58 = arith.addf %57, %56 : vector<1x16xf32>
    %59 = arith.divf %57, %58 : vector<1x16xf32>
    %c0_36 = arith.constant 0 : index
    %c0_37 = arith.constant 0 : index
    %60 = vector.load %arg11[%c0_36, %c0_37] : memref<1x16xf32, #tpu.memory_space<vmem>>, vector<1x16xf32>
    tpu.vector_store %arg11[%c0_36, %c0_37], %59 {strides = array<i32>} : memref<1x16xf32, #tpu.memory_space<vmem>>, vector<1x16xf32>,
    return
  }
  func.func @transform_0(%arg0: i32) -> (i32, i32) {
    %c0_i32 = arith.constant 0 : i32
    %c0_i32_0 = arith.constant 0 : i32
    return %arg0, %c0_i32 : i32, i32
  }
  func.func @transform_1(%arg0: i32) -> (i32, i32) {
    %c0_i32 = arith.constant 0 : i32
    %c0_i32_0 = arith.constant 0 : i32
    return %arg0, %c0_i32 : i32, i32
  }
  func.func @transform_2(%arg0: i32) -> (i32, i32) {
    %c0_i32 = arith.constant 0 : i32
    %c0_i32_0 = arith.constant 0 : i32
    %c0_i32_1 = arith.constant 0 : i32
    return %c0_i32, %c0_i32_0 : i32, i32
  }
  func.func @transform_3(%arg0: i32) -> (i32, i32) {
    %c0_i32 = arith.constant 0 : i32
    %c0_i32_0 = arith.constant 0 : i32
    %c0_i32_1 = arith.constant 0 : i32
    return %c0_i32, %c0_i32_0 : i32, i32
  }
  func.func @transform_4(%arg0: i32) -> (i32, i32) {
    %c0_i32 = arith.constant 0 : i32
    %c0_i32_0 = arith.constant 0 : i32
    %c0_i32_1 = arith.constant 0 : i32
    return %c0_i32, %c0_i32_0 : i32, i32
  }
  func.func @transform_5(%arg0: i32) -> (i32, i32) {
    %c0_i32 = arith.constant 0 : i32
    %c0_i32_0 = arith.constant 0 : i32
    %c0_i32_1 = arith.constant 0 : i32
    return %c0_i32, %c0_i32_0 : i32, i32
  }
  func.func @transform_6(%arg0: i32) -> (i32, i32) {
    %c0_i32 = arith.constant 0 : i32
    %c0_i32_0 = arith.constant 0 : i32
    %c0_i32_1 = arith.constant 0 : i32
    return %c0_i32, %c0_i32_0 : i32, i32
  }
  func.func @transform_7(%arg0: i32) -> (i32, i32) {
    %c0_i32 = arith.constant 0 : i32
    %c0_i32_0 = arith.constant 0 : i32
    %c0_i32_1 = arith.constant 0 : i32
    return %c0_i32, %c0_i32_0 : i32, i32
  }
  func.func @transform_8(%arg0: i32) -> (i32, i32) {
    %c0_i32 = arith.constant 0 : i32
    %c0_i32_0 = arith.constant 0 : i32
    %c0_i32_1 = arith.constant 0 : i32
    return %c0_i32, %c0_i32_0 : i32, i32
  }
  func.func @transform_9(%arg0: i32) -> (i32, i32) {
    %c0_i32 = arith.constant 0 : i32
    %c0_i32_0 = arith.constant 0 : i32
    %c0_i32_1 = arith.constant 0 : i32
    return %c0_i32, %c0_i32_0 : i32, i32
  }
  func.func @transform_10(%arg0: i32) -> (i32, i32) {
    %c0_i32 = arith.constant 0 : i32
    %c0_i32_0 = arith.constant 0 : i32
    return %arg0, %c0_i32 : i32, i32
  }
}

</mosaic_0001>

<llo_original>
// kernel: discriminator_forward.1
$region0: #{discriminator_forward.1}
  #allocation0 [shape = 'u32[]', space=smem, size = 0x4, offset = 0x4, fixed_abs, tag = 'smem constant byte address 0x4 - core index']
  #allocation1 [shape = 'u32[72,128]{1,0:T(1,128)}', space=vmem, size = 0x9000, scoped, tag = 'internal scratch']
  #allocation2 [shape = 'bf16[16,896]{1,0:T(8,128)(2,1)}', space=vmem, size = 0x7000, scoped, tag = 'scratch operand']
  #allocation3 [shape = 'f32[1,1]{1,0:T(1,128)S(1)}', space=vmem, size = 0x200, scoped, tag = 'scoped memory for discriminator_forward.1']
  %s0 = inlined_call_operand.vmem [shape: s32[16,1], index: 0, kind: input, shape index: {}]
  %s1 = inlined_call_operand.vmem [shape: f32[16,784], index: 1, kind: input, shape index: {}]
  %s2 = inlined_call_operand.hbm [shape: bf16[896,1024], index: 2, kind: input, shape index: {}]
  %s3 = inlined_call_operand.hbm [shape: f32[1,1024], index: 3, kind: input, shape index: {}]
  %s4 = inlined_call_operand.hbm [shape: bf16[1024,512], index: 4, kind: input, shape index: {}]
  %s5 = inlined_call_operand.hbm [shape: f32[1,512], index: 5, kind: input, shape index: {}]
  %s6 = inlined_call_operand.hbm [shape: bf16[512,256], index: 6, kind: input, shape index: {}]
  %s7 = inlined_call_operand.hbm [shape: f32[1,256], index: 7, kind: input, shape index: {}]
  %s8 = inlined_call_operand.hbm [shape: f32[1,256], index: 8, kind: input, shape index: {}]
  %s9 = inlined_call_operand.<no memory space> [shape: f32[1,1], index: 9, kind: input, shape index: {}]
  %s10 = inlined_call_operand.vmem [shape: f32[1,16], index: 10, kind: output, shape index: {}]
  %s11 = sld [smem:[#allocation0]]
  $region78: #{discriminator_forward.1} parent=0
    _
  %s13 = ssub.s32 1, %s11
  %s14 = scalar_select 0, %s13, %s11
  %v15 = vstv %s9
  %16 = vst [vmem:[#allocation3] sm:$0x1] %v15
  $region1: #{discriminator_forward.1} parent=0
    #allocation4 [shape = 'u8[1835008]{0}', space=vmem, size = 0x1c0000, scoped, tag = 'input window, operand 2, single buffered']
    #allocation5 [shape = 's32[1]{0}', space=sflag, size = 0x4, scoped, tag = 'scoped memory for discriminator_forward.1']
    #allocation6 [shape = 'u8[4096]{0}', space=vmem, size = 0x1000, scoped, tag = 'input window, operand 3, single buffered']
    #allocation7 [shape = 's32[1]{0}', space=sflag, size = 0x4, scoped, tag = 'scoped memory for discriminator_forward.1']
    #allocation8 [shape = 'u8[1048576]{0}', space=vmem, size = 0x100000, scoped, tag = 'input window, operand 4, single buffered']
    #allocation9 [shape = 'u8[2048]{0}', space=vmem, size = 0x800, scoped, tag = 'input window, operand 5, single buffered']
    #allocation10 [shape = 's32[1]{0}', space=sflag, size = 0x4, scoped, tag = 'scoped memory for discriminator_forward.1']
    #allocation11 [shape = 'u8[262144]{0}', space=vmem, size = 0x40000, scoped, tag = 'input window, operand 6, single buffered']
    #allocation12 [shape = 'u8[1024]{0}', space=vmem, size = 0x400, scoped, tag = 'input window, operand 7, single buffered']
    #allocation13 [shape = 's32[1]{0}', space=sflag, size = 0x4, scoped, tag = 'scoped memory for discriminator_forward.1']
    #allocation14 [shape = 'u8[1024]{0}', space=vmem, size = 0x400, scoped, tag = 'input window, operand 8, single buffered']
    %17 = vsyncpa [#allocation5], 0
    %18 = vsyncpa [#allocation7], 0
    %19 = vsyncpa [#allocation10], 0
    %20 = vsyncpa [#allocation13], 0
    // Predicated region
    $region2: #{discriminator_forward.1} parent=1 // pred_check
      _
    $region3: #{discriminator_forward.1} parent=1 // pred_check_branch
      %22 = sbr.rel (0) target = $region5
    $region4: #{discriminator_forward.1} parent=1 // pred_region
      _
    $region5: #{discriminator_forward.1} parent=1 // pred_fallthru
      _
    // Predicated region
    $region6: #{discriminator_forward.1} parent=1 // pred_check
      _
    $region7: #{discriminator_forward.1} parent=1 // pred_check_branch
      %24 = sbr.rel (0) target = $region9
    $region8: #{discriminator_forward.1} parent=1 // pred_region
      _
    $region9: #{discriminator_forward.1} parent=1 // pred_fallthru
      _
    // Predicated region
    $region10: #{discriminator_forward.1} parent=1 // pred_check
      _
    $region11: #{discriminator_forward.1} parent=1 // pred_check_branch
      %26 = sbr.rel (0) target = $region13
    $region12: #{discriminator_forward.1} parent=1 // pred_region
      %28 = vsyncadd [#allocation5], 0
      %s29 = sshll.u32 %s2, 4
      %s30 = int_to_ptr.hbm [resolvable:$true] %s29
      %s31 = sshll.u32 [#allocation4], 4
      %s32 = int_to_ptr.vmem [resolvable:$true] %s31
      %37 = dma.hbm_to_vmem [thread:$0]  %s30, 57344, %s32, [#allocation5], 512, 512, 32
    $region13: #{discriminator_forward.1} parent=1 // pred_fallthru
      _
    // Predicated region
    $region14: #{discriminator_forward.1} parent=1 // pred_check
      _
    $region15: #{discriminator_forward.1} parent=1 // pred_check_branch
      %39 = sbr.rel (0) target = $region17
    $region16: #{discriminator_forward.1} parent=1 // pred_region
      %41 = vsyncadd [#allocation7], 0
      %s43 = sshll.u32 %s3, 4
      %s44 = int_to_ptr.hbm [resolvable:$true] %s43
      %s45 = sshll.u32 [#allocation6], 4
      %s46 = int_to_ptr.vmem [resolvable:$true] %s45
      %48 = dma.hbm_to_vmem [thread:$0]  %s44, 128, %s46, [#allocation7]
    $region17: #{discriminator_forward.1} parent=1 // pred_fallthru
      _
    // Predicated region
    $region18: #{discriminator_forward.1} parent=1 // pred_check
      _
    $region19: #{discriminator_forward.1} parent=1 // pred_check_branch
      %50 = sbr.rel (0) target = $region21
    $region20: #{discriminator_forward.1} parent=1 // pred_region
      %52 = vsyncadd [#allocation7], 0
      %s53 = sshll.u32 %s4, 4
      %s54 = int_to_ptr.hbm [resolvable:$true] %s53
      %s55 = sshll.u32 [#allocation8], 4
      %s56 = int_to_ptr.vmem [resolvable:$true] %s55
      %61 = dma.hbm_to_vmem [thread:$0]  %s54, 32768, %s56, [#allocation7], 256, 256, 16
    $region21: #{discriminator_forward.1} parent=1 // pred_fallthru
      _
    // Predicated region
    $region22: #{discriminator_forward.1} parent=1 // pred_check
      _
    $region23: #{discriminator_forward.1} parent=1 // pred_check_branch
      %63 = sbr.rel (0) target = $region25
    $region24: #{discriminator_forward.1} parent=1 // pred_region
      %65 = vsyncadd [#allocation10], 0
      %s67 = sshll.u32 %s5, 4
      %s68 = int_to_ptr.hbm [resolvable:$true] %s67
      %s69 = sshll.u32 [#allocation9], 4
      %s70 = int_to_ptr.vmem [resolvable:$true] %s69
      %72 = dma.hbm_to_vmem [thread:$0]  %s68, 64, %s70, [#allocation10]
    $region25: #{discriminator_forward.1} parent=1 // pred_fallthru
      _
    // Predicated region
    $region26: #{discriminator_forward.1} parent=1 // pred_check
      _
    $region27: #{discriminator_forward.1} parent=1 // pred_check_branch
      %74 = sbr.rel (0) target = $region29
    $region28: #{discriminator_forward.1} parent=1 // pred_region
      %76 = vsyncadd [#allocation10], 0
      %s77 = sshll.u32 %s6, 4
      %s78 = int_to_ptr.hbm [resolvable:$true] %s77
      %s79 = sshll.u32 [#allocation11], 4
      %s80 = int_to_ptr.vmem [resolvable:$true] %s79
      %85 = dma.hbm_to_vmem [thread:$0]  %s78, 8192, %s80, [#allocation10], 128, 128, 8
    $region29: #{discriminator_forward.1} parent=1 // pred_fallthru
      _
    // Predicated region
    $region30: #{discriminator_forward.1} parent=1 // pred_check
      _
    $region31: #{discriminator_forward.1} parent=1 // pred_check_branch
      %87 = sbr.rel (0) target = $region33
    $region32: #{discriminator_forward.1} parent=1 // pred_region
      %89 = vsyncadd [#allocation13], 0
      %s91 = sshll.u32 %s7, 4
      %s92 = int_to_ptr.hbm [resolvable:$true] %s91
      %s93 = sshll.u32 [#allocation12], 4
      %s94 = int_to_ptr.vmem [resolvable:$true] %s93
      %96 = dma.hbm_to_vmem [thread:$0]  %s92, 32, %s94, [#allocation13]
    $region33: #{discriminator_forward.1} parent=1 // pred_fallthru
      _
    // Predicated region
    $region34: #{discriminator_forward.1} parent=1 // pred_check
      _
    $region35: #{discriminator_forward.1} parent=1 // pred_check_branch
      %98 = sbr.rel (0) target = $region37
    $region36: #{discriminator_forward.1} parent=1 // pred_region
      %100 = vsyncadd [#allocation13], 0
      %s102 = sshll.u32 %s8, 4
      %s103 = int_to_ptr.hbm [resolvable:$true] %s102
      %s104 = sshll.u32 [#allocation14], 4
      %s105 = int_to_ptr.vmem [resolvable:$true] %s104
      %107 = dma.hbm_to_vmem [thread:$0]  %s103, 32, %s105, [#allocation13]
    $region37: #{discriminator_forward.1} parent=1 // pred_fallthru
      _
    // Predicated region
    $region38: #{discriminator_forward.1} parent=1 // pred_check
      _
    $region39: #{discriminator_forward.1} parent=1 // pred_check_branch
      %109 = sbr.rel (0) target = $region41
    $region40: #{discriminator_forward.1} parent=1 // pred_region
      _
    $region41: #{discriminator_forward.1} parent=1 // pred_fallthru
      _
    // Predicated region
    $region42: #{discriminator_forward.1} parent=1 // pred_check
      _
    $region43: #{discriminator_forward.1} parent=1 // pred_check_branch
      %111 = sbr.rel (0) target = $region45
    $region44: #{discriminator_forward.1} parent=1 // pred_region
      %113 = dma.done [#allocation5], 57344
    $region45: #{discriminator_forward.1} parent=1 // pred_fallthru
      _
    // Predicated region
    $region46: #{discriminator_forward.1} parent=1 // pred_check
      _
    $region47: #{discriminator_forward.1} parent=1 // pred_check_branch
      %115 = sbr.rel (0) target = $region49
    $region48: #{discriminator_forward.1} parent=1 // pred_region
      %117 = dma.done [#allocation7], 128
    $region49: #{discriminator_forward.1} parent=1 // pred_fallthru
      _
    // Predicated region
    $region50: #{discriminator_forward.1} parent=1 // pred_check
      _
    $region51: #{discriminator_forward.1} parent=1 // pred_check_branch
      %119 = sbr.rel (0) target = $region53
    $region52: #{discriminator_forward.1} parent=1 // pred_region
      %121 = dma.done [#allocation7], 32768
    $region53: #{discriminator_forward.1} parent=1 // pred_fallthru
      _
    // Predicated region
    $region54: #{discriminator_forward.1} parent=1 // pred_check
      _
    $region55: #{discriminator_forward.1} parent=1 // pred_check_branch
      %123 = sbr.rel (0) target = $region57
    $region56: #{discriminator_forward.1} parent=1 // pred_region
      %125 = dma.done [#allocation10], 64
    $region57: #{discriminator_forward.1} parent=1 // pred_fallthru
      _
    // Predicated region
    $region58: #{discriminator_forward.1} parent=1 // pred_check
      _
    $region59: #{discriminator_forward.1} parent=1 // pred_check_branch
      %127 = sbr.rel (0) target = $region61
    $region60: #{discriminator_forward.1} parent=1 // pred_region
      %129 = dma.done [#allocation10], 8192
    $region61: #{discriminator_forward.1} parent=1 // pred_fallthru
      _
    // Predicated region
    $region62: #{discriminator_forward.1} parent=1 // pred_check
      _
    $region63: #{discriminator_forward.1} parent=1 // pred_check_branch
      %131 = sbr.rel (0) target = $region65
    $region64: #{discriminator_forward.1} parent=1 // pred_region
      %133 = dma.done [#allocation13], 32
    $region65: #{discriminator_forward.1} parent=1 // pred_fallthru
      _
    // Predicated region
    $region66: #{discriminator_forward.1} parent=1 // pred_check
      _
    $region67: #{discriminator_forward.1} parent=1 // pred_check_branch
      %135 = sbr.rel (0) target = $region69
    $region68: #{discriminator_forward.1} parent=1 // pred_region
      %137 = dma.done [#allocation13], 32
    $region69: #{discriminator_forward.1} parent=1 // pred_fallthru
      _
    %v138 = vlaneseq
    %v139 = vand.u32 %v138, 127
    %v140 = vld [vmem:[%s0] sm:$0xff]
    %v141 = vld [vmem:[%s0 + $0x8] sm:$0xff]
    %v142 = vadd.s32 %v140, 16
    %v143 = vadd.s32 %v141, 16
    %144 = vset.pattern.permute.xlu0 0
    %145 = vperm.xlu0 %144, %v142
    %v146 = vpop.permute.xlu0 %145
    %147 = vset.pattern.permute.xlu0 0
    %148 = vperm.xlu0 %147, %v143
    %v149 = vpop.permute.xlu0 %148
    %vm150 = vcmp.eq.s32.totalorder %v139, %v146
    %vm151 = vcmp.eq.s32.totalorder %v139, %v149
    %v152 = vsel %vm150, 1.0, 0.0
    %v153 = vsel %vm151, 1.0, 0.0
    %v154 = vpack.c.bf16 %v152, %v152
    %v155 = vpack.c.bf16 %v153, %v153
    %156 = vst [vmem:[#allocation2 + $0x18] sm:$0xf] %v154
    %157 = vst [vmem:[#allocation2 + $0x34] sm:$0xf] %v155
    %v158 = vld [vmem:[%s1] sm:$0xff]
    %v159 = vld [vmem:[%s1 + $0x8] sm:$0xff]
    %v160 = vld [vmem:[%s1 + $0x10] sm:$0xff]
    %v161 = vld [vmem:[%s1 + $0x18] sm:$0xff]
    %v162 = vld [vmem:[%s1 + $0x20] sm:$0xff]
    %v163 = vld [vmem:[%s1 + $0x28] sm:$0xff]
    %v164 = vld [vmem:[%s1 + $0x30] sm:$0xff]
    %v165 = vld [vmem:[%s1 + $0x38] sm:$0xff]
    %v166 = vld [vmem:[%s1 + $0x40] sm:$0xff]
    %v167 = vld [vmem:[%s1 + $0x48] sm:$0xff]
    %v168 = vld [vmem:[%s1 + $0x50] sm:$0xff]
    %v169 = vld [vmem:[%s1 + $0x58] sm:$0xff]
    %v170 = vld [vmem:[%s1 + $0x60] sm:$0xff]
    %v171 = vld [vmem:[%s1 + $0x68] sm:$0xff]
    %v172 = vpack.c.bf16 %v159, %v158
    %v173 = vpack.c.bf16 %v161, %v160
    %v174 = vpack.c.bf16 %v163, %v162
    %v175 = vpack.c.bf16 %v164, %v164
    %v176 = vpack.c.bf16 %v166, %v165
    %v177 = vpack.c.bf16 %v168, %v167
    %v178 = vpack.c.bf16 %v170, %v169
    %v179 = vpack.c.bf16 %v171, %v171
    %180 = vst [vmem:[#allocation2] sm:$0xff] %v172
    %181 = vst [vmem:[#allocation2 + $0x8] sm:$0xff] %v173
    %182 = vst [vmem:[#allocation2 + $0x10] sm:$0xff] %v174
    %vm183 = vcmask 125952
    %184 = vst.msk [vmem:[#allocation2 + $0x18] sm:$0xf] %vm183, %v175
    %185 = vst [vmem:[#allocation2 + $0x1c] sm:$0xff] %v176
    %186 = vst [vmem:[#allocation2 + $0x24] sm:$0xff] %v177
    %187 = vst [vmem:[#allocation2 + $0x2c] sm:$0xff] %v178
    %188 = vst.msk [vmem:[#allocation2 + $0x34] sm:$0xf] %vm183, %v179
    %v189 = vld [vmem:[#allocation2] sm:$0xff]
    %v190 = vld [vmem:[#allocation2 + $0x8] sm:$0xff]
    %v191 = vld [vmem:[#allocation2 + $0x10] sm:$0xff]
    %v192 = vld [vmem:[#allocation2 + $0x18] sm:$0xf]
    %v193 = vld [vmem:[#allocation2 + $0x1c] sm:$0xff]
    %v194 = vld [vmem:[#allocation2 + $0x24] sm:$0xff]
    %v195 = vld [vmem:[#allocation2 + $0x2c] sm:$0xff]
    %v196 = vld [vmem:[#allocation2 + $0x34] sm:$0xf]
    %v197 = vld [vmem:[#allocation4] sm:$0xff]
    %v198 = vld [vmem:[#allocation4 + $0x8] sm:$0xff]
    %v199 = vld [vmem:[#allocation4 + $0x10] sm:$0xff]
    %v200 = vld [vmem:[#allocation4 + $0x18] sm:$0xff]
    %v201 = vld [vmem:[#allocation4 + $0x20] sm:$0xff]
    %v202 = vld [vmem:[#allocation4 + $0x28] sm:$0xff]
    %v203 = vld [vmem:[#allocation4 + $0x30] sm:$0xff]
    %v204 = vld [vmem:[#allocation4 + $0x38] sm:$0xff]
    %v205 = vld [vmem:[#allocation4 + $0x40] sm:$0xff]
    %v206 = vld [vmem:[#allocation4 + $0x48] sm:$0xff]
    %v207 = vld [vmem:[#allocation4 + $0x50] sm:$0xff]
    %v208 = vld [vmem:[#allocation4 + $0x58] sm:$0xff]
    %v209 = vld [vmem:[#allocation4 + $0x60] sm:$0xff]
    %v210 = vld [vmem:[#allocation4 + $0x68] sm:$0xff]
    %v211 = vld [vmem:[#allocation4 + $0x70] sm:$0xff]
    %v212 = vld [vmem:[#allocation4 + $0x78] sm:$0xff]
    %v213 = vld [vmem:[#allocation4 + $0x80] sm:$0xff]
    %v214 = vld [vmem:[#allocation4 + $0x88] sm:$0xff]
    %v215 = vld [vmem:[#allocation4 + $0x90] sm:$0xff]
    %v216 = vld [vmem:[#allocation4 + $0x98] sm:$0xff]
    %v217 = vld [vmem:[#allocation4 + $0xa0] sm:$0xff]
    %v218 = vld [vmem:[#allocation4 + $0xa8] sm:$0xff]
    %v219 = vld [vmem:[#allocation4 + $0xb0] sm:$0xff]
    %v220 = vld [vmem:[#allocation4 + $0xb8] sm:$0xff]
    %v221 = vld [vmem:[#allocation4 + $0xc0] sm:$0xff]
    %v222 = vld [vmem:[#allocation4 + $0xc8] sm:$0xff]
    %v223 = vld [vmem:[#allocation4 + $0xd0] sm:$0xff]
    %v224 = vld [vmem:[#allocation4 + $0xd8] sm:$0xff]
    %v225 = vld [vmem:[#allocation4 + $0xe0] sm:$0xff]
    %v226 = vld [vmem:[#allocation4 + $0xe8] sm:$0xff]
    %v227 = vld [vmem:[#allocation4 + $0xf0] sm:$0xff]
    %v228 = vld [vmem:[#allocation4 + $0xf8] sm:$0xff]
    %v229 = vld [vmem:[#allocation4 + $0x100] sm:$0xff]
    %v230 = vld [vmem:[#allocation4 + $0x108] sm:$0xff]
    %v231 = vld [vmem:[#allocation4 + $0x110] sm:$0xff]
    %v232 = vld [vmem:[#allocation4 + $0x118] sm:$0xff]
    %v233 = vld [vmem:[#allocation4 + $0x120] sm:$0xff]
    %v234 = vld [vmem:[#allocation4 + $0x128] sm:$0xff]
    %v235 = vld [vmem:[#allocation4 + $0x130] sm:$0xff]
    %v236 = vld [vmem:[#allocation4 + $0x138] sm:$0xff]
    %v237 = vld [vmem:[#allocation4 + $0x140] sm:$0xff]
    %v238 = vld [vmem:[#allocation4 + $0x148] sm:$0xff]
    %v239 = vld [vmem:[#allocation4 + $0x150] sm:$0xff]
    %v240 = vld [vmem:[#allocation4 + $0x158] sm:$0xff]
    %v241 = vld [vmem:[#allocation4 + $0x160] sm:$0xff]
    %v242 = vld [vmem:[#allocation4 + $0x168] sm:$0xff]
    %v243 = vld [vmem:[#allocation4 + $0x170] sm:$0xff]
    %v244 = vld [vmem:[#allocation4 + $0x178] sm:$0xff]
    %v245 = vld [vmem:[#allocation4 + $0x180] sm:$0xff]
    %v246 = vld [vmem:[#allocation4 + $0x188] sm:$0xff]
    %v247 = vld [vmem:[#allocation4 + $0x190] sm:$0xff]
    %v248 = vld [vmem:[#allocation4 + $0x198] sm:$0xff]
    %v249 = vld [vmem:[#allocation4 + $0x1a0] sm:$0xff]
    %v250 = vld [vmem:[#allocation4 + $0x1a8] sm:$0xff]
    %v251 = vld [vmem:[#allocation4 + $0x1b0] sm:$0xff]
    %v252 = vld [vmem:[#allocation4 + $0x1b8] sm:$0xff]
    %v253 = vld [vmem:[#allocation4 + $0x1c0] sm:$0xff]
    %v254 = vld [vmem:[#allocation4 + $0x1c8] sm:$0xff]
    %v255 = vld [vmem:[#allocation4 + $0x1d0] sm:$0xff]
    %v256 = vld [vmem:[#allocation4 + $0x1d8] sm:$0xff]
    %v257 = vld [vmem:[#allocation4 + $0x1e0] sm:$0xff]
    %v258 = vld [vmem:[#allocation4 + $0x1e8] sm:$0xff]
    %v259 = vld [vmem:[#allocation4 + $0x1f0] sm:$0xff]
    %v260 = vld [vmem:[#allocation4 + $0x1f8] sm:$0xff]
    %v261 = vld [vmem:[#allocation4 + $0x200] sm:$0xff]
    %v262 = vld [vmem:[#allocation4 + $0x208] sm:$0xff]
    %v263 = vld [vmem:[#allocation4 + $0x210] sm:$0xff]
    %v264 = vld [vmem:[#allocation4 + $0x218] sm:$0xff]
    %v265 = vld [vmem:[#allocation4 + $0x220] sm:$0xff]
    %v266 = vld [vmem:[#allocation4 + $0x228] sm:$0xff]
    %v267 = vld [vmem:[#allocation4 + $0x230] sm:$0xff]
    %v268 = vld [vmem:[#allocation4 + $0x238] sm:$0xff]
    %v269 = vld [vmem:[#allocation4 + $0x240] sm:$0xff]
    %v270 = vld [vmem:[#allocation4 + $0x248] sm:$0xff]
    %v271 = vld [vmem:[#allocation4 + $0x250] sm:$0xff]
    %v272 = vld [vmem:[#allocation4 + $0x258] sm:$0xff]
    %v273 = vld [vmem:[#allocation4 + $0x260] sm:$0xff]
    %v274 = vld [vmem:[#allocation4 + $0x268] sm:$0xff]
    %v275 = vld [vmem:[#allocation4 + $0x270] sm:$0xff]
    %v276 = vld [vmem:[#allocation4 + $0x278] sm:$0xff]
    %v277 = vld [vmem:[#allocation4 + $0x280] sm:$0xff]
    %v278 = vld [vmem:[#allocation4 + $0x288] sm:$0xff]
    %v279 = vld [vmem:[#allocation4 + $0x290] sm:$0xff]
    %v280 = vld [vmem:[#allocation4 + $0x298] sm:$0xff]
    %v281 = vld [vmem:[#allocation4 + $0x2a0] sm:$0xff]
    %v282 = vld [vmem:[#allocation4 + $0x2a8] sm:$0xff]
    %v283 = vld [vmem:[#allocation4 + $0x2b0] sm:$0xff]
    %v284 = vld [vmem:[#allocation4 + $0x2b8] sm:$0xff]
    %v285 = vld [vmem:[#allocation4 + $0x2c0] sm:$0xff]
    %v286 = vld [vmem:[#allocation4 + $0x2c8] sm:$0xff]
    %v287 = vld [vmem:[#allocation4 + $0x2d0] sm:$0xff]
    %v288 = vld [vmem:[#allocation4 + $0x2d8] sm:$0xff]
    %v289 = vld [vmem:[#allocation4 + $0x2e0] sm:$0xff]
    %v290 = vld [vmem:[#allocation4 + $0x2e8] sm:$0xff]
    %v291 = vld [vmem:[#allocation4 + $0x2f0] sm:$0xff]
    %v292 = vld [vmem:[#allocation4 + $0x2f8] sm:$0xff]
    %v293 = vld [vmem:[#allocation4 + $0x300] sm:$0xff]
    %v294 = vld [vmem:[#allocation4 + $0x308] sm:$0xff]
    %v295 = vld [vmem:[#allocation4 + $0x310] sm:$0xff]
    %v296 = vld [vmem:[#allocation4 + $0x318] sm:$0xff]
    %v297 = vld [vmem:[#allocation4 + $0x320] sm:$0xff]
    %v298 = vld [vmem:[#allocation4 + $0x328] sm:$0xff]
    %v299 = vld [vmem:[#allocation4 + $0x330] sm:$0xff]
    %v300 = vld [vmem:[#allocation4 + $0x338] sm:$0xff]
    %v301 = vld [vmem:[#allocation4 + $0x340] sm:$0xff]
    %v302 = vld [vmem:[#allocation4 + $0x348] sm:$0xff]
    %v303 = vld [vmem:[#allocation4 + $0x350] sm:$0xff]
    %v304 = vld [vmem:[#allocation4 + $0x358] sm:$0xff]
    %v305 = vld [vmem:[#allocation4 + $0x360] sm:$0xff]
    %v306 = vld [vmem:[#allocation4 + $0x368] sm:$0xff]
    %v307 = vld [vmem:[#allocation4 + $0x370] sm:$0xff]
    %v308 = vld [vmem:[#allocation4 + $0x378] sm:$0xff]
    %v309 = vld [vmem:[#allocation4 + $0x380] sm:$0xff]
    %v310 = vld [vmem:[#allocation4 + $0x388] sm:$0xff]
    %v311 = vld [vmem:[#allocation4 + $0x390] sm:$0xff]
    %v312 = vld [vmem:[#allocation4 + $0x398] sm:$0xff]
    %v313 = vld [vmem:[#allocation4 + $0x3a0] sm:$0xff]
    %v314 = vld [vmem:[#allocation4 + $0x3a8] sm:$0xff]
    %v315 = vld [vmem:[#allocation4 + $0x3b0] sm:$0xff]
    %v316 = vld [vmem:[#allocation4 + $0x3b8] sm:$0xff]
    %v317 = vld [vmem:[#allocation4 + $0x3c0] sm:$0xff]
    %v318 = vld [vmem:[#allocation4 + $0x3c8] sm:$0xff]
    %v319 = vld [vmem:[#allocation4 + $0x3d0] sm:$0xff]
    %v320 = vld [vmem:[#allocation4 + $0x3d8] sm:$0xff]
    %v321 = vld [vmem:[#allocation4 + $0x3e0] sm:$0xff]
    %v322 = vld [vmem:[#allocation4 + $0x3e8] sm:$0xff]
    %v323 = vld [vmem:[#allocation4 + $0x3f0] sm:$0xff]
    %v324 = vld [vmem:[#allocation4 + $0x3f8] sm:$0xff]
    %v325 = vld [vmem:[#allocation4 + $0x400] sm:$0xff]
    %v326 = vld [vmem:[#allocation4 + $0x408] sm:$0xff]
    %v327 = vld [vmem:[#allocation4 + $0x410] sm:$0xff]
    %v328 = vld [vmem:[#allocation4 + $0x418] sm:$0xff]
    %v329 = vld [vmem:[#allocation4 + $0x420] sm:$0xff]
    %v330 = vld [vmem:[#allocation4 + $0x428] sm:$0xff]
    %v331 = vld [vmem:[#allocation4 + $0x430] sm:$0xff]
    %v332 = vld [vmem:[#allocation4 + $0x438] sm:$0xff]
    %v333 = vld [vmem:[#allocation4 + $0x440] sm:$0xff]
    %v334 = vld [vmem:[#allocation4 + $0x448] sm:$0xff]
    %v335 = vld [vmem:[#allocation4 + $0x450] sm:$0xff]
    %v336 = vld [vmem:[#allocation4 + $0x458] sm:$0xff]
    %v337 = vld [vmem:[#allocation4 + $0x460] sm:$0xff]
    %v338 = vld [vmem:[#allocation4 + $0x468] sm:$0xff]
    %v339 = vld [vmem:[#allocation4 + $0x470] sm:$0xff]
    %v340 = vld [vmem:[#allocation4 + $0x478] sm:$0xff]
    %v341 = vld [vmem:[#allocation4 + $0x480] sm:$0xff]
    %v342 = vld [vmem:[#allocation4 + $0x488] sm:$0xff]
    %v343 = vld [vmem:[#allocation4 + $0x490] sm:$0xff]
    %v344 = vld [vmem:[#allocation4 + $0x498] sm:$0xff]
    %v345 = vld [vmem:[#allocation4 + $0x4a0] sm:$0xff]
    %v346 = vld [vmem:[#allocation4 + $0x4a8] sm:$0xff]
    %v347 = vld [vmem:[#allocation4 + $0x4b0] sm:$0xff]
    %v348 = vld [vmem:[#allocation4 + $0x4b8] sm:$0xff]
    %v349 = vld [vmem:[#allocation4 + $0x4c0] sm:$0xff]
    %v350 = vld [vmem:[#allocation4 + $0x4c8] sm:$0xff]
    %v351 = vld [vmem:[#allocation4 + $0x4d0] sm:$0xff]
    %v352 = vld [vmem:[#allocation4 + $0x4d8] sm:$0xff]
    %v353 = vld [vmem:[#allocation4 + $0x4e0] sm:$0xff]
    %v354 = vld [vmem:[#allocation4 + $0x4e8] sm:$0xff]
    %v355 = vld [vmem:[#allocation4 + $0x4f0] sm:$0xff]
    %v356 = vld [vmem:[#allocation4 + $0x4f8] sm:$0xff]
    %v357 = vld [vmem:[#allocation4 + $0x500] sm:$0xff]
    %v358 = vld [vmem:[#allocation4 + $0x508] sm:$0xff]
    %v359 = vld [vmem:[#allocation4 + $0x510] sm:$0xff]
    %v360 = vld [vmem:[#allocation4 + $0x518] sm:$0xff]
    %v361 = vld [vmem:[#allocation4 + $0x520] sm:$0xff]
    %v362 = vld [vmem:[#allocation4 + $0x528] sm:$0xff]
    %v363 = vld [vmem:[#allocation4 + $0x530] sm:$0xff]
    %v364 = vld [vmem:[#allocation4 + $0x538] sm:$0xff]
    %v365 = vld [vmem:[#allocation4 + $0x540] sm:$0xff]
    %v366 = vld [vmem:[#allocation4 + $0x548] sm:$0xff]
    %v367 = vld [vmem:[#allocation4 + $0x550] sm:$0xff]
    %v368 = vld [vmem:[#allocation4 + $0x558] sm:$0xff]
    %v369 = vld [vmem:[#allocation4 + $0x560] sm:$0xff]
    %v370 = vld [vmem:[#allocation4 + $0x568] sm:$0xff]
    %v371 = vld [vmem:[#allocation4 + $0x570] sm:$0xff]
    %v372 = vld [vmem:[#allocation4 + $0x578] sm:$0xff]
    %v373 = vld [vmem:[#allocation4 + $0x580] sm:$0xff]
    %v374 = vld [vmem:[#allocation4 + $0x588] sm:$0xff]
    %v375 = vld [vmem:[#allocation4 + $0x590] sm:$0xff]
    %v376 = vld [vmem:[#allocation4 + $0x598] sm:$0xff]
    %v377 = vld [vmem:[#allocation4 + $0x5a0] sm:$0xff]
    %v378 = vld [vmem:[#allocation4 + $0x5a8] sm:$0xff]
    %v379 = vld [vmem:[#allocation4 + $0x5b0] sm:$0xff]
    %v380 = vld [vmem:[#allocation4 + $0x5b8] sm:$0xff]
    %v381 = vld [vmem:[#allocation4 + $0x5c0] sm:$0xff]
    %v382 = vld [vmem:[#allocation4 + $0x5c8] sm:$0xff]
    %v383 = vld [vmem:[#allocation4 + $0x5d0] sm:$0xff]
    %v384 = vld [vmem:[#allocation4 + $0x5d8] sm:$0xff]
    %v385 = vld [vmem:[#allocation4 + $0x5e0] sm:$0xff]
    %v386 = vld [vmem:[#allocation4 + $0x5e8] sm:$0xff]
    %v387 = vld [vmem:[#allocation4 + $0x5f0] sm:$0xff]
    %v388 = vld [vmem:[#allocation4 + $0x5f8] sm:$0xff]
    %v389 = vld [vmem:[#allocation4 + $0x600] sm:$0xff]
    %v390 = vld [vmem:[#allocation4 + $0x608] sm:$0xff]
    %v391 = vld [vmem:[#allocation4 + $0x610] sm:$0xff]
    %v392 = vld [vmem:[#allocation4 + $0x618] sm:$0xff]
    %v393 = vld [vmem:[#allocation4 + $0x620] sm:$0xff]
    %v394 = vld [vmem:[#allocation4 + $0x628] sm:$0xff]
    %v395 = vld [vmem:[#allocation4 + $0x630] sm:$0xff]
    %v396 = vld [vmem:[#allocation4 + $0x638] sm:$0xff]
    %v397 = vld [vmem:[#allocation4 + $0x640] sm:$0xff]
    %v398 = vld [vmem:[#allocation4 + $0x648] sm:$0xff]
    %v399 = vld [vmem:[#allocation4 + $0x650] sm:$0xff]
    %v400 = vld [vmem:[#allocation4 + $0x658] sm:$0xff]
    %v401 = vld [vmem:[#allocation4 + $0x660] sm:$0xff]
    %v402 = vld [vmem:[#allocation4 + $0x668] sm:$0xff]
    %v403 = vld [vmem:[#allocation4 + $0x670] sm:$0xff]
    %v404 = vld [vmem:[#allocation4 + $0x678] sm:$0xff]
    %v405 = vld [vmem:[#allocation4 + $0x680] sm:$0xff]
    %v406 = vld [vmem:[#allocation4 + $0x688] sm:$0xff]
    %v407 = vld [vmem:[#allocation4 + $0x690] sm:$0xff]
    %v408 = vld [vmem:[#allocation4 + $0x698] sm:$0xff]
    %v409 = vld [vmem:[#allocation4 + $0x6a0] sm:$0xff]
    %v410 = vld [vmem:[#allocation4 + $0x6a8] sm:$0xff]
    %v411 = vld [vmem:[#allocation4 + $0x6b0] sm:$0xff]
    %v412 = vld [vmem:[#allocation4 + $0x6b8] sm:$0xff]
    %v413 = vld [vmem:[#allocation4 + $0x6c0] sm:$0xff]
    %v414 = vld [vmem:[#allocation4 + $0x6c8] sm:$0xff]
    %v415 = vld [vmem:[#allocation4 + $0x6d0] sm:$0xff]
    %v416 = vld [vmem:[#allocation4 + $0x6d8] sm:$0xff]
    %v417 = vld [vmem:[#allocation4 + $0x6e0] sm:$0xff]
    %v418 = vld [vmem:[#allocation4 + $0x6e8] sm:$0xff]
    %v419 = vld [vmem:[#allocation4 + $0x6f0] sm:$0xff]
    %v420 = vld [vmem:[#allocation4 + $0x6f8] sm:$0xff]
    %v421 = vld [vmem:[#allocation4 + $0x700] sm:$0xff]
    %v422 = vld [vmem:[#allocation4 + $0x708] sm:$0xff]
    %v423 = vld [vmem:[#allocation4 + $0x710] sm:$0xff]
    %v424 = vld [vmem:[#allocation4 + $0x718] sm:$0xff]
    %v425 = vld [vmem:[#allocation4 + $0x720] sm:$0xff]
    %v426 = vld [vmem:[#allocation4 + $0x728] sm:$0xff]
    %v427 = vld [vmem:[#allocation4 + $0x730] sm:$0xff]
    %v428 = vld [vmem:[#allocation4 + $0x738] sm:$0xff]
    %v429 = vld [vmem:[#allocation4 + $0x740] sm:$0xff]
    %v430 = vld [vmem:[#allocation4 + $0x748] sm:$0xff]
    %v431 = vld [vmem:[#allocation4 + $0x750] sm:$0xff]
    %v432 = vld [vmem:[#allocation4 + $0x758] sm:$0xff]
    %v433 = vld [vmem:[#allocation4 + $0x760] sm:$0xff]
    %v434 = vld [vmem:[#allocation4 + $0x768] sm:$0xff]
    %v435 = vld [vmem:[#allocation4 + $0x770] sm:$0xff]
    %v436 = vld [vmem:[#allocation4 + $0x778] sm:$0xff]
    %v437 = vld [vmem:[#allocation4 + $0x780] sm:$0xff]
    %v438 = vld [vmem:[#allocation4 + $0x788] sm:$0xff]
    %v439 = vld [vmem:[#allocation4 + $0x790] sm:$0xff]
    %v440 = vld [vmem:[#allocation4 + $0x798] sm:$0xff]
    %v441 = vld [vmem:[#allocation4 + $0x7a0] sm:$0xff]
    %v442 = vld [vmem:[#allocation4 + $0x7a8] sm:$0xff]
    %v443 = vld [vmem:[#allocation4 + $0x7b0] sm:$0xff]
    %v444 = vld [vmem:[#allocation4 + $0x7b8] sm:$0xff]
    %v445 = vld [vmem:[#allocation4 + $0x7c0] sm:$0xff]
    %v446 = vld [vmem:[#allocation4 + $0x7c8] sm:$0xff]
    %v447 = vld [vmem:[#allocation4 + $0x7d0] sm:$0xff]
    %v448 = vld [vmem:[#allocation4 + $0x7d8] sm:$0xff]
    %v449 = vld [vmem:[#allocation4 + $0x7e0] sm:$0xff]
    %v450 = vld [vmem:[#allocation4 + $0x7e8] sm:$0xff]
    %v451 = vld [vmem:[#allocation4 + $0x7f0] sm:$0xff]
    %v452 = vld [vmem:[#allocation4 + $0x7f8] sm:$0xff]
    %v453 = vld [vmem:[#allocation4 + $0x800] sm:$0xff]
    %v454 = vld [vmem:[#allocation4 + $0x808] sm:$0xff]
    %v455 = vld [vmem:[#allocation4 + $0x810] sm:$0xff]
    %v456 = vld [vmem:[#allocation4 + $0x818] sm:$0xff]
    %v457 = vld [vmem:[#allocation4 + $0x820] sm:$0xff]
    %v458 = vld [vmem:[#allocation4 + $0x828] sm:$0xff]
    %v459 = vld [vmem:[#allocation4 + $0x830] sm:$0xff]
    %v460 = vld [vmem:[#allocation4 + $0x838] sm:$0xff]
    %v461 = vld [vmem:[#allocation4 + $0x840] sm:$0xff]
    %v462 = vld [vmem:[#allocation4 + $0x848] sm:$0xff]
    %v463 = vld [vmem:[#allocation4 + $0x850] sm:$0xff]
    %v464 = vld [vmem:[#allocation4 + $0x858] sm:$0xff]
    %v465 = vld [vmem:[#allocation4 + $0x860] sm:$0xff]
    %v466 = vld [vmem:[#allocation4 + $0x868] sm:$0xff]
    %v467 = vld [vmem:[#allocation4 + $0x870] sm:$0xff]
    %v468 = vld [vmem:[#allocation4 + $0x878] sm:$0xff]
    %v469 = vld [vmem:[#allocation4 + $0x880] sm:$0xff]
    %v470 = vld [vmem:[#allocation4 + $0x888] sm:$0xff]
    %v471 = vld [vmem:[#allocation4 + $0x890] sm:$0xff]
    %v472 = vld [vmem:[#allocation4 + $0x898] sm:$0xff]
    %v473 = vld [vmem:[#allocation4 + $0x8a0] sm:$0xff]
    %v474 = vld [vmem:[#allocation4 + $0x8a8] sm:$0xff]
    %v475 = vld [vmem:[#allocation4 + $0x8b0] sm:$0xff]
    %v476 = vld [vmem:[#allocation4 + $0x8b8] sm:$0xff]
    %v477 = vld [vmem:[#allocation4 + $0x8c0] sm:$0xff]
    %v478 = vld [vmem:[#allocation4 + $0x8c8] sm:$0xff]
    %v479 = vld [vmem:[#allocation4 + $0x8d0] sm:$0xff]
    %v480 = vld [vmem:[#allocation4 + $0x8d8] sm:$0xff]
    %v481 = vld [vmem:[#allocation4 + $0x8e0] sm:$0xff]
    %v482 = vld [vmem:[#allocation4 + $0x8e8] sm:$0xff]
    %v483 = vld [vmem:[#allocation4 + $0x8f0] sm:$0xff]
    %v484 = vld [vmem:[#allocation4 + $0x8f8] sm:$0xff]
    %v485 = vld [vmem:[#allocation4 + $0x900] sm:$0xff]
    %v486 = vld [vmem:[#allocation4 + $0x908] sm:$0xff]
    %v487 = vld [vmem:[#allocation4 + $0x910] sm:$0xff]
    %v488 = vld [vmem:[#allocation4 + $0x918] sm:$0xff]
    %v489 = vld [vmem:[#allocation4 + $0x920] sm:$0xff]
    %v490 = vld [vmem:[#allocation4 + $0x928] sm:$0xff]
    %v491 = vld [vmem:[#allocation4 + $0x930] sm:$0xff]
    %v492 = vld [vmem:[#allocation4 + $0x938] sm:$0xff]
    %v493 = vld [vmem:[#allocation4 + $0x940] sm:$0xff]
    %v494 = vld [vmem:[#allocation4 + $0x948] sm:$0xff]
    %v495 = vld [vmem:[#allocation4 + $0x950] sm:$0xff]
    %v496 = vld [vmem:[#allocation4 + $0x958] sm:$0xff]
    %v497 = vld [vmem:[#allocation4 + $0x960] sm:$0xff]
    %v498 = vld [vmem:[#allocation4 + $0x968] sm:$0xff]
    %v499 = vld [vmem:[#allocation4 + $0x970] sm:$0xff]
    %v500 = vld [vmem:[#allocation4 + $0x978] sm:$0xff]
    %v501 = vld [vmem:[#allocation4 + $0x980] sm:$0xff]
    %v502 = vld [vmem:[#allocation4 + $0x988] sm:$0xff]
    %v503 = vld [vmem:[#allocation4 + $0x990] sm:$0xff]
    %v504 = vld [vmem:[#allocation4 + $0x998] sm:$0xff]
    %v505 = vld [vmem:[#allocation4 + $0x9a0] sm:$0xff]
    %v506 = vld [vmem:[#allocation4 + $0x9a8] sm:$0xff]
    %v507 = vld [vmem:[#allocation4 + $0x9b0] sm:$0xff]
    %v508 = vld [vmem:[#allocation4 + $0x9b8] sm:$0xff]
    %v509 = vld [vmem:[#allocation4 + $0x9c0] sm:$0xff]
    %v510 = vld [vmem:[#allocation4 + $0x9c8] sm:$0xff]
    %v511 = vld [vmem:[#allocation4 + $0x9d0] sm:$0xff]
    %v512 = vld [vmem:[#allocation4 + $0x9d8] sm:$0xff]
    %v513 = vld [vmem:[#allocation4 + $0x9e0] sm:$0xff]
    %v514 = vld [vmem:[#allocation4 + $0x9e8] sm:$0xff]
    %v515 = vld [vmem:[#allocation4 + $0x9f0] sm:$0xff]
    %v516 = vld [vmem:[#allocation4 + $0x9f8] sm:$0xff]
    %v517 = vld [vmem:[#allocation4 + $0xa00] sm:$0xff]
    %v518 = vld [vmem:[#allocation4 + $0xa08] sm:$0xff]
    %v519 = vld [vmem:[#allocation4 + $0xa10] sm:$0xff]
    %v520 = vld [vmem:[#allocation4 + $0xa18] sm:$0xff]
    %v521 = vld [vmem:[#allocation4 + $0xa20] sm:$0xff]
    %v522 = vld [vmem:[#allocation4 + $0xa28] sm:$0xff]
    %v523 = vld [vmem:[#allocation4 + $0xa30] sm:$0xff]
    %v524 = vld [vmem:[#allocation4 + $0xa38] sm:$0xff]
    %v525 = vld [vmem:[#allocation4 + $0xa40] sm:$0xff]
    %v526 = vld [vmem:[#allocation4 + $0xa48] sm:$0xff]
    %v527 = vld [vmem:[#allocation4 + $0xa50] sm:$0xff]
    %v528 = vld [vmem:[#allocation4 + $0xa58] sm:$0xff]
    %v529 = vld [vmem:[#allocation4 + $0xa60] sm:$0xff]
    %v530 = vld [vmem:[#allocation4 + $0xa68] sm:$0xff]
    %v531 = vld [vmem:[#allocation4 + $0xa70] sm:$0xff]
    %v532 = vld [vmem:[#allocation4 + $0xa78] sm:$0xff]
    %v533 = vld [vmem:[#allocation4 + $0xa80] sm:$0xff]
    %v534 = vld [vmem:[#allocation4 + $0xa88] sm:$0xff]
    %v535 = vld [vmem:[#allocation4 + $0xa90] sm:$0xff]
    %v536 = vld [vmem:[#allocation4 + $0xa98] sm:$0xff]
    %v537 = vld [vmem:[#allocation4 + $0xaa0] sm:$0xff]
    %v538 = vld [vmem:[#allocation4 + $0xaa8] sm:$0xff]
    %v539 = vld [vmem:[#allocation4 + $0xab0] sm:$0xff]
    %v540 = vld [vmem:[#allocation4 + $0xab8] sm:$0xff]
    %v541 = vld [vmem:[#allocation4 + $0xac0] sm:$0xff]
    %v542 = vld [vmem:[#allocation4 + $0xac8] sm:$0xff]
    %v543 = vld [vmem:[#allocation4 + $0xad0] sm:$0xff]
    %v544 = vld [vmem:[#allocation4 + $0xad8] sm:$0xff]
    %v545 = vld [vmem:[#allocation4 + $0xae0] sm:$0xff]
    %v546 = vld [vmem:[#allocation4 + $0xae8] sm:$0xff]
    %v547 = vld [vmem:[#allocation4 + $0xaf0] sm:$0xff]
    %v548 = vld [vmem:[#allocation4 + $0xaf8] sm:$0xff]
    %v549 = vld [vmem:[#allocation4 + $0xb00] sm:$0xff]
    %v550 = vld [vmem:[#allocation4 + $0xb08] sm:$0xff]
    %v551 = vld [vmem:[#allocation4 + $0xb10] sm:$0xff]
    %v552 = vld [vmem:[#allocation4 + $0xb18] sm:$0xff]
    %v553 = vld [vmem:[#allocation4 + $0xb20] sm:$0xff]
    %v554 = vld [vmem:[#allocation4 + $0xb28] sm:$0xff]
    %v555 = vld [vmem:[#allocation4 + $0xb30] sm:$0xff]
    %v556 = vld [vmem:[#allocation4 + $0xb38] sm:$0xff]
    %v557 = vld [vmem:[#allocation4 + $0xb40] sm:$0xff]
    %v558 = vld [vmem:[#allocation4 + $0xb48] sm:$0xff]
    %v559 = vld [vmem:[#allocation4 + $0xb50] sm:$0xff]
    %v560 = vld [vmem:[#allocation4 + $0xb58] sm:$0xff]
    %v561 = vld [vmem:[#allocation4 + $0xb60] sm:$0xff]
    %v562 = vld [vmem:[#allocation4 + $0xb68] sm:$0xff]
    %v563 = vld [vmem:[#allocation4 + $0xb70] sm:$0xff]
    %v564 = vld [vmem:[#allocation4 + $0xb78] sm:$0xff]
    %v565 = vld [vmem:[#allocation4 + $0xb80] sm:$0xff]
    %v566 = vld [vmem:[#allocation4 + $0xb88] sm:$0xff]
    %v567 = vld [vmem:[#allocation4 + $0xb90] sm:$0xff]
    %v568 = vld [vmem:[#allocation4 + $0xb98] sm:$0xff]
    %v569 = vld [vmem:[#allocation4 + $0xba0] sm:$0xff]
    %v570 = vld [vmem:[#allocation4 + $0xba8] sm:$0xff]
    %v571 = vld [vmem:[#allocation4 + $0xbb0] sm:$0xff]
    %v572 = vld [vmem:[#allocation4 + $0xbb8] sm:$0xff]
    %v573 = vld [vmem:[#allocation4 + $0xbc0] sm:$0xff]
    %v574 = vld [vmem:[#allocation4 + $0xbc8] sm:$0xff]
    %v575 = vld [vmem:[#allocation4 + $0xbd0] sm:$0xff]
    %v576 = vld [vmem:[#allocation4 + $0xbd8] sm:$0xff]
    %v577 = vld [vmem:[#allocation4 + $0xbe0] sm:$0xff]
    %v578 = vld [vmem:[#allocation4 + $0xbe8] sm:$0xff]
    %v579 = vld [vmem:[#allocation4 + $0xbf0] sm:$0xff]
    %v580 = vld [vmem:[#allocation4 + $0xbf8] sm:$0xff]
    %v581 = vld [vmem:[#allocation4 + $0xc00] sm:$0xff]
    %v582 = vld [vmem:[#allocation4 + $0xc08] sm:$0xff]
    %v583 = vld [vmem:[#allocation4 + $0xc10] sm:$0xff]
    %v584 = vld [vmem:[#allocation4 + $0xc18] sm:$0xff]
    %v585 = vld [vmem:[#allocation4 + $0xc20] sm:$0xff]
    %v586 = vld [vmem:[#allocation4 + $0xc28] sm:$0xff]
    %v587 = vld [vmem:[#allocation4 + $0xc30] sm:$0xff]
    %v588 = vld [vmem:[#allocation4 + $0xc38] sm:$0xff]
    %v589 = vld [vmem:[#allocation4 + $0xc40] sm:$0xff]
    %v590 = vld [vmem:[#allocation4 + $0xc48] sm:$0xff]
    %v591 = vld [vmem:[#allocation4 + $0xc50] sm:$0xff]
    %v592 = vld [vmem:[#allocation4 + $0xc58] sm:$0xff]
    %v593 = vld [vmem:[#allocation4 + $0xc60] sm:$0xff]
    %v594 = vld [vmem:[#allocation4 + $0xc68] sm:$0xff]
    %v595 = vld [vmem:[#allocation4 + $0xc70] sm:$0xff]
    %v596 = vld [vmem:[#allocation4 + $0xc78] sm:$0xff]
    %v597 = vld [vmem:[#allocation4 + $0xc80] sm:$0xff]
    %v598 = vld [vmem:[#allocation4 + $0xc88] sm:$0xff]
    %v599 = vld [vmem:[#allocation4 + $0xc90] sm:$0xff]
    %v600 = vld [vmem:[#allocation4 + $0xc98] sm:$0xff]
    %v601 = vld [vmem:[#allocation4 + $0xca0] sm:$0xff]
    %v602 = vld [vmem:[#allocation4 + $0xca8] sm:$0xff]
    %v603 = vld [vmem:[#allocation4 + $0xcb0] sm:$0xff]
    %v604 = vld [vmem:[#allocation4 + $0xcb8] sm:$0xff]
    %v605 = vld [vmem:[#allocation4 + $0xcc0] sm:$0xff]
    %v606 = vld [vmem:[#allocation4 + $0xcc8] sm:$0xff]
    %v607 = vld [vmem:[#allocation4 + $0xcd0] sm:$0xff]
    %v608 = vld [vmem:[#allocation4 + $0xcd8] sm:$0xff]
    %v609 = vld [vmem:[#allocation4 + $0xce0] sm:$0xff]
    %v610 = vld [vmem:[#allocation4 + $0xce8] sm:$0xff]
    %v611 = vld [vmem:[#allocation4 + $0xcf0] sm:$0xff]
    %v612 = vld [vmem:[#allocation4 + $0xcf8] sm:$0xff]
    %v613 = vld [vmem:[#allocation4 + $0xd00] sm:$0xff]
    %v614 = vld [vmem:[#allocation4 + $0xd08] sm:$0xff]
    %v615 = vld [vmem:[#allocation4 + $0xd10] sm:$0xff]
    %v616 = vld [vmem:[#allocation4 + $0xd18] sm:$0xff]
    %v617 = vld [vmem:[#allocation4 + $0xd20] sm:$0xff]
    %v618 = vld [vmem:[#allocation4 + $0xd28] sm:$0xff]
    %v619 = vld [vmem:[#allocation4 + $0xd30] sm:$0xff]
    %v620 = vld [vmem:[#allocation4 + $0xd38] sm:$0xff]
    %v621 = vld [vmem:[#allocation4 + $0xd40] sm:$0xff]
    %v622 = vld [vmem:[#allocation4 + $0xd48] sm:$0xff]
    %v623 = vld [vmem:[#allocation4 + $0xd50] sm:$0xff]
    %v624 = vld [vmem:[#allocation4 + $0xd58] sm:$0xff]
    %v625 = vld [vmem:[#allocation4 + $0xd60] sm:$0xff]
    %v626 = vld [vmem:[#allocation4 + $0xd68] sm:$0xff]
    %v627 = vld [vmem:[#allocation4 + $0xd70] sm:$0xff]
    %v628 = vld [vmem:[#allocation4 + $0xd78] sm:$0xff]
    %v629 = vld [vmem:[#allocation4 + $0xd80] sm:$0xff]
    %v630 = vld [vmem:[#allocation4 + $0xd88] sm:$0xff]
    %v631 = vld [vmem:[#allocation4 + $0xd90] sm:$0xff]
    %v632 = vld [vmem:[#allocation4 + $0xd98] sm:$0xff]
    %v633 = vld [vmem:[#allocation4 + $0xda0] sm:$0xff]
    %v634 = vld [vmem:[#allocation4 + $0xda8] sm:$0xff]
    %v635 = vld [vmem:[#allocation4 + $0xdb0] sm:$0xff]
    %v636 = vld [vmem:[#allocation4 + $0xdb8] sm:$0xff]
    %v637 = vld [vmem:[#allocation4 + $0xdc0] sm:$0xff]
    %v638 = vld [vmem:[#allocation4 + $0xdc8] sm:$0xff]
    %v639 = vld [vmem:[#allocation4 + $0xdd0] sm:$0xff]
    %v640 = vld [vmem:[#allocation4 + $0xdd8] sm:$0xff]
    %v641 = vld [vmem:[#allocation4 + $0xde0] sm:$0xff]
    %v642 = vld [vmem:[#allocation4 + $0xde8] sm:$0xff]
    %v643 = vld [vmem:[#allocation4 + $0xdf0] sm:$0xff]
    %v644 = vld [vmem:[#allocation4 + $0xdf8] sm:$0xff]
    %v645 = vld [vmem:[#allocation6] sm:$0xff]
    %v647 = vperm.slane %v645, 0
    %v648 = vperm.slane %v645, 1
    %v649 = vperm.slane %v645, 2
    %v650 = vperm.slane %v645, 3
    %v651 = vperm.slane %v645, 4
    %v652 = vperm.slane %v645, 5
    %v653 = vperm.slane %v645, 6
    %v654 = vperm.slane %v645, 7
    %v671 = vunpack.c.l.b16 %v189
    %v672 = vunpack.c.h.b16 %v189
    %v673 = vunpack.c.l.b16 %v190
    %v674 = vunpack.c.h.b16 %v190
    %v675 = vunpack.c.l.b16 %v191
    %v676 = vunpack.c.h.b16 %v191
    %v677 = vunpack.c.l.b16 %v192
    %v678 = vunpack.c.l.b16 %v193
    %v679 = vunpack.c.h.b16 %v193
    %v680 = vunpack.c.l.b16 %v194
    %v681 = vunpack.c.h.b16 %v194
    %v682 = vunpack.c.l.b16 %v195
    %v683 = vunpack.c.h.b16 %v195
    %v684 = vunpack.c.l.b16 %v196
    %v685 = vpack.c.b16 %v678, %v671
    %v686 = vpack.c.b16 %v679, %v672
    %v687 = vpack.c.b16 %v680, %v673
    %v688 = vpack.c.b16 %v681, %v674
    %v689 = vpack.c.b16 %v682, %v675
    %v690 = vpack.c.b16 %v683, %v676
    %v691 = vpack.c.b16 %v684, %v677
    %v1147 = vunpack.c.l.b16 %v197
    %v1148 = vunpack.c.h.b16 %v197
    %v1149 = vunpack.c.l.b16 %v198
    %v1150 = vunpack.c.h.b16 %v198
    %v1151 = vunpack.c.l.b16 %v199
    %v1152 = vunpack.c.h.b16 %v199
    %v1153 = vunpack.c.l.b16 %v200
    %v1154 = vunpack.c.h.b16 %v200
    %v1155 = vunpack.c.l.b16 %v201
    %v1156 = vunpack.c.h.b16 %v201
    %v1157 = vunpack.c.l.b16 %v202
    %v1158 = vunpack.c.h.b16 %v202
    %v1159 = vunpack.c.l.b16 %v203
    %v1160 = vunpack.c.h.b16 %v203
    %v1161 = vunpack.c.l.b16 %v204
    %v1162 = vunpack.c.h.b16 %v204
    %v1163 = vunpack.c.l.b16 %v205
    %v1164 = vunpack.c.h.b16 %v205
    %v1165 = vunpack.c.l.b16 %v206
    %v1166 = vunpack.c.h.b16 %v206
    %v1167 = vunpack.c.l.b16 %v207
    %v1168 = vunpack.c.h.b16 %v207
    %v1169 = vunpack.c.l.b16 %v208
    %v1170 = vunpack.c.h.b16 %v208
    %v1171 = vunpack.c.l.b16 %v209
    %v1172 = vunpack.c.h.b16 %v209
    %v1173 = vunpack.c.l.b16 %v210
    %v1174 = vunpack.c.h.b16 %v210
    %v1175 = vunpack.c.l.b16 %v211
    %v1176 = vunpack.c.h.b16 %v211
    %v1177 = vunpack.c.l.b16 %v212
    %v1178 = vunpack.c.h.b16 %v212
    %v1179 = vunpack.c.l.b16 %v213
    %v1180 = vunpack.c.h.b16 %v213
    %v1181 = vunpack.c.l.b16 %v214
    %v1182 = vunpack.c.h.b16 %v214
    %v1183 = vunpack.c.l.b16 %v215
    %v1184 = vunpack.c.h.b16 %v215
    %v1185 = vunpack.c.l.b16 %v216
    %v1186 = vunpack.c.h.b16 %v216
    %v1187 = vunpack.c.l.b16 %v217
    %v1188 = vunpack.c.h.b16 %v217
    %v1189 = vunpack.c.l.b16 %v218
    %v1190 = vunpack.c.h.b16 %v218
    %v1191 = vunpack.c.l.b16 %v219
    %v1192 = vunpack.c.h.b16 %v219
    %v1193 = vunpack.c.l.b16 %v220
    %v1194 = vunpack.c.h.b16 %v220
    %v1195 = vunpack.c.l.b16 %v221
    %v1196 = vunpack.c.h.b16 %v221
    %v1197 = vunpack.c.l.b16 %v222
    %v1198 = vunpack.c.h.b16 %v222
    %v1199 = vunpack.c.l.b16 %v223
    %v1200 = vunpack.c.h.b16 %v223
    %v1201 = vunpack.c.l.b16 %v224
    %v1202 = vunpack.c.h.b16 %v224
    %v1203 = vunpack.c.l.b16 %v225
    %v1204 = vunpack.c.h.b16 %v225
    %v1205 = vunpack.c.l.b16 %v226
    %v1206 = vunpack.c.h.b16 %v226
    %v1207 = vunpack.c.l.b16 %v227
    %v1208 = vunpack.c.h.b16 %v227
    %v1209 = vunpack.c.l.b16 %v228
    %v1210 = vunpack.c.h.b16 %v228
    %v1211 = vunpack.c.l.b16 %v229
    %v1212 = vunpack.c.h.b16 %v229
    %v1213 = vunpack.c.l.b16 %v230
    %v1214 = vunpack.c.h.b16 %v230
    %v1215 = vunpack.c.l.b16 %v231
    %v1216 = vunpack.c.h.b16 %v231
    %v1217 = vunpack.c.l.b16 %v232
    %v1218 = vunpack.c.h.b16 %v232
    %v1219 = vunpack.c.l.b16 %v233
    %v1220 = vunpack.c.h.b16 %v233
    %v1221 = vunpack.c.l.b16 %v234
    %v1222 = vunpack.c.h.b16 %v234
    %v1223 = vunpack.c.l.b16 %v235
    %v1224 = vunpack.c.h.b16 %v235
    %v1225 = vunpack.c.l.b16 %v236
    %v1226 = vunpack.c.h.b16 %v236
    %v1227 = vunpack.c.l.b16 %v237
    %v1228 = vunpack.c.h.b16 %v237
    %v1229 = vunpack.c.l.b16 %v238
    %v1230 = vunpack.c.h.b16 %v238
    %v1231 = vunpack.c.l.b16 %v239
    %v1232 = vunpack.c.h.b16 %v239
    %v1233 = vunpack.c.l.b16 %v240
    %v1234 = vunpack.c.h.b16 %v240
    %v1235 = vunpack.c.l.b16 %v241
    %v1236 = vunpack.c.h.b16 %v241
    %v1237 = vunpack.c.l.b16 %v242
    %v1238 = vunpack.c.h.b16 %v242
    %v1239 = vunpack.c.l.b16 %v243
    %v1240 = vunpack.c.h.b16 %v243
    %v1241 = vunpack.c.l.b16 %v244
    %v1242 = vunpack.c.h.b16 %v244
    %v1243 = vunpack.c.l.b16 %v245
    %v1244 = vunpack.c.h.b16 %v245
    %v1245 = vunpack.c.l.b16 %v246
    %v1246 = vunpack.c.h.b16 %v246
    %v1247 = vunpack.c.l.b16 %v247
    %v1248 = vunpack.c.h.b16 %v247
    %v1249 = vunpack.c.l.b16 %v248
    %v1250 = vunpack.c.h.b16 %v248
    %v1251 = vunpack.c.l.b16 %v249
    %v1252 = vunpack.c.h.b16 %v249
    %v1253 = vunpack.c.l.b16 %v250
    %v1254 = vunpack.c.h.b16 %v250
    %v1255 = vunpack.c.l.b16 %v251
    %v1256 = vunpack.c.h.b16 %v251
    %v1257 = vunpack.c.l.b16 %v252
    %v1258 = vunpack.c.h.b16 %v252
    %v1259 = vunpack.c.l.b16 %v253
    %v1260 = vunpack.c.h.b16 %v253
    %v1261 = vunpack.c.l.b16 %v254
    %v1262 = vunpack.c.h.b16 %v254
    %v1263 = vunpack.c.l.b16 %v255
    %v1264 = vunpack.c.h.b16 %v255
    %v1265 = vunpack.c.l.b16 %v256
    %v1266 = vunpack.c.h.b16 %v256
    %v1267 = vunpack.c.l.b16 %v257
    %v1268 = vunpack.c.h.b16 %v257
    %v1269 = vunpack.c.l.b16 %v258
    %v1270 = vunpack.c.h.b16 %v258
    %v1271 = vunpack.c.l.b16 %v259
    %v1272 = vunpack.c.h.b16 %v259
    %v1273 = vunpack.c.l.b16 %v260
    %v1274 = vunpack.c.h.b16 %v260
    %v1275 = vunpack.c.l.b16 %v261
    %v1276 = vunpack.c.h.b16 %v261
    %v1277 = vunpack.c.l.b16 %v262
    %v1278 = vunpack.c.h.b16 %v262
    %v1279 = vunpack.c.l.b16 %v263
    %v1280 = vunpack.c.h.b16 %v263
    %v1281 = vunpack.c.l.b16 %v264
    %v1282 = vunpack.c.h.b16 %v264
    %v1283 = vunpack.c.l.b16 %v265
    %v1284 = vunpack.c.h.b16 %v265
    %v1285 = vunpack.c.l.b16 %v266
    %v1286 = vunpack.c.h.b16 %v266
    %v1287 = vunpack.c.l.b16 %v267
    %v1288 = vunpack.c.h.b16 %v267
    %v1289 = vunpack.c.l.b16 %v268
    %v1290 = vunpack.c.h.b16 %v268
    %v1291 = vunpack.c.l.b16 %v269
    %v1292 = vunpack.c.h.b16 %v269
    %v1293 = vunpack.c.l.b16 %v270
    %v1294 = vunpack.c.h.b16 %v270
    %v1295 = vunpack.c.l.b16 %v271
    %v1296 = vunpack.c.h.b16 %v271
    %v1297 = vunpack.c.l.b16 %v272
    %v1298 = vunpack.c.h.b16 %v272
    %v1299 = vunpack.c.l.b16 %v273
    %v1300 = vunpack.c.h.b16 %v273
    %v1301 = vunpack.c.l.b16 %v274
    %v1302 = vunpack.c.h.b16 %v274
    %v1303 = vunpack.c.l.b16 %v275
    %v1304 = vunpack.c.h.b16 %v275
    %v1305 = vunpack.c.l.b16 %v276
    %v1306 = vunpack.c.h.b16 %v276
    %v1307 = vunpack.c.l.b16 %v277
    %v1308 = vunpack.c.h.b16 %v277
    %v1309 = vunpack.c.l.b16 %v278
    %v1310 = vunpack.c.h.b16 %v278
    %v1311 = vunpack.c.l.b16 %v279
    %v1312 = vunpack.c.h.b16 %v279
    %v1313 = vunpack.c.l.b16 %v280
    %v1314 = vunpack.c.h.b16 %v280
    %v1315 = vunpack.c.l.b16 %v281
    %v1316 = vunpack.c.h.b16 %v281
    %v1317 = vunpack.c.l.b16 %v282
    %v1318 = vunpack.c.h.b16 %v282
    %v1319 = vunpack.c.l.b16 %v283
    %v1320 = vunpack.c.h.b16 %v283
    %v1321 = vunpack.c.l.b16 %v284
    %v1322 = vunpack.c.h.b16 %v284
    %v1323 = vunpack.c.l.b16 %v285
    %v1324 = vunpack.c.h.b16 %v285
    %v1325 = vunpack.c.l.b16 %v286
    %v1326 = vunpack.c.h.b16 %v286
    %v1327 = vunpack.c.l.b16 %v287
    %v1328 = vunpack.c.h.b16 %v287
    %v1329 = vunpack.c.l.b16 %v288
    %v1330 = vunpack.c.h.b16 %v288
    %v1331 = vunpack.c.l.b16 %v289
    %v1332 = vunpack.c.h.b16 %v289
    %v1333 = vunpack.c.l.b16 %v290
    %v1334 = vunpack.c.h.b16 %v290
    %v1335 = vunpack.c.l.b16 %v291
    %v1336 = vunpack.c.h.b16 %v291
    %v1337 = vunpack.c.l.b16 %v292
    %v1338 = vunpack.c.h.b16 %v292
    %v1339 = vunpack.c.l.b16 %v293
    %v1340 = vunpack.c.h.b16 %v293
    %v1341 = vunpack.c.l.b16 %v294
    %v1342 = vunpack.c.h.b16 %v294
    %v1343 = vunpack.c.l.b16 %v295
    %v1344 = vunpack.c.h.b16 %v295
    %v1345 = vunpack.c.l.b16 %v296
    %v1346 = vunpack.c.h.b16 %v296
    %v1347 = vunpack.c.l.b16 %v297
    %v1348 = vunpack.c.h.b16 %v297
    %v1349 = vunpack.c.l.b16 %v298
    %v1350 = vunpack.c.h.b16 %v298
    %v1351 = vunpack.c.l.b16 %v299
    %v1352 = vunpack.c.h.b16 %v299
    %v1353 = vunpack.c.l.b16 %v300
    %v1354 = vunpack.c.h.b16 %v300
    %v1355 = vunpack.c.l.b16 %v301
    %v1356 = vunpack.c.h.b16 %v301
    %v1357 = vunpack.c.l.b16 %v302
    %v1358 = vunpack.c.h.b16 %v302
    %v1359 = vunpack.c.l.b16 %v303
    %v1360 = vunpack.c.h.b16 %v303
    %v1361 = vunpack.c.l.b16 %v304
    %v1362 = vunpack.c.h.b16 %v304
    %v1363 = vunpack.c.l.b16 %v305
    %v1364 = vunpack.c.h.b16 %v305
    %v1365 = vunpack.c.l.b16 %v306
    %v1366 = vunpack.c.h.b16 %v306
    %v1367 = vunpack.c.l.b16 %v307
    %v1368 = vunpack.c.h.b16 %v307
    %v1369 = vunpack.c.l.b16 %v308
    %v1370 = vunpack.c.h.b16 %v308
    %v1371 = vunpack.c.l.b16 %v309
    %v1372 = vunpack.c.h.b16 %v309
    %v1373 = vunpack.c.l.b16 %v310
    %v1374 = vunpack.c.h.b16 %v310
    %v1375 = vunpack.c.l.b16 %v311
    %v1376 = vunpack.c.h.b16 %v311
    %v1377 = vunpack.c.l.b16 %v312
    %v1378 = vunpack.c.h.b16 %v312
    %v1379 = vunpack.c.l.b16 %v313
    %v1380 = vunpack.c.h.b16 %v313
    %v1381 = vunpack.c.l.b16 %v314
    %v1382 = vunpack.c.h.b16 %v314
    %v1383 = vunpack.c.l.b16 %v315
    %v1384 = vunpack.c.h.b16 %v315
    %v1385 = vunpack.c.l.b16 %v316
    %v1386 = vunpack.c.h.b16 %v316
    %v1387 = vunpack.c.l.b16 %v317
    %v1388 = vunpack.c.h.b16 %v317
    %v1389 = vunpack.c.l.b16 %v318
    %v1390 = vunpack.c.h.b16 %v318
    %v1391 = vunpack.c.l.b16 %v319
    %v1392 = vunpack.c.h.b16 %v319
    %v1393 = vunpack.c.l.b16 %v320
    %v1394 = vunpack.c.h.b16 %v320
    %v1395 = vunpack.c.l.b16 %v321
    %v1396 = vunpack.c.h.b16 %v321
    %v1397 = vunpack.c.l.b16 %v322
    %v1398 = vunpack.c.h.b16 %v322
    %v1399 = vunpack.c.l.b16 %v323
    %v1400 = vunpack.c.h.b16 %v323
    %v1401 = vunpack.c.l.b16 %v324
    %v1402 = vunpack.c.h.b16 %v324
    %v1403 = vunpack.c.l.b16 %v325
    %v1404 = vunpack.c.h.b16 %v325
    %v1405 = vunpack.c.l.b16 %v326
    %v1406 = vunpack.c.h.b16 %v326
    %v1407 = vunpack.c.l.b16 %v327
    %v1408 = vunpack.c.h.b16 %v327
    %v1409 = vunpack.c.l.b16 %v328
    %v1410 = vunpack.c.h.b16 %v328
    %v1411 = vunpack.c.l.b16 %v329
    %v1412 = vunpack.c.h.b16 %v329
    %v1413 = vunpack.c.l.b16 %v330
    %v1414 = vunpack.c.h.b16 %v330
    %v1415 = vunpack.c.l.b16 %v331
    %v1416 = vunpack.c.h.b16 %v331
    %v1417 = vunpack.c.l.b16 %v332
    %v1418 = vunpack.c.h.b16 %v332
    %v1419 = vunpack.c.l.b16 %v333
    %v1420 = vunpack.c.h.b16 %v333
    %v1421 = vunpack.c.l.b16 %v334
    %v1422 = vunpack.c.h.b16 %v334
    %v1423 = vunpack.c.l.b16 %v335
    %v1424 = vunpack.c.h.b16 %v335
    %v1425 = vunpack.c.l.b16 %v336
    %v1426 = vunpack.c.h.b16 %v336
    %v1427 = vunpack.c.l.b16 %v337
    %v1428 = vunpack.c.h.b16 %v337
    %v1429 = vunpack.c.l.b16 %v338
    %v1430 = vunpack.c.h.b16 %v338
    %v1431 = vunpack.c.l.b16 %v339
    %v1432 = vunpack.c.h.b16 %v339
    %v1433 = vunpack.c.l.b16 %v340
    %v1434 = vunpack.c.h.b16 %v340
    %v1435 = vunpack.c.l.b16 %v341
    %v1436 = vunpack.c.h.b16 %v341
    %v1437 = vunpack.c.l.b16 %v342
    %v1438 = vunpack.c.h.b16 %v342
    %v1439 = vunpack.c.l.b16 %v343
    %v1440 = vunpack.c.h.b16 %v343
    %v1441 = vunpack.c.l.b16 %v344
    %v1442 = vunpack.c.h.b16 %v344
    %v1443 = vunpack.c.l.b16 %v345
    %v1444 = vunpack.c.h.b16 %v345
    %v1445 = vunpack.c.l.b16 %v346
    %v1446 = vunpack.c.h.b16 %v346
    %v1447 = vunpack.c.l.b16 %v347
    %v1448 = vunpack.c.h.b16 %v347
    %v1449 = vunpack.c.l.b16 %v348
    %v1450 = vunpack.c.h.b16 %v348
    %v1451 = vunpack.c.l.b16 %v349
    %v1452 = vunpack.c.h.b16 %v349
    %v1453 = vunpack.c.l.b16 %v350
    %v1454 = vunpack.c.h.b16 %v350
    %v1455 = vunpack.c.l.b16 %v351
    %v1456 = vunpack.c.h.b16 %v351
    %v1457 = vunpack.c.l.b16 %v352
    %v1458 = vunpack.c.h.b16 %v352
    %v1459 = vunpack.c.l.b16 %v353
    %v1460 = vunpack.c.h.b16 %v353
    %v1461 = vunpack.c.l.b16 %v354
    %v1462 = vunpack.c.h.b16 %v354
    %v1463 = vunpack.c.l.b16 %v355
    %v1464 = vunpack.c.h.b16 %v355
    %v1465 = vunpack.c.l.b16 %v356
    %v1466 = vunpack.c.h.b16 %v356
    %v1467 = vunpack.c.l.b16 %v357
    %v1468 = vunpack.c.h.b16 %v357
    %v1469 = vunpack.c.l.b16 %v358
    %v1470 = vunpack.c.h.b16 %v358
    %v1471 = vunpack.c.l.b16 %v359
    %v1472 = vunpack.c.h.b16 %v359
    %v1473 = vunpack.c.l.b16 %v360
    %v1474 = vunpack.c.h.b16 %v360
    %v1475 = vunpack.c.l.b16 %v361
    %v1476 = vunpack.c.h.b16 %v361
    %v1477 = vunpack.c.l.b16 %v362
    %v1478 = vunpack.c.h.b16 %v362
    %v1479 = vunpack.c.l.b16 %v363
    %v1480 = vunpack.c.h.b16 %v363
    %v1481 = vunpack.c.l.b16 %v364
    %v1482 = vunpack.c.h.b16 %v364
    %v1483 = vunpack.c.l.b16 %v365
    %v1484 = vunpack.c.h.b16 %v365
    %v1485 = vunpack.c.l.b16 %v366
    %v1486 = vunpack.c.h.b16 %v366
    %v1487 = vunpack.c.l.b16 %v367
    %v1488 = vunpack.c.h.b16 %v367
    %v1489 = vunpack.c.l.b16 %v368
    %v1490 = vunpack.c.h.b16 %v368
    %v1491 = vunpack.c.l.b16 %v369
    %v1492 = vunpack.c.h.b16 %v369
    %v1493 = vunpack.c.l.b16 %v370
    %v1494 = vunpack.c.h.b16 %v370
    %v1495 = vunpack.c.l.b16 %v371
    %v1496 = vunpack.c.h.b16 %v371
    %v1497 = vunpack.c.l.b16 %v372
    %v1498 = vunpack.c.h.b16 %v372
    %v1499 = vunpack.c.l.b16 %v373
    %v1500 = vunpack.c.h.b16 %v373
    %v1501 = vunpack.c.l.b16 %v374
    %v1502 = vunpack.c.h.b16 %v374
    %v1503 = vunpack.c.l.b16 %v375
    %v1504 = vunpack.c.h.b16 %v375
    %v1505 = vunpack.c.l.b16 %v376
    %v1506 = vunpack.c.h.b16 %v376
    %v1507 = vunpack.c.l.b16 %v377
    %v1508 = vunpack.c.h.b16 %v377
    %v1509 = vunpack.c.l.b16 %v378
    %v1510 = vunpack.c.h.b16 %v378
    %v1511 = vunpack.c.l.b16 %v379
    %v1512 = vunpack.c.h.b16 %v379
    %v1513 = vunpack.c.l.b16 %v380
    %v1514 = vunpack.c.h.b16 %v380
    %v1515 = vunpack.c.l.b16 %v381
    %v1516 = vunpack.c.h.b16 %v381
    %v1517 = vunpack.c.l.b16 %v382
    %v1518 = vunpack.c.h.b16 %v382
    %v1519 = vunpack.c.l.b16 %v383
    %v1520 = vunpack.c.h.b16 %v383
    %v1521 = vunpack.c.l.b16 %v384
    %v1522 = vunpack.c.h.b16 %v384
    %v1523 = vunpack.c.l.b16 %v385
    %v1524 = vunpack.c.h.b16 %v385
    %v1525 = vunpack.c.l.b16 %v386
    %v1526 = vunpack.c.h.b16 %v386
    %v1527 = vunpack.c.l.b16 %v387
    %v1528 = vunpack.c.h.b16 %v387
    %v1529 = vunpack.c.l.b16 %v388
    %v1530 = vunpack.c.h.b16 %v388
    %v1531 = vunpack.c.l.b16 %v389
    %v1532 = vunpack.c.h.b16 %v389
    %v1533 = vunpack.c.l.b16 %v390
    %v1534 = vunpack.c.h.b16 %v390
    %v1535 = vunpack.c.l.b16 %v391
    %v1536 = vunpack.c.h.b16 %v391
    %v1537 = vunpack.c.l.b16 %v392
    %v1538 = vunpack.c.h.b16 %v392
    %v1539 = vunpack.c.l.b16 %v393
    %v1540 = vunpack.c.h.b16 %v393
    %v1541 = vunpack.c.l.b16 %v394
    %v1542 = vunpack.c.h.b16 %v394
    %v1543 = vunpack.c.l.b16 %v395
    %v1544 = vunpack.c.h.b16 %v395
    %v1545 = vunpack.c.l.b16 %v396
    %v1546 = vunpack.c.h.b16 %v396
    %v1547 = vunpack.c.l.b16 %v397
    %v1548 = vunpack.c.h.b16 %v397
    %v1549 = vunpack.c.l.b16 %v398
    %v1550 = vunpack.c.h.b16 %v398
    %v1551 = vunpack.c.l.b16 %v399
    %v1552 = vunpack.c.h.b16 %v399
    %v1553 = vunpack.c.l.b16 %v400
    %v1554 = vunpack.c.h.b16 %v400
    %v1555 = vunpack.c.l.b16 %v401
    %v1556 = vunpack.c.h.b16 %v401
    %v1557 = vunpack.c.l.b16 %v402
    %v1558 = vunpack.c.h.b16 %v402
    %v1559 = vunpack.c.l.b16 %v403
    %v1560 = vunpack.c.h.b16 %v403
    %v1561 = vunpack.c.l.b16 %v404
    %v1562 = vunpack.c.h.b16 %v404
    %v1563 = vunpack.c.l.b16 %v405
    %v1564 = vunpack.c.h.b16 %v405
    %v1565 = vunpack.c.l.b16 %v406
    %v1566 = vunpack.c.h.b16 %v406
    %v1567 = vunpack.c.l.b16 %v407
    %v1568 = vunpack.c.h.b16 %v407
    %v1569 = vunpack.c.l.b16 %v408
    %v1570 = vunpack.c.h.b16 %v408
    %v1571 = vunpack.c.l.b16 %v409
    %v1572 = vunpack.c.h.b16 %v409
    %v1573 = vunpack.c.l.b16 %v410
    %v1574 = vunpack.c.h.b16 %v410
    %v1575 = vunpack.c.l.b16 %v411
    %v1576 = vunpack.c.h.b16 %v411
    %v1577 = vunpack.c.l.b16 %v412
    %v1578 = vunpack.c.h.b16 %v412
    %v1579 = vunpack.c.l.b16 %v413
    %v1580 = vunpack.c.h.b16 %v413
    %v1581 = vunpack.c.l.b16 %v414
    %v1582 = vunpack.c.h.b16 %v414
    %v1583 = vunpack.c.l.b16 %v415
    %v1584 = vunpack.c.h.b16 %v415
    %v1585 = vunpack.c.l.b16 %v416
    %v1586 = vunpack.c.h.b16 %v416
    %v1587 = vunpack.c.l.b16 %v417
    %v1588 = vunpack.c.h.b16 %v417
    %v1589 = vunpack.c.l.b16 %v418
    %v1590 = vunpack.c.h.b16 %v418
    %v1591 = vunpack.c.l.b16 %v419
    %v1592 = vunpack.c.h.b16 %v419
    %v1593 = vunpack.c.l.b16 %v420
    %v1594 = vunpack.c.h.b16 %v420
    %v1595 = vunpack.c.l.b16 %v421
    %v1596 = vunpack.c.h.b16 %v421
    %v1597 = vunpack.c.l.b16 %v422
    %v1598 = vunpack.c.h.b16 %v422
    %v1599 = vunpack.c.l.b16 %v423
    %v1600 = vunpack.c.h.b16 %v423
    %v1601 = vunpack.c.l.b16 %v424
    %v1602 = vunpack.c.h.b16 %v424
    %v1603 = vunpack.c.l.b16 %v425
    %v1604 = vunpack.c.h.b16 %v425
    %v1605 = vunpack.c.l.b16 %v426
    %v1606 = vunpack.c.h.b16 %v426
    %v1607 = vunpack.c.l.b16 %v427
    %v1608 = vunpack.c.h.b16 %v427
    %v1609 = vunpack.c.l.b16 %v428
    %v1610 = vunpack.c.h.b16 %v428
    %v1611 = vunpack.c.l.b16 %v429
    %v1612 = vunpack.c.h.b16 %v429
    %v1613 = vunpack.c.l.b16 %v430
    %v1614 = vunpack.c.h.b16 %v430
    %v1615 = vunpack.c.l.b16 %v431
    %v1616 = vunpack.c.h.b16 %v431
    %v1617 = vunpack.c.l.b16 %v432
    %v1618 = vunpack.c.h.b16 %v432
    %v1619 = vunpack.c.l.b16 %v433
    %v1620 = vunpack.c.h.b16 %v433
    %v1621 = vunpack.c.l.b16 %v434
    %v1622 = vunpack.c.h.b16 %v434
    %v1623 = vunpack.c.l.b16 %v435
    %v1624 = vunpack.c.h.b16 %v435
    %v1625 = vunpack.c.l.b16 %v436
    %v1626 = vunpack.c.h.b16 %v436
    %v1627 = vunpack.c.l.b16 %v437
    %v1628 = vunpack.c.h.b16 %v437
    %v1629 = vunpack.c.l.b16 %v438
    %v1630 = vunpack.c.h.b16 %v438
    %v1631 = vunpack.c.l.b16 %v439
    %v1632 = vunpack.c.h.b16 %v439
    %v1633 = vunpack.c.l.b16 %v440
    %v1634 = vunpack.c.h.b16 %v440
    %v1635 = vunpack.c.l.b16 %v441
    %v1636 = vunpack.c.h.b16 %v441
    %v1637 = vunpack.c.l.b16 %v442
    %v1638 = vunpack.c.h.b16 %v442
    %v1639 = vunpack.c.l.b16 %v443
    %v1640 = vunpack.c.h.b16 %v443
    %v1641 = vunpack.c.l.b16 %v444
    %v1642 = vunpack.c.h.b16 %v444
    %v1643 = vunpack.c.l.b16 %v445
    %v1644 = vunpack.c.h.b16 %v445
    %v1645 = vunpack.c.l.b16 %v446
    %v1646 = vunpack.c.h.b16 %v446
    %v1647 = vunpack.c.l.b16 %v447
    %v1648 = vunpack.c.h.b16 %v447
    %v1649 = vunpack.c.l.b16 %v448
    %v1650 = vunpack.c.h.b16 %v448
    %v1651 = vunpack.c.l.b16 %v449
    %v1652 = vunpack.c.h.b16 %v449
    %v1653 = vunpack.c.l.b16 %v450
    %v1654 = vunpack.c.h.b16 %v450
    %v1655 = vunpack.c.l.b16 %v451
    %v1656 = vunpack.c.h.b16 %v451
    %v1657 = vunpack.c.l.b16 %v452
    %v1658 = vunpack.c.h.b16 %v452
    %v1659 = vunpack.c.l.b16 %v453
    %v1660 = vunpack.c.h.b16 %v453
    %v1661 = vunpack.c.l.b16 %v454
    %v1662 = vunpack.c.h.b16 %v454
    %v1663 = vunpack.c.l.b16 %v455
    %v1664 = vunpack.c.h.b16 %v455
    %v1665 = vunpack.c.l.b16 %v456
    %v1666 = vunpack.c.h.b16 %v456
    %v1667 = vunpack.c.l.b16 %v457
    %v1668 = vunpack.c.h.b16 %v457
    %v1669 = vunpack.c.l.b16 %v458
    %v1670 = vunpack.c.h.b16 %v458
    %v1671 = vunpack.c.l.b16 %v459
    %v1672 = vunpack.c.h.b16 %v459
    %v1673 = vunpack.c.l.b16 %v460
    %v1674 = vunpack.c.h.b16 %v460
    %v1675 = vunpack.c.l.b16 %v461
    %v1676 = vunpack.c.h.b16 %v461
    %v1677 = vunpack.c.l.b16 %v462
    %v1678 = vunpack.c.h.b16 %v462
    %v1679 = vunpack.c.l.b16 %v463
    %v1680 = vunpack.c.h.b16 %v463
    %v1681 = vunpack.c.l.b16 %v464
    %v1682 = vunpack.c.h.b16 %v464
    %v1683 = vunpack.c.l.b16 %v465
    %v1684 = vunpack.c.h.b16 %v465
    %v1685 = vunpack.c.l.b16 %v466
    %v1686 = vunpack.c.h.b16 %v466
    %v1687 = vunpack.c.l.b16 %v467
    %v1688 = vunpack.c.h.b16 %v467
    %v1689 = vunpack.c.l.b16 %v468
    %v1690 = vunpack.c.h.b16 %v468
    %v1691 = vunpack.c.l.b16 %v469
    %v1692 = vunpack.c.h.b16 %v469
    %v1693 = vunpack.c.l.b16 %v470
    %v1694 = vunpack.c.h.b16 %v470
    %v1695 = vunpack.c.l.b16 %v471
    %v1696 = vunpack.c.h.b16 %v471
    %v1697 = vunpack.c.l.b16 %v472
    %v1698 = vunpack.c.h.b16 %v472
    %v1699 = vunpack.c.l.b16 %v473
    %v1700 = vunpack.c.h.b16 %v473
    %v1701 = vunpack.c.l.b16 %v474
    %v1702 = vunpack.c.h.b16 %v474
    %v1703 = vunpack.c.l.b16 %v475
    %v1704 = vunpack.c.h.b16 %v475
    %v1705 = vunpack.c.l.b16 %v476
    %v1706 = vunpack.c.h.b16 %v476
    %v1707 = vunpack.c.l.b16 %v477
    %v1708 = vunpack.c.h.b16 %v477
    %v1709 = vunpack.c.l.b16 %v478
    %v1710 = vunpack.c.h.b16 %v478
    %v1711 = vunpack.c.l.b16 %v479
    %v1712 = vunpack.c.h.b16 %v479
    %v1713 = vunpack.c.l.b16 %v480
    %v1714 = vunpack.c.h.b16 %v480
    %v1715 = vunpack.c.l.b16 %v481
    %v1716 = vunpack.c.h.b16 %v481
    %v1717 = vunpack.c.l.b16 %v482
    %v1718 = vunpack.c.h.b16 %v482
    %v1719 = vunpack.c.l.b16 %v483
    %v1720 = vunpack.c.h.b16 %v483
    %v1721 = vunpack.c.l.b16 %v484
    %v1722 = vunpack.c.h.b16 %v484
    %v1723 = vunpack.c.l.b16 %v485
    %v1724 = vunpack.c.h.b16 %v485
    %v1725 = vunpack.c.l.b16 %v486
    %v1726 = vunpack.c.h.b16 %v486
    %v1727 = vunpack.c.l.b16 %v487
    %v1728 = vunpack.c.h.b16 %v487
    %v1729 = vunpack.c.l.b16 %v488
    %v1730 = vunpack.c.h.b16 %v488
    %v1731 = vunpack.c.l.b16 %v489
    %v1732 = vunpack.c.h.b16 %v489
    %v1733 = vunpack.c.l.b16 %v490
    %v1734 = vunpack.c.h.b16 %v490
    %v1735 = vunpack.c.l.b16 %v491
    %v1736 = vunpack.c.h.b16 %v491
    %v1737 = vunpack.c.l.b16 %v492
    %v1738 = vunpack.c.h.b16 %v492
    %v1739 = vunpack.c.l.b16 %v493
    %v1740 = vunpack.c.h.b16 %v493
    %v1741 = vunpack.c.l.b16 %v494
    %v1742 = vunpack.c.h.b16 %v494
    %v1743 = vunpack.c.l.b16 %v495
    %v1744 = vunpack.c.h.b16 %v495
    %v1745 = vunpack.c.l.b16 %v496
    %v1746 = vunpack.c.h.b16 %v496
    %v1747 = vunpack.c.l.b16 %v497
    %v1748 = vunpack.c.h.b16 %v497
    %v1749 = vunpack.c.l.b16 %v498
    %v1750 = vunpack.c.h.b16 %v498
    %v1751 = vunpack.c.l.b16 %v499
    %v1752 = vunpack.c.h.b16 %v499
    %v1753 = vunpack.c.l.b16 %v500
    %v1754 = vunpack.c.h.b16 %v500
    %v1755 = vunpack.c.l.b16 %v501
    %v1756 = vunpack.c.h.b16 %v501
    %v1757 = vunpack.c.l.b16 %v502
    %v1758 = vunpack.c.h.b16 %v502
    %v1759 = vunpack.c.l.b16 %v503
    %v1760 = vunpack.c.h.b16 %v503
    %v1761 = vunpack.c.l.b16 %v504
    %v1762 = vunpack.c.h.b16 %v504
    %v1763 = vunpack.c.l.b16 %v505
    %v1764 = vunpack.c.h.b16 %v505
    %v1765 = vunpack.c.l.b16 %v506
    %v1766 = vunpack.c.h.b16 %v506
    %v1767 = vunpack.c.l.b16 %v507
    %v1768 = vunpack.c.h.b16 %v507
    %v1769 = vunpack.c.l.b16 %v508
    %v1770 = vunpack.c.h.b16 %v508
    %v1771 = vunpack.c.l.b16 %v509
    %v1772 = vunpack.c.h.b16 %v509
    %v1773 = vunpack.c.l.b16 %v510
    %v1774 = vunpack.c.h.b16 %v510
    %v1775 = vunpack.c.l.b16 %v511
    %v1776 = vunpack.c.h.b16 %v511
    %v1777 = vunpack.c.l.b16 %v512
    %v1778 = vunpack.c.h.b16 %v512
    %v1779 = vunpack.c.l.b16 %v513
    %v1780 = vunpack.c.h.b16 %v513
    %v1781 = vunpack.c.l.b16 %v514
    %v1782 = vunpack.c.h.b16 %v514
    %v1783 = vunpack.c.l.b16 %v515
    %v1784 = vunpack.c.h.b16 %v515
    %v1785 = vunpack.c.l.b16 %v516
    %v1786 = vunpack.c.h.b16 %v516
    %v1787 = vunpack.c.l.b16 %v517
    %v1788 = vunpack.c.h.b16 %v517
    %v1789 = vunpack.c.l.b16 %v518
    %v1790 = vunpack.c.h.b16 %v518
    %v1791 = vunpack.c.l.b16 %v519
    %v1792 = vunpack.c.h.b16 %v519
    %v1793 = vunpack.c.l.b16 %v520
    %v1794 = vunpack.c.h.b16 %v520
    %v1795 = vunpack.c.l.b16 %v521
    %v1796 = vunpack.c.h.b16 %v521
    %v1797 = vunpack.c.l.b16 %v522
    %v1798 = vunpack.c.h.b16 %v522
    %v1799 = vunpack.c.l.b16 %v523
    %v1800 = vunpack.c.h.b16 %v523
    %v1801 = vunpack.c.l.b16 %v524
    %v1802 = vunpack.c.h.b16 %v524
    %v1803 = vunpack.c.l.b16 %v525
    %v1804 = vunpack.c.h.b16 %v525
    %v1805 = vunpack.c.l.b16 %v526
    %v1806 = vunpack.c.h.b16 %v526
    %v1807 = vunpack.c.l.b16 %v527
    %v1808 = vunpack.c.h.b16 %v527
    %v1809 = vunpack.c.l.b16 %v528
    %v1810 = vunpack.c.h.b16 %v528
    %v1811 = vunpack.c.l.b16 %v529
    %v1812 = vunpack.c.h.b16 %v529
    %v1813 = vunpack.c.l.b16 %v530
    %v1814 = vunpack.c.h.b16 %v530
    %v1815 = vunpack.c.l.b16 %v531
    %v1816 = vunpack.c.h.b16 %v531
    %v1817 = vunpack.c.l.b16 %v532
    %v1818 = vunpack.c.h.b16 %v532
    %v1819 = vunpack.c.l.b16 %v533
    %v1820 = vunpack.c.h.b16 %v533
    %v1821 = vunpack.c.l.b16 %v534
    %v1822 = vunpack.c.h.b16 %v534
    %v1823 = vunpack.c.l.b16 %v535
    %v1824 = vunpack.c.h.b16 %v535
    %v1825 = vunpack.c.l.b16 %v536
    %v1826 = vunpack.c.h.b16 %v536
    %v1827 = vunpack.c.l.b16 %v537
    %v1828 = vunpack.c.h.b16 %v537
    %v1829 = vunpack.c.l.b16 %v538
    %v1830 = vunpack.c.h.b16 %v538
    %v1831 = vunpack.c.l.b16 %v539
    %v1832 = vunpack.c.h.b16 %v539
    %v1833 = vunpack.c.l.b16 %v540
    %v1834 = vunpack.c.h.b16 %v540
    %v1835 = vunpack.c.l.b16 %v541
    %v1836 = vunpack.c.h.b16 %v541
    %v1837 = vunpack.c.l.b16 %v542
    %v1838 = vunpack.c.h.b16 %v542
    %v1839 = vunpack.c.l.b16 %v543
    %v1840 = vunpack.c.h.b16 %v543
    %v1841 = vunpack.c.l.b16 %v544
    %v1842 = vunpack.c.h.b16 %v544
    %v1843 = vunpack.c.l.b16 %v545
    %v1844 = vunpack.c.h.b16 %v545
    %v1845 = vunpack.c.l.b16 %v546
    %v1846 = vunpack.c.h.b16 %v546
    %v1847 = vunpack.c.l.b16 %v547
    %v1848 = vunpack.c.h.b16 %v547
    %v1849 = vunpack.c.l.b16 %v548
    %v1850 = vunpack.c.h.b16 %v548
    %v1851 = vunpack.c.l.b16 %v549
    %v1852 = vunpack.c.h.b16 %v549
    %v1853 = vunpack.c.l.b16 %v550
    %v1854 = vunpack.c.h.b16 %v550
    %v1855 = vunpack.c.l.b16 %v551
    %v1856 = vunpack.c.h.b16 %v551
    %v1857 = vunpack.c.l.b16 %v552
    %v1858 = vunpack.c.h.b16 %v552
    %v1859 = vunpack.c.l.b16 %v553
    %v1860 = vunpack.c.h.b16 %v553
    %v1861 = vunpack.c.l.b16 %v554
    %v1862 = vunpack.c.h.b16 %v554
    %v1863 = vunpack.c.l.b16 %v555
    %v1864 = vunpack.c.h.b16 %v555
    %v1865 = vunpack.c.l.b16 %v556
    %v1866 = vunpack.c.h.b16 %v556
    %v1867 = vunpack.c.l.b16 %v557
    %v1868 = vunpack.c.h.b16 %v557
    %v1869 = vunpack.c.l.b16 %v558
    %v1870 = vunpack.c.h.b16 %v558
    %v1871 = vunpack.c.l.b16 %v559
    %v1872 = vunpack.c.h.b16 %v559
    %v1873 = vunpack.c.l.b16 %v560
    %v1874 = vunpack.c.h.b16 %v560
    %v1875 = vunpack.c.l.b16 %v561
    %v1876 = vunpack.c.h.b16 %v561
    %v1877 = vunpack.c.l.b16 %v562
    %v1878 = vunpack.c.h.b16 %v562
    %v1879 = vunpack.c.l.b16 %v563
    %v1880 = vunpack.c.h.b16 %v563
    %v1881 = vunpack.c.l.b16 %v564
    %v1882 = vunpack.c.h.b16 %v564
    %v1883 = vunpack.c.l.b16 %v565
    %v1884 = vunpack.c.h.b16 %v565
    %v1885 = vunpack.c.l.b16 %v566
    %v1886 = vunpack.c.h.b16 %v566
    %v1887 = vunpack.c.l.b16 %v567
    %v1888 = vunpack.c.h.b16 %v567
    %v1889 = vunpack.c.l.b16 %v568
    %v1890 = vunpack.c.h.b16 %v568
    %v1891 = vunpack.c.l.b16 %v569
    %v1892 = vunpack.c.h.b16 %v569
    %v1893 = vunpack.c.l.b16 %v570
    %v1894 = vunpack.c.h.b16 %v570
    %v1895 = vunpack.c.l.b16 %v571
    %v1896 = vunpack.c.h.b16 %v571
    %v1897 = vunpack.c.l.b16 %v572
    %v1898 = vunpack.c.h.b16 %v572
    %v1899 = vunpack.c.l.b16 %v573
    %v1900 = vunpack.c.h.b16 %v573
    %v1901 = vunpack.c.l.b16 %v574
    %v1902 = vunpack.c.h.b16 %v574
    %v1903 = vunpack.c.l.b16 %v575
    %v1904 = vunpack.c.h.b16 %v575
    %v1905 = vunpack.c.l.b16 %v576
    %v1906 = vunpack.c.h.b16 %v576
    %v1907 = vunpack.c.l.b16 %v577
    %v1908 = vunpack.c.h.b16 %v577
    %v1909 = vunpack.c.l.b16 %v578
    %v1910 = vunpack.c.h.b16 %v578
    %v1911 = vunpack.c.l.b16 %v579
    %v1912 = vunpack.c.h.b16 %v579
    %v1913 = vunpack.c.l.b16 %v580
    %v1914 = vunpack.c.h.b16 %v580
    %v1915 = vunpack.c.l.b16 %v581
    %v1916 = vunpack.c.h.b16 %v581
    %v1917 = vunpack.c.l.b16 %v582
    %v1918 = vunpack.c.h.b16 %v582
    %v1919 = vunpack.c.l.b16 %v583
    %v1920 = vunpack.c.h.b16 %v583
    %v1921 = vunpack.c.l.b16 %v584
    %v1922 = vunpack.c.h.b16 %v584
    %v1923 = vunpack.c.l.b16 %v585
    %v1924 = vunpack.c.h.b16 %v585
    %v1925 = vunpack.c.l.b16 %v586
    %v1926 = vunpack.c.h.b16 %v586
    %v1927 = vunpack.c.l.b16 %v587
    %v1928 = vunpack.c.h.b16 %v587
    %v1929 = vunpack.c.l.b16 %v588
    %v1930 = vunpack.c.h.b16 %v588
    %v1931 = vunpack.c.l.b16 %v589
    %v1932 = vunpack.c.h.b16 %v589
    %v1933 = vunpack.c.l.b16 %v590
    %v1934 = vunpack.c.h.b16 %v590
    %v1935 = vunpack.c.l.b16 %v591
    %v1936 = vunpack.c.h.b16 %v591
    %v1937 = vunpack.c.l.b16 %v592
    %v1938 = vunpack.c.h.b16 %v592
    %v1939 = vunpack.c.l.b16 %v593
    %v1940 = vunpack.c.h.b16 %v593
    %v1941 = vunpack.c.l.b16 %v594
    %v1942 = vunpack.c.h.b16 %v594
    %v1943 = vunpack.c.l.b16 %v595
    %v1944 = vunpack.c.h.b16 %v595
    %v1945 = vunpack.c.l.b16 %v596
    %v1946 = vunpack.c.h.b16 %v596
    %v1947 = vunpack.c.l.b16 %v597
    %v1948 = vunpack.c.h.b16 %v597
    %v1949 = vunpack.c.l.b16 %v598
    %v1950 = vunpack.c.h.b16 %v598
    %v1951 = vunpack.c.l.b16 %v599
    %v1952 = vunpack.c.h.b16 %v599
    %v1953 = vunpack.c.l.b16 %v600
    %v1954 = vunpack.c.h.b16 %v600
    %v1955 = vunpack.c.l.b16 %v601
    %v1956 = vunpack.c.h.b16 %v601
    %v1957 = vunpack.c.l.b16 %v602
    %v1958 = vunpack.c.h.b16 %v602
    %v1959 = vunpack.c.l.b16 %v603
    %v1960 = vunpack.c.h.b16 %v603
    %v1961 = vunpack.c.l.b16 %v604
    %v1962 = vunpack.c.h.b16 %v604
    %v1963 = vunpack.c.l.b16 %v605
    %v1964 = vunpack.c.h.b16 %v605
    %v1965 = vunpack.c.l.b16 %v606
    %v1966 = vunpack.c.h.b16 %v606
    %v1967 = vunpack.c.l.b16 %v607
    %v1968 = vunpack.c.h.b16 %v607
    %v1969 = vunpack.c.l.b16 %v608
    %v1970 = vunpack.c.h.b16 %v608
    %v1971 = vunpack.c.l.b16 %v609
    %v1972 = vunpack.c.h.b16 %v609
    %v1973 = vunpack.c.l.b16 %v610
    %v1974 = vunpack.c.h.b16 %v610
    %v1975 = vunpack.c.l.b16 %v611
    %v1976 = vunpack.c.h.b16 %v611
    %v1977 = vunpack.c.l.b16 %v612
    %v1978 = vunpack.c.h.b16 %v612
    %v1979 = vunpack.c.l.b16 %v613
    %v1980 = vunpack.c.h.b16 %v613
    %v1981 = vunpack.c.l.b16 %v614
    %v1982 = vunpack.c.h.b16 %v614
    %v1983 = vunpack.c.l.b16 %v615
    %v1984 = vunpack.c.h.b16 %v615
    %v1985 = vunpack.c.l.b16 %v616
    %v1986 = vunpack.c.h.b16 %v616
    %v1987 = vunpack.c.l.b16 %v617
    %v1988 = vunpack.c.h.b16 %v617
    %v1989 = vunpack.c.l.b16 %v618
    %v1990 = vunpack.c.h.b16 %v618
    %v1991 = vunpack.c.l.b16 %v619
    %v1992 = vunpack.c.h.b16 %v619
    %v1993 = vunpack.c.l.b16 %v620
    %v1994 = vunpack.c.h.b16 %v620
    %v1995 = vunpack.c.l.b16 %v621
    %v1996 = vunpack.c.h.b16 %v621
    %v1997 = vunpack.c.l.b16 %v622
    %v1998 = vunpack.c.h.b16 %v622
    %v1999 = vunpack.c.l.b16 %v623
    %v2000 = vunpack.c.h.b16 %v623
    %v2001 = vunpack.c.l.b16 %v624
    %v2002 = vunpack.c.h.b16 %v624
    %v2003 = vunpack.c.l.b16 %v625
    %v2004 = vunpack.c.h.b16 %v625
    %v2005 = vunpack.c.l.b16 %v626
    %v2006 = vunpack.c.h.b16 %v626
    %v2007 = vunpack.c.l.b16 %v627
    %v2008 = vunpack.c.h.b16 %v627
    %v2009 = vunpack.c.l.b16 %v628
    %v2010 = vunpack.c.h.b16 %v628
    %v2011 = vunpack.c.l.b16 %v629
    %v2012 = vunpack.c.h.b16 %v629
    %v2013 = vunpack.c.l.b16 %v630
    %v2014 = vunpack.c.h.b16 %v630
    %v2015 = vunpack.c.l.b16 %v631
    %v2016 = vunpack.c.h.b16 %v631
    %v2017 = vunpack.c.l.b16 %v632
    %v2018 = vunpack.c.h.b16 %v632
    %v2019 = vunpack.c.l.b16 %v633
    %v2020 = vunpack.c.h.b16 %v633
    %v2021 = vunpack.c.l.b16 %v634
    %v2022 = vunpack.c.h.b16 %v634
    %v2023 = vunpack.c.l.b16 %v635
    %v2024 = vunpack.c.h.b16 %v635
    %v2025 = vunpack.c.l.b16 %v636
    %v2026 = vunpack.c.h.b16 %v636
    %v2027 = vunpack.c.l.b16 %v637
    %v2028 = vunpack.c.h.b16 %v637
    %v2029 = vunpack.c.l.b16 %v638
    %v2030 = vunpack.c.h.b16 %v638
    %v2031 = vunpack.c.l.b16 %v639
    %v2032 = vunpack.c.h.b16 %v639
    %v2033 = vunpack.c.l.b16 %v640
    %v2034 = vunpack.c.h.b16 %v640
    %v2035 = vunpack.c.l.b16 %v641
    %v2036 = vunpack.c.h.b16 %v641
    %v2037 = vunpack.c.l.b16 %v642
    %v2038 = vunpack.c.h.b16 %v642
    %v2039 = vunpack.c.l.b16 %v643
    %v2040 = vunpack.c.h.b16 %v643
    %v2041 = vunpack.c.l.b16 %v644
    %v2042 = vunpack.c.h.b16 %v644
    %v2043 = vpack.c.b16 %v1155, %v1147
    %v2044 = vpack.c.b16 %v1156, %v1148
    %v2045 = vpack.c.b16 %v1157, %v1149
    %v2046 = vpack.c.b16 %v1158, %v1150
    %v2047 = vpack.c.b16 %v1159, %v1151
    %v2048 = vpack.c.b16 %v1160, %v1152
    %v2049 = vpack.c.b16 %v1161, %v1153
    %v2050 = vpack.c.b16 %v1162, %v1154
    %v2051 = vpack.c.b16 %v1171, %v1163
    %v2052 = vpack.c.b16 %v1172, %v1164
    %v2053 = vpack.c.b16 %v1173, %v1165
    %v2054 = vpack.c.b16 %v1174, %v1166
    %v2055 = vpack.c.b16 %v1175, %v1167
    %v2056 = vpack.c.b16 %v1176, %v1168
    %v2057 = vpack.c.b16 %v1177, %v1169
    %v2058 = vpack.c.b16 %v1178, %v1170
    %v2059 = vpack.c.b16 %v1187, %v1179
    %v2060 = vpack.c.b16 %v1188, %v1180
    %v2061 = vpack.c.b16 %v1189, %v1181
    %v2062 = vpack.c.b16 %v1190, %v1182
    %v2063 = vpack.c.b16 %v1191, %v1183
    %v2064 = vpack.c.b16 %v1192, %v1184
    %v2065 = vpack.c.b16 %v1193, %v1185
    %v2066 = vpack.c.b16 %v1194, %v1186
    %v2067 = vpack.c.b16 %v1203, %v1195
    %v2068 = vpack.c.b16 %v1204, %v1196
    %v2069 = vpack.c.b16 %v1205, %v1197
    %v2070 = vpack.c.b16 %v1206, %v1198
    %v2071 = vpack.c.b16 %v1207, %v1199
    %v2072 = vpack.c.b16 %v1208, %v1200
    %v2073 = vpack.c.b16 %v1209, %v1201
    %v2074 = vpack.c.b16 %v1210, %v1202
    %v2075 = vpack.c.b16 %v1219, %v1211
    %v2076 = vpack.c.b16 %v1220, %v1212
    %v2077 = vpack.c.b16 %v1221, %v1213
    %v2078 = vpack.c.b16 %v1222, %v1214
    %v2079 = vpack.c.b16 %v1223, %v1215
    %v2080 = vpack.c.b16 %v1224, %v1216
    %v2081 = vpack.c.b16 %v1225, %v1217
    %v2082 = vpack.c.b16 %v1226, %v1218
    %v2083 = vpack.c.b16 %v1235, %v1227
    %v2084 = vpack.c.b16 %v1236, %v1228
    %v2085 = vpack.c.b16 %v1237, %v1229
    %v2086 = vpack.c.b16 %v1238, %v1230
    %v2087 = vpack.c.b16 %v1239, %v1231
    %v2088 = vpack.c.b16 %v1240, %v1232
    %v2089 = vpack.c.b16 %v1241, %v1233
    %v2090 = vpack.c.b16 %v1242, %v1234
    %v2091 = vpack.c.b16 %v1251, %v1243
    %v2092 = vpack.c.b16 %v1252, %v1244
    %v2093 = vpack.c.b16 %v1253, %v1245
    %v2094 = vpack.c.b16 %v1254, %v1246
    %v2095 = vpack.c.b16 %v1255, %v1247
    %v2096 = vpack.c.b16 %v1256, %v1248
    %v2097 = vpack.c.b16 %v1257, %v1249
    %v2098 = vpack.c.b16 %v1258, %v1250
    %v2099 = vpack.c.b16 %v1267, %v1259
    %v2100 = vpack.c.b16 %v1268, %v1260
    %v2101 = vpack.c.b16 %v1269, %v1261
    %v2102 = vpack.c.b16 %v1270, %v1262
    %v2103 = vpack.c.b16 %v1271, %v1263
    %v2104 = vpack.c.b16 %v1272, %v1264
    %v2105 = vpack.c.b16 %v1273, %v1265
    %v2106 = vpack.c.b16 %v1274, %v1266
    %v2107 = vpack.c.b16 %v1283, %v1275
    %v2108 = vpack.c.b16 %v1284, %v1276
    %v2109 = vpack.c.b16 %v1285, %v1277
    %v2110 = vpack.c.b16 %v1286, %v1278
    %v2111 = vpack.c.b16 %v1287, %v1279
    %v2112 = vpack.c.b16 %v1288, %v1280
    %v2113 = vpack.c.b16 %v1289, %v1281
    %v2114 = vpack.c.b16 %v1290, %v1282
    %v2115 = vpack.c.b16 %v1299, %v1291
    %v2116 = vpack.c.b16 %v1300, %v1292
    %v2117 = vpack.c.b16 %v1301, %v1293
    %v2118 = vpack.c.b16 %v1302, %v1294
    %v2119 = vpack.c.b16 %v1303, %v1295
    %v2120 = vpack.c.b16 %v1304, %v1296
    %v2121 = vpack.c.b16 %v1305, %v1297
    %v2122 = vpack.c.b16 %v1306, %v1298
    %v2123 = vpack.c.b16 %v1315, %v1307
    %v2124 = vpack.c.b16 %v1316, %v1308
    %v2125 = vpack.c.b16 %v1317, %v1309
    %v2126 = vpack.c.b16 %v1318, %v1310
    %v2127 = vpack.c.b16 %v1319, %v1311
    %v2128 = vpack.c.b16 %v1320, %v1312
    %v2129 = vpack.c.b16 %v1321, %v1313
    %v2130 = vpack.c.b16 %v1322, %v1314
    %v2131 = vpack.c.b16 %v1331, %v1323
    %v2132 = vpack.c.b16 %v1332, %v1324
    %v2133 = vpack.c.b16 %v1333, %v1325
    %v2134 = vpack.c.b16 %v1334, %v1326
    %v2135 = vpack.c.b16 %v1335, %v1327
    %v2136 = vpack.c.b16 %v1336, %v1328
    %v2137 = vpack.c.b16 %v1337, %v1329
    %v2138 = vpack.c.b16 %v1338, %v1330
    %v2139 = vpack.c.b16 %v1347, %v1339
    %v2140 = vpack.c.b16 %v1348, %v1340
    %v2141 = vpack.c.b16 %v1349, %v1341
    %v2142 = vpack.c.b16 %v1350, %v1342
    %v2143 = vpack.c.b16 %v1351, %v1343
    %v2144 = vpack.c.b16 %v1352, %v1344
    %v2145 = vpack.c.b16 %v1353, %v1345
    %v2146 = vpack.c.b16 %v1354, %v1346
    %v2147 = vpack.c.b16 %v1363, %v1355
    %v2148 = vpack.c.b16 %v1364, %v1356
    %v2149 = vpack.c.b16 %v1365, %v1357
    %v2150 = vpack.c.b16 %v1366, %v1358
    %v2151 = vpack.c.b16 %v1367, %v1359
    %v2152 = vpack.c.b16 %v1368, %v1360
    %v2153 = vpack.c.b16 %v1369, %v1361
    %v2154 = vpack.c.b16 %v1370, %v1362
    %v2155 = vpack.c.b16 %v1379, %v1371
    %v2156 = vpack.c.b16 %v1380, %v1372
    %v2157 = vpack.c.b16 %v1381, %v1373
    %v2158 = vpack.c.b16 %v1382, %v1374
    %v2159 = vpack.c.b16 %v1383, %v1375
    %v2160 = vpack.c.b16 %v1384, %v1376
    %v2161 = vpack.c.b16 %v1385, %v1377
    %v2162 = vpack.c.b16 %v1386, %v1378
    %v2163 = vpack.c.b16 %v1395, %v1387
    %v2164 = vpack.c.b16 %v1396, %v1388
    %v2165 = vpack.c.b16 %v1397, %v1389
    %v2166 = vpack.c.b16 %v1398, %v1390
    %v2167 = vpack.c.b16 %v1399, %v1391
    %v2168 = vpack.c.b16 %v1400, %v1392
    %v2169 = vpack.c.b16 %v1401, %v1393
    %v2170 = vpack.c.b16 %v1402, %v1394
    %v2171 = vpack.c.b16 %v1411, %v1403
    %v2172 = vpack.c.b16 %v1412, %v1404
    %v2173 = vpack.c.b16 %v1413, %v1405
    %v2174 = vpack.c.b16 %v1414, %v1406
    %v2175 = vpack.c.b16 %v1415, %v1407
    %v2176 = vpack.c.b16 %v1416, %v1408
    %v2177 = vpack.c.b16 %v1417, %v1409
    %v2178 = vpack.c.b16 %v1418, %v1410
    %v2179 = vpack.c.b16 %v1427, %v1419
    %v2180 = vpack.c.b16 %v1428, %v1420
    %v2181 = vpack.c.b16 %v1429, %v1421
    %v2182 = vpack.c.b16 %v1430, %v1422
    %v2183 = vpack.c.b16 %v1431, %v1423
    %v2184 = vpack.c.b16 %v1432, %v1424
    %v2185 = vpack.c.b16 %v1433, %v1425
    %v2186 = vpack.c.b16 %v1434, %v1426
    %v2187 = vpack.c.b16 %v1443, %v1435
    %v2188 = vpack.c.b16 %v1444, %v1436
    %v2189 = vpack.c.b16 %v1445, %v1437
    %v2190 = vpack.c.b16 %v1446, %v1438
    %v2191 = vpack.c.b16 %v1447, %v1439
    %v2192 = vpack.c.b16 %v1448, %v1440
    %v2193 = vpack.c.b16 %v1449, %v1441
    %v2194 = vpack.c.b16 %v1450, %v1442
    %v2195 = vpack.c.b16 %v1459, %v1451
    %v2196 = vpack.c.b16 %v1460, %v1452
    %v2197 = vpack.c.b16 %v1461, %v1453
    %v2198 = vpack.c.b16 %v1462, %v1454
    %v2199 = vpack.c.b16 %v1463, %v1455
    %v2200 = vpack.c.b16 %v1464, %v1456
    %v2201 = vpack.c.b16 %v1465, %v1457
    %v2202 = vpack.c.b16 %v1466, %v1458
    %v2203 = vpack.c.b16 %v1475, %v1467
    %v2204 = vpack.c.b16 %v1476, %v1468
    %v2205 = vpack.c.b16 %v1477, %v1469
    %v2206 = vpack.c.b16 %v1478, %v1470
    %v2207 = vpack.c.b16 %v1479, %v1471
    %v2208 = vpack.c.b16 %v1480, %v1472
    %v2209 = vpack.c.b16 %v1481, %v1473
    %v2210 = vpack.c.b16 %v1482, %v1474
    %v2211 = vpack.c.b16 %v1491, %v1483
    %v2212 = vpack.c.b16 %v1492, %v1484
    %v2213 = vpack.c.b16 %v1493, %v1485
    %v2214 = vpack.c.b16 %v1494, %v1486
    %v2215 = vpack.c.b16 %v1495, %v1487
    %v2216 = vpack.c.b16 %v1496, %v1488
    %v2217 = vpack.c.b16 %v1497, %v1489
    %v2218 = vpack.c.b16 %v1498, %v1490
    %v2219 = vpack.c.b16 %v1507, %v1499
    %v2220 = vpack.c.b16 %v1508, %v1500
    %v2221 = vpack.c.b16 %v1509, %v1501
    %v2222 = vpack.c.b16 %v1510, %v1502
    %v2223 = vpack.c.b16 %v1511, %v1503
    %v2224 = vpack.c.b16 %v1512, %v1504
    %v2225 = vpack.c.b16 %v1513, %v1505
    %v2226 = vpack.c.b16 %v1514, %v1506
    %v2227 = vpack.c.b16 %v1523, %v1515
    %v2228 = vpack.c.b16 %v1524, %v1516
    %v2229 = vpack.c.b16 %v1525, %v1517
    %v2230 = vpack.c.b16 %v1526, %v1518
    %v2231 = vpack.c.b16 %v1527, %v1519
    %v2232 = vpack.c.b16 %v1528, %v1520
    %v2233 = vpack.c.b16 %v1529, %v1521
    %v2234 = vpack.c.b16 %v1530, %v1522
    %v2235 = vpack.c.b16 %v1539, %v1531
    %v2236 = vpack.c.b16 %v1540, %v1532
    %v2237 = vpack.c.b16 %v1541, %v1533
    %v2238 = vpack.c.b16 %v1542, %v1534
    %v2239 = vpack.c.b16 %v1543, %v1535
    %v2240 = vpack.c.b16 %v1544, %v1536
    %v2241 = vpack.c.b16 %v1545, %v1537
    %v2242 = vpack.c.b16 %v1546, %v1538
    %v2243 = vpack.c.b16 %v1555, %v1547
    %v2244 = vpack.c.b16 %v1556, %v1548
    %v2245 = vpack.c.b16 %v1557, %v1549
    %v2246 = vpack.c.b16 %v1558, %v1550
    %v2247 = vpack.c.b16 %v1559, %v1551
    %v2248 = vpack.c.b16 %v1560, %v1552
    %v2249 = vpack.c.b16 %v1561, %v1553
    %v2250 = vpack.c.b16 %v1562, %v1554
    %v2251 = vpack.c.b16 %v1571, %v1563
    %v2252 = vpack.c.b16 %v1572, %v1564
    %v2253 = vpack.c.b16 %v1573, %v1565
    %v2254 = vpack.c.b16 %v1574, %v1566
    %v2255 = vpack.c.b16 %v1575, %v1567
    %v2256 = vpack.c.b16 %v1576, %v1568
    %v2257 = vpack.c.b16 %v1577, %v1569
    %v2258 = vpack.c.b16 %v1578, %v1570
    %v2259 = vpack.c.b16 %v1587, %v1579
    %v2260 = vpack.c.b16 %v1588, %v1580
    %v2261 = vpack.c.b16 %v1589, %v1581
    %v2262 = vpack.c.b16 %v1590, %v1582
    %v2263 = vpack.c.b16 %v1591, %v1583
    %v2264 = vpack.c.b16 %v1592, %v1584
    %v2265 = vpack.c.b16 %v1593, %v1585
    %v2266 = vpack.c.b16 %v1594, %v1586
    %v2267 = vpack.c.b16 %v1603, %v1595
    %v2268 = vpack.c.b16 %v1604, %v1596
    %v2269 = vpack.c.b16 %v1605, %v1597
    %v2270 = vpack.c.b16 %v1606, %v1598
    %v2271 = vpack.c.b16 %v1607, %v1599
    %v2272 = vpack.c.b16 %v1608, %v1600
    %v2273 = vpack.c.b16 %v1609, %v1601
    %v2274 = vpack.c.b16 %v1610, %v1602
    %v2275 = vpack.c.b16 %v1619, %v1611
    %v2276 = vpack.c.b16 %v1620, %v1612
    %v2277 = vpack.c.b16 %v1621, %v1613
    %v2278 = vpack.c.b16 %v1622, %v1614
    %v2279 = vpack.c.b16 %v1623, %v1615
    %v2280 = vpack.c.b16 %v1624, %v1616
    %v2281 = vpack.c.b16 %v1625, %v1617
    %v2282 = vpack.c.b16 %v1626, %v1618
    %v2283 = vpack.c.b16 %v1635, %v1627
    %v2284 = vpack.c.b16 %v1636, %v1628
    %v2285 = vpack.c.b16 %v1637, %v1629
    %v2286 = vpack.c.b16 %v1638, %v1630
    %v2287 = vpack.c.b16 %v1639, %v1631
    %v2288 = vpack.c.b16 %v1640, %v1632
    %v2289 = vpack.c.b16 %v1641, %v1633
    %v2290 = vpack.c.b16 %v1642, %v1634
    %v2291 = vpack.c.b16 %v1651, %v1643
    %v2292 = vpack.c.b16 %v1652, %v1644
    %v2293 = vpack.c.b16 %v1653, %v1645
    %v2294 = vpack.c.b16 %v1654, %v1646
    %v2295 = vpack.c.b16 %v1655, %v1647
    %v2296 = vpack.c.b16 %v1656, %v1648
    %v2297 = vpack.c.b16 %v1657, %v1649
    %v2298 = vpack.c.b16 %v1658, %v1650
    %v2299 = vpack.c.b16 %v1667, %v1659
    %v2300 = vpack.c.b16 %v1668, %v1660
    %v2301 = vpack.c.b16 %v1669, %v1661
    %v2302 = vpack.c.b16 %v1670, %v1662
    %v2303 = vpack.c.b16 %v1671, %v1663
    %v2304 = vpack.c.b16 %v1672, %v1664
    %v2305 = vpack.c.b16 %v1673, %v1665
    %v2306 = vpack.c.b16 %v1674, %v1666
    %v2307 = vpack.c.b16 %v1683, %v1675
    %v2308 = vpack.c.b16 %v1684, %v1676
    %v2309 = vpack.c.b16 %v1685, %v1677
    %v2310 = vpack.c.b16 %v1686, %v1678
    %v2311 = vpack.c.b16 %v1687, %v1679
    %v2312 = vpack.c.b16 %v1688, %v1680
    %v2313 = vpack.c.b16 %v1689, %v1681
    %v2314 = vpack.c.b16 %v1690, %v1682
    %v2315 = vpack.c.b16 %v1699, %v1691
    %v2316 = vpack.c.b16 %v1700, %v1692
    %v2317 = vpack.c.b16 %v1701, %v1693
    %v2318 = vpack.c.b16 %v1702, %v1694
    %v2319 = vpack.c.b16 %v1703, %v1695
    %v2320 = vpack.c.b16 %v1704, %v1696
    %v2321 = vpack.c.b16 %v1705, %v1697
    %v2322 = vpack.c.b16 %v1706, %v1698
    %v2323 = vpack.c.b16 %v1715, %v1707
    %v2324 = vpack.c.b16 %v1716, %v1708
    %v2325 = vpack.c.b16 %v1717, %v1709
    %v2326 = vpack.c.b16 %v1718, %v1710
    %v2327 = vpack.c.b16 %v1719, %v1711
    %v2328 = vpack.c.b16 %v1720, %v1712
    %v2329 = vpack.c.b16 %v1721, %v1713
    %v2330 = vpack.c.b16 %v1722, %v1714
    %v2331 = vpack.c.b16 %v1731, %v1723
    %v2332 = vpack.c.b16 %v1732, %v1724
    %v2333 = vpack.c.b16 %v1733, %v1725
    %v2334 = vpack.c.b16 %v1734, %v1726
    %v2335 = vpack.c.b16 %v1735, %v1727
    %v2336 = vpack.c.b16 %v1736, %v1728
    %v2337 = vpack.c.b16 %v1737, %v1729
    %v2338 = vpack.c.b16 %v1738, %v1730
    %v2339 = vpack.c.b16 %v1747, %v1739
    %v2340 = vpack.c.b16 %v1748, %v1740
    %v2341 = vpack.c.b16 %v1749, %v1741
    %v2342 = vpack.c.b16 %v1750, %v1742
    %v2343 = vpack.c.b16 %v1751, %v1743
    %v2344 = vpack.c.b16 %v1752, %v1744
    %v2345 = vpack.c.b16 %v1753, %v1745
    %v2346 = vpack.c.b16 %v1754, %v1746
    %v2347 = vpack.c.b16 %v1763, %v1755
    %v2348 = vpack.c.b16 %v1764, %v1756
    %v2349 = vpack.c.b16 %v1765, %v1757
    %v2350 = vpack.c.b16 %v1766, %v1758
    %v2351 = vpack.c.b16 %v1767, %v1759
    %v2352 = vpack.c.b16 %v1768, %v1760
    %v2353 = vpack.c.b16 %v1769, %v1761
    %v2354 = vpack.c.b16 %v1770, %v1762
    %v2355 = vpack.c.b16 %v1779, %v1771
    %v2356 = vpack.c.b16 %v1780, %v1772
    %v2357 = vpack.c.b16 %v1781, %v1773
    %v2358 = vpack.c.b16 %v1782, %v1774
    %v2359 = vpack.c.b16 %v1783, %v1775
    %v2360 = vpack.c.b16 %v1784, %v1776
    %v2361 = vpack.c.b16 %v1785, %v1777
    %v2362 = vpack.c.b16 %v1786, %v1778
    %v2363 = vpack.c.b16 %v1795, %v1787
    %v2364 = vpack.c.b16 %v1796, %v1788
    %v2365 = vpack.c.b16 %v1797, %v1789
    %v2366 = vpack.c.b16 %v1798, %v1790
    %v2367 = vpack.c.b16 %v1799, %v1791
    %v2368 = vpack.c.b16 %v1800, %v1792
    %v2369 = vpack.c.b16 %v1801, %v1793
    %v2370 = vpack.c.b16 %v1802, %v1794
    %v2371 = vpack.c.b16 %v1811, %v1803
    %v2372 = vpack.c.b16 %v1812, %v1804
    %v2373 = vpack.c.b16 %v1813, %v1805
    %v2374 = vpack.c.b16 %v1814, %v1806
    %v2375 = vpack.c.b16 %v1815, %v1807
    %v2376 = vpack.c.b16 %v1816, %v1808
    %v2377 = vpack.c.b16 %v1817, %v1809
    %v2378 = vpack.c.b16 %v1818, %v1810
    %v2379 = vpack.c.b16 %v1827, %v1819
    %v2380 = vpack.c.b16 %v1828, %v1820
    %v2381 = vpack.c.b16 %v1829, %v1821
    %v2382 = vpack.c.b16 %v1830, %v1822
    %v2383 = vpack.c.b16 %v1831, %v1823
    %v2384 = vpack.c.b16 %v1832, %v1824
    %v2385 = vpack.c.b16 %v1833, %v1825
    %v2386 = vpack.c.b16 %v1834, %v1826
    %v2387 = vpack.c.b16 %v1843, %v1835
    %v2388 = vpack.c.b16 %v1844, %v1836
    %v2389 = vpack.c.b16 %v1845, %v1837
    %v2390 = vpack.c.b16 %v1846, %v1838
    %v2391 = vpack.c.b16 %v1847, %v1839
    %v2392 = vpack.c.b16 %v1848, %v1840
    %v2393 = vpack.c.b16 %v1849, %v1841
    %v2394 = vpack.c.b16 %v1850, %v1842
    %v2395 = vpack.c.b16 %v1859, %v1851
    %v2396 = vpack.c.b16 %v1860, %v1852
    %v2397 = vpack.c.b16 %v1861, %v1853
    %v2398 = vpack.c.b16 %v1862, %v1854
    %v2399 = vpack.c.b16 %v1863, %v1855
    %v2400 = vpack.c.b16 %v1864, %v1856
    %v2401 = vpack.c.b16 %v1865, %v1857
    %v2402 = vpack.c.b16 %v1866, %v1858
    %v2403 = vpack.c.b16 %v1875, %v1867
    %v2404 = vpack.c.b16 %v1876, %v1868
    %v2405 = vpack.c.b16 %v1877, %v1869
    %v2406 = vpack.c.b16 %v1878, %v1870
    %v2407 = vpack.c.b16 %v1879, %v1871
    %v2408 = vpack.c.b16 %v1880, %v1872
    %v2409 = vpack.c.b16 %v1881, %v1873
    %v2410 = vpack.c.b16 %v1882, %v1874
    %v2411 = vpack.c.b16 %v1891, %v1883
    %v2412 = vpack.c.b16 %v1892, %v1884
    %v2413 = vpack.c.b16 %v1893, %v1885
    %v2414 = vpack.c.b16 %v1894, %v1886
    %v2415 = vpack.c.b16 %v1895, %v1887
    %v2416 = vpack.c.b16 %v1896, %v1888
    %v2417 = vpack.c.b16 %v1897, %v1889
    %v2418 = vpack.c.b16 %v1898, %v1890
    %v2419 = vpack.c.b16 %v1907, %v1899
    %v2420 = vpack.c.b16 %v1908, %v1900
    %v2421 = vpack.c.b16 %v1909, %v1901
    %v2422 = vpack.c.b16 %v1910, %v1902
    %v2423 = vpack.c.b16 %v1911, %v1903
    %v2424 = vpack.c.b16 %v1912, %v1904
    %v2425 = vpack.c.b16 %v1913, %v1905
    %v2426 = vpack.c.b16 %v1914, %v1906
    %v2427 = vpack.c.b16 %v1923, %v1915
    %v2428 = vpack.c.b16 %v1924, %v1916
    %v2429 = vpack.c.b16 %v1925, %v1917
    %v2430 = vpack.c.b16 %v1926, %v1918
    %v2431 = vpack.c.b16 %v1927, %v1919
    %v2432 = vpack.c.b16 %v1928, %v1920
    %v2433 = vpack.c.b16 %v1929, %v1921
    %v2434 = vpack.c.b16 %v1930, %v1922
    %v2435 = vpack.c.b16 %v1939, %v1931
    %v2436 = vpack.c.b16 %v1940, %v1932
    %v2437 = vpack.c.b16 %v1941, %v1933
    %v2438 = vpack.c.b16 %v1942, %v1934
    %v2439 = vpack.c.b16 %v1943, %v1935
    %v2440 = vpack.c.b16 %v1944, %v1936
    %v2441 = vpack.c.b16 %v1945, %v1937
    %v2442 = vpack.c.b16 %v1946, %v1938
    %v2443 = vpack.c.b16 %v1955, %v1947
    %v2444 = vpack.c.b16 %v1956, %v1948
    %v2445 = vpack.c.b16 %v1957, %v1949
    %v2446 = vpack.c.b16 %v1958, %v1950
    %v2447 = vpack.c.b16 %v1959, %v1951
    %v2448 = vpack.c.b16 %v1960, %v1952
    %v2449 = vpack.c.b16 %v1961, %v1953
    %v2450 = vpack.c.b16 %v1962, %v1954
    %v2451 = vpack.c.b16 %v1971, %v1963
    %v2452 = vpack.c.b16 %v1972, %v1964
    %v2453 = vpack.c.b16 %v1973, %v1965
    %v2454 = vpack.c.b16 %v1974, %v1966
    %v2455 = vpack.c.b16 %v1975, %v1967
    %v2456 = vpack.c.b16 %v1976, %v1968
    %v2457 = vpack.c.b16 %v1977, %v1969
    %v2458 = vpack.c.b16 %v1978, %v1970
    %v2459 = vpack.c.b16 %v1987, %v1979
    %v2460 = vpack.c.b16 %v1988, %v1980
    %v2461 = vpack.c.b16 %v1989, %v1981
    %v2462 = vpack.c.b16 %v1990, %v1982
    %v2463 = vpack.c.b16 %v1991, %v1983
    %v2464 = vpack.c.b16 %v1992, %v1984
    %v2465 = vpack.c.b16 %v1993, %v1985
    %v2466 = vpack.c.b16 %v1994, %v1986
    %v2467 = vpack.c.b16 %v2003, %v1995
    %v2468 = vpack.c.b16 %v2004, %v1996
    %v2469 = vpack.c.b16 %v2005, %v1997
    %v2470 = vpack.c.b16 %v2006, %v1998
    %v2471 = vpack.c.b16 %v2007, %v1999
    %v2472 = vpack.c.b16 %v2008, %v2000
    %v2473 = vpack.c.b16 %v2009, %v2001
    %v2474 = vpack.c.b16 %v2010, %v2002
    %v2475 = vpack.c.b16 %v2019, %v2011
    %v2476 = vpack.c.b16 %v2020, %v2012
    %v2477 = vpack.c.b16 %v2021, %v2013
    %v2478 = vpack.c.b16 %v2022, %v2014
    %v2479 = vpack.c.b16 %v2023, %v2015
    %v2480 = vpack.c.b16 %v2024, %v2016
    %v2481 = vpack.c.b16 %v2025, %v2017
    %v2482 = vpack.c.b16 %v2026, %v2018
    %v2483 = vpack.c.b16 %v2035, %v2027
    %v2484 = vpack.c.b16 %v2036, %v2028
    %v2485 = vpack.c.b16 %v2037, %v2029
    %v2486 = vpack.c.b16 %v2038, %v2030
    %v2487 = vpack.c.b16 %v2039, %v2031
    %v2488 = vpack.c.b16 %v2040, %v2032
    %v2489 = vpack.c.b16 %v2041, %v2033
    %v2490 = vpack.c.b16 %v2042, %v2034
    %2939 = vmatpush.bf16.msra.mxu0 %v2099
    %2940 = vmatpush.bf16.msra.mxu0 %v2091
    %2941 = vmatpush.bf16.msra.mxu0 %v2083
    %2942 = vmatpush.bf16.msra.mxu0 %v2075
    %2943 = vmatpush.bf16.msra.mxu0 %v2067
    %2944 = vmatpush.bf16.msra.mxu0 %v2059
    %2945 = vmatpush.bf16.msra.mxu0 %v2051
    %2946 = vmatpush.bf16.msra.mxu0 %v2043
    %2947 = vmatmul.bf16.gmra.mxu0 %v685
    %v2948 = vpop.f32.mrf.mxu0
    %v2949 = vadd.f32 %v647, %v2948
    %v2950 = vpop.f32.mrf.mxu0
    %v2951 = vadd.f32 %v647, %v2950
    %2952 = vdwg.mxu0
    %2953 = vmatpush.bf16.msra.mxu0 %v2163
    %2954 = vmatpush.bf16.msra.mxu0 %v2155
    %2955 = vmatpush.bf16.msra.mxu0 %v2147
    %2956 = vmatpush.bf16.msra.mxu0 %v2139
    %2957 = vmatpush.bf16.msra.mxu0 %v2131
    %2958 = vmatpush.bf16.msra.mxu0 %v2123
    %2959 = vmatpush.bf16.msra.mxu0 %v2115
    %2960 = vmatpush.bf16.msra.mxu0 %v2107
    %2961 = vmatmul.bf16.gmra.mxu0 %v686
    %v2962 = vpop.f32.mrf.mxu0
    %v2963 = vadd.f32 %v2949, %v2962
    %v2964 = vpop.f32.mrf.mxu0
    %v2965 = vadd.f32 %v2951, %v2964
    %2966 = vdwg.mxu0
    %2967 = vmatpush.bf16.msra.mxu0 %v2227
    %2968 = vmatpush.bf16.msra.mxu0 %v2219
    %2969 = vmatpush.bf16.msra.mxu0 %v2211
    %2970 = vmatpush.bf16.msra.mxu0 %v2203
    %2971 = vmatpush.bf16.msra.mxu0 %v2195
    %2972 = vmatpush.bf16.msra.mxu0 %v2187
    %2973 = vmatpush.bf16.msra.mxu0 %v2179
    %2974 = vmatpush.bf16.msra.mxu0 %v2171
    %2975 = vmatmul.bf16.gmra.mxu0 %v687
    %v2976 = vpop.f32.mrf.mxu0
    %v2977 = vadd.f32 %v2963, %v2976
    %v2978 = vpop.f32.mrf.mxu0
    %v2979 = vadd.f32 %v2965, %v2978
    %2980 = vdwg.mxu0
    %2981 = vmatpush.bf16.msra.mxu0 %v2291
    %2982 = vmatpush.bf16.msra.mxu0 %v2283
    %2983 = vmatpush.bf16.msra.mxu0 %v2275
    %2984 = vmatpush.bf16.msra.mxu0 %v2267
    %2985 = vmatpush.bf16.msra.mxu0 %v2259
    %2986 = vmatpush.bf16.msra.mxu0 %v2251
    %2987 = vmatpush.bf16.msra.mxu0 %v2243
    %2988 = vmatpush.bf16.msra.mxu0 %v2235
    %2989 = vmatmul.bf16.gmra.mxu0 %v688
    %v2990 = vpop.f32.mrf.mxu0
    %v2991 = vadd.f32 %v2977, %v2990
    %v2992 = vpop.f32.mrf.mxu0
    %v2993 = vadd.f32 %v2979, %v2992
    %2994 = vdwg.mxu0
    %2995 = vmatpush.bf16.msra.mxu0 %v2355
    %2996 = vmatpush.bf16.msra.mxu0 %v2347
    %2997 = vmatpush.bf16.msra.mxu0 %v2339
    %2998 = vmatpush.bf16.msra.mxu0 %v2331
    %2999 = vmatpush.bf16.msra.mxu0 %v2323
    %3000 = vmatpush.bf16.msra.mxu0 %v2315
    %3001 = vmatpush.bf16.msra.mxu0 %v2307
    %3002 = vmatpush.bf16.msra.mxu0 %v2299
    %3003 = vmatmul.bf16.gmra.mxu0 %v689
    %v3004 = vpop.f32.mrf.mxu0
    %v3005 = vadd.f32 %v2991, %v3004
    %v3006 = vpop.f32.mrf.mxu0
    %v3007 = vadd.f32 %v2993, %v3006
    %3008 = vdwg.mxu0
    %3009 = vmatpush.bf16.msra.mxu0 %v2419
    %3010 = vmatpush.bf16.msra.mxu0 %v2411
    %3011 = vmatpush.bf16.msra.mxu0 %v2403
    %3012 = vmatpush.bf16.msra.mxu0 %v2395
    %3013 = vmatpush.bf16.msra.mxu0 %v2387
    %3014 = vmatpush.bf16.msra.mxu0 %v2379
    %3015 = vmatpush.bf16.msra.mxu0 %v2371
    %3016 = vmatpush.bf16.msra.mxu0 %v2363
    %3017 = vmatmul.bf16.gmra.mxu0 %v690
    %v3018 = vpop.f32.mrf.mxu0
    %v3019 = vadd.f32 %v3005, %v3018
    %v3020 = vpop.f32.mrf.mxu0
    %v3021 = vadd.f32 %v3007, %v3020
    %3022 = vdwg.mxu0
    %3023 = vmatpush.bf16.msra.mxu0 %v2483
    %3024 = vmatpush.bf16.msra.mxu0 %v2475
    %3025 = vmatpush.bf16.msra.mxu0 %v2467
    %3026 = vmatpush.bf16.msra.mxu0 %v2459
    %3027 = vmatpush.bf16.msra.mxu0 %v2451
    %3028 = vmatpush.bf16.msra.mxu0 %v2443
    %3029 = vmatpush.bf16.msra.mxu0 %v2435
    %3030 = vmatpush.bf16.msra.mxu0 %v2427
    %3031 = vmatmul.bf16.gmra.mxu0 %v691
    %v3032 = vpop.f32.mrf.mxu0
    %v3033 = vadd.f32 %v3019, %v3032
    %v3034 = vpop.f32.mrf.mxu0
    %v3035 = vadd.f32 %v3021, %v3034
    %3036 = vdwg.mxu0
    %3037 = vmatpush.bf16.msra.mxu0 %v2100
    %3038 = vmatpush.bf16.msra.mxu0 %v2092
    %3039 = vmatpush.bf16.msra.mxu0 %v2084
    %3040 = vmatpush.bf16.msra.mxu0 %v2076
    %3041 = vmatpush.bf16.msra.mxu0 %v2068
    %3042 = vmatpush.bf16.msra.mxu0 %v2060
    %3043 = vmatpush.bf16.msra.mxu0 %v2052
    %3044 = vmatpush.bf16.msra.mxu0 %v2044
    %3045 = vmatmul.bf16.gmra.mxu0 %v685
    %v3046 = vpop.f32.mrf.mxu0
    %v3047 = vadd.f32 %v648, %v3046
    %v3048 = vpop.f32.mrf.mxu0
    %v3049 = vadd.f32 %v648, %v3048
    %3050 = vdwg.mxu0
    %3051 = vmatpush.bf16.msra.mxu0 %v2164
    %3052 = vmatpush.bf16.msra.mxu0 %v2156
    %3053 = vmatpush.bf16.msra.mxu0 %v2148
    %3054 = vmatpush.bf16.msra.mxu0 %v2140
    %3055 = vmatpush.bf16.msra.mxu0 %v2132
    %3056 = vmatpush.bf16.msra.mxu0 %v2124
    %3057 = vmatpush.bf16.msra.mxu0 %v2116
    %3058 = vmatpush.bf16.msra.mxu0 %v2108
    %3059 = vmatmul.bf16.gmra.mxu0 %v686
    %v3060 = vpop.f32.mrf.mxu0
    %v3061 = vadd.f32 %v3047, %v3060
    %v3062 = vpop.f32.mrf.mxu0
    %v3063 = vadd.f32 %v3049, %v3062
    %3064 = vdwg.mxu0
    %3065 = vmatpush.bf16.msra.mxu0 %v2228
    %3066 = vmatpush.bf16.msra.mxu0 %v2220
    %3067 = vmatpush.bf16.msra.mxu0 %v2212
    %3068 = vmatpush.bf16.msra.mxu0 %v2204
    %3069 = vmatpush.bf16.msra.mxu0 %v2196
    %3070 = vmatpush.bf16.msra.mxu0 %v2188
    %3071 = vmatpush.bf16.msra.mxu0 %v2180
    %3072 = vmatpush.bf16.msra.mxu0 %v2172
    %3073 = vmatmul.bf16.gmra.mxu0 %v687
    %v3074 = vpop.f32.mrf.mxu0
    %v3075 = vadd.f32 %v3061, %v3074
    %v3076 = vpop.f32.mrf.mxu0
    %v3077 = vadd.f32 %v3063, %v3076
    %3078 = vdwg.mxu0
    %3079 = vmatpush.bf16.msra.mxu0 %v2292
    %3080 = vmatpush.bf16.msra.mxu0 %v2284
    %3081 = vmatpush.bf16.msra.mxu0 %v2276
    %3082 = vmatpush.bf16.msra.mxu0 %v2268
    %3083 = vmatpush.bf16.msra.mxu0 %v2260
    %3084 = vmatpush.bf16.msra.mxu0 %v2252
    %3085 = vmatpush.bf16.msra.mxu0 %v2244
    %3086 = vmatpush.bf16.msra.mxu0 %v2236
    %3087 = vmatmul.bf16.gmra.mxu0 %v688
    %v3088 = vpop.f32.mrf.mxu0
    %v3089 = vadd.f32 %v3075, %v3088
    %v3090 = vpop.f32.mrf.mxu0
    %v3091 = vadd.f32 %v3077, %v3090
    %3092 = vdwg.mxu0
    %3093 = vmatpush.bf16.msra.mxu0 %v2356
    %3094 = vmatpush.bf16.msra.mxu0 %v2348
    %3095 = vmatpush.bf16.msra.mxu0 %v2340
    %3096 = vmatpush.bf16.msra.mxu0 %v2332
    %3097 = vmatpush.bf16.msra.mxu0 %v2324
    %3098 = vmatpush.bf16.msra.mxu0 %v2316
    %3099 = vmatpush.bf16.msra.mxu0 %v2308
    %3100 = vmatpush.bf16.msra.mxu0 %v2300
    %3101 = vmatmul.bf16.gmra.mxu0 %v689
    %v3102 = vpop.f32.mrf.mxu0
    %v3103 = vadd.f32 %v3089, %v3102
    %v3104 = vpop.f32.mrf.mxu0
    %v3105 = vadd.f32 %v3091, %v3104
    %3106 = vdwg.mxu0
    %3107 = vmatpush.bf16.msra.mxu0 %v2420
    %3108 = vmatpush.bf16.msra.mxu0 %v2412
    %3109 = vmatpush.bf16.msra.mxu0 %v2404
    %3110 = vmatpush.bf16.msra.mxu0 %v2396
    %3111 = vmatpush.bf16.msra.mxu0 %v2388
    %3112 = vmatpush.bf16.msra.mxu0 %v2380
    %3113 = vmatpush.bf16.msra.mxu0 %v2372
    %3114 = vmatpush.bf16.msra.mxu0 %v2364
    %3115 = vmatmul.bf16.gmra.mxu0 %v690
    %v3116 = vpop.f32.mrf.mxu0
    %v3117 = vadd.f32 %v3103, %v3116
    %v3118 = vpop.f32.mrf.mxu0
    %v3119 = vadd.f32 %v3105, %v3118
    %3120 = vdwg.mxu0
    %3121 = vmatpush.bf16.msra.mxu0 %v2484
    %3122 = vmatpush.bf16.msra.mxu0 %v2476
    %3123 = vmatpush.bf16.msra.mxu0 %v2468
    %3124 = vmatpush.bf16.msra.mxu0 %v2460
    %3125 = vmatpush.bf16.msra.mxu0 %v2452
    %3126 = vmatpush.bf16.msra.mxu0 %v2444
    %3127 = vmatpush.bf16.msra.mxu0 %v2436
    %3128 = vmatpush.bf16.msra.mxu0 %v2428
    %3129 = vmatmul.bf16.gmra.mxu0 %v691
    %v3130 = vpop.f32.mrf.mxu0
    %v3131 = vadd.f32 %v3117, %v3130
    %v3132 = vpop.f32.mrf.mxu0
    %v3133 = vadd.f32 %v3119, %v3132
    %3134 = vdwg.mxu0
    %3135 = vmatpush.bf16.msra.mxu0 %v2101
    %3136 = vmatpush.bf16.msra.mxu0 %v2093
    %3137 = vmatpush.bf16.msra.mxu0 %v2085
    %3138 = vmatpush.bf16.msra.mxu0 %v2077
    %3139 = vmatpush.bf16.msra.mxu0 %v2069
    %3140 = vmatpush.bf16.msra.mxu0 %v2061
    %3141 = vmatpush.bf16.msra.mxu0 %v2053
    %3142 = vmatpush.bf16.msra.mxu0 %v2045
    %3143 = vmatmul.bf16.gmra.mxu0 %v685
    %v3144 = vpop.f32.mrf.mxu0
    %v3145 = vadd.f32 %v649, %v3144
    %v3146 = vpop.f32.mrf.mxu0
    %v3147 = vadd.f32 %v649, %v3146
    %3148 = vdwg.mxu0
    %3149 = vmatpush.bf16.msra.mxu0 %v2165
    %3150 = vmatpush.bf16.msra.mxu0 %v2157
    %3151 = vmatpush.bf16.msra.mxu0 %v2149
    %3152 = vmatpush.bf16.msra.mxu0 %v2141
    %3153 = vmatpush.bf16.msra.mxu0 %v2133
    %3154 = vmatpush.bf16.msra.mxu0 %v2125
    %3155 = vmatpush.bf16.msra.mxu0 %v2117
    %3156 = vmatpush.bf16.msra.mxu0 %v2109
    %3157 = vmatmul.bf16.gmra.mxu0 %v686
    %v3158 = vpop.f32.mrf.mxu0
    %v3159 = vadd.f32 %v3145, %v3158
    %v3160 = vpop.f32.mrf.mxu0
    %v3161 = vadd.f32 %v3147, %v3160
    %3162 = vdwg.mxu0
    %3163 = vmatpush.bf16.msra.mxu0 %v2229
    %3164 = vmatpush.bf16.msra.mxu0 %v2221
    %3165 = vmatpush.bf16.msra.mxu0 %v2213
    %3166 = vmatpush.bf16.msra.mxu0 %v2205
    %3167 = vmatpush.bf16.msra.mxu0 %v2197
    %3168 = vmatpush.bf16.msra.mxu0 %v2189
    %3169 = vmatpush.bf16.msra.mxu0 %v2181
    %3170 = vmatpush.bf16.msra.mxu0 %v2173
    %3171 = vmatmul.bf16.gmra.mxu0 %v687
    %v3172 = vpop.f32.mrf.mxu0
    %v3173 = vadd.f32 %v3159, %v3172
    %v3174 = vpop.f32.mrf.mxu0
    %v3175 = vadd.f32 %v3161, %v3174
    %3176 = vdwg.mxu0
    %3177 = vmatpush.bf16.msra.mxu0 %v2293
    %3178 = vmatpush.bf16.msra.mxu0 %v2285
    %3179 = vmatpush.bf16.msra.mxu0 %v2277
    %3180 = vmatpush.bf16.msra.mxu0 %v2269
    %3181 = vmatpush.bf16.msra.mxu0 %v2261
    %3182 = vmatpush.bf16.msra.mxu0 %v2253
    %3183 = vmatpush.bf16.msra.mxu0 %v2245
    %3184 = vmatpush.bf16.msra.mxu0 %v2237
    %3185 = vmatmul.bf16.gmra.mxu0 %v688
    %v3186 = vpop.f32.mrf.mxu0
    %v3187 = vadd.f32 %v3173, %v3186
    %v3188 = vpop.f32.mrf.mxu0
    %v3189 = vadd.f32 %v3175, %v3188
    %3190 = vdwg.mxu0
    %3191 = vmatpush.bf16.msra.mxu0 %v2357
    %3192 = vmatpush.bf16.msra.mxu0 %v2349
    %3193 = vmatpush.bf16.msra.mxu0 %v2341
    %3194 = vmatpush.bf16.msra.mxu0 %v2333
    %3195 = vmatpush.bf16.msra.mxu0 %v2325
    %3196 = vmatpush.bf16.msra.mxu0 %v2317
    %3197 = vmatpush.bf16.msra.mxu0 %v2309
    %3198 = vmatpush.bf16.msra.mxu0 %v2301
    %3199 = vmatmul.bf16.gmra.mxu0 %v689
    %v3200 = vpop.f32.mrf.mxu0
    %v3201 = vadd.f32 %v3187, %v3200
    %v3202 = vpop.f32.mrf.mxu0
    %v3203 = vadd.f32 %v3189, %v3202
    %3204 = vdwg.mxu0
    %3205 = vmatpush.bf16.msra.mxu0 %v2421
    %3206 = vmatpush.bf16.msra.mxu0 %v2413
    %3207 = vmatpush.bf16.msra.mxu0 %v2405
    %3208 = vmatpush.bf16.msra.mxu0 %v2397
    %3209 = vmatpush.bf16.msra.mxu0 %v2389
    %3210 = vmatpush.bf16.msra.mxu0 %v2381
    %3211 = vmatpush.bf16.msra.mxu0 %v2373
    %3212 = vmatpush.bf16.msra.mxu0 %v2365
    %3213 = vmatmul.bf16.gmra.mxu0 %v690
    %v3214 = vpop.f32.mrf.mxu0
    %v3215 = vadd.f32 %v3201, %v3214
    %v3216 = vpop.f32.mrf.mxu0
    %v3217 = vadd.f32 %v3203, %v3216
    %3218 = vdwg.mxu0
    %3219 = vmatpush.bf16.msra.mxu0 %v2485
    %3220 = vmatpush.bf16.msra.mxu0 %v2477
    %3221 = vmatpush.bf16.msra.mxu0 %v2469
    %3222 = vmatpush.bf16.msra.mxu0 %v2461
    %3223 = vmatpush.bf16.msra.mxu0 %v2453
    %3224 = vmatpush.bf16.msra.mxu0 %v2445
    %3225 = vmatpush.bf16.msra.mxu0 %v2437
    %3226 = vmatpush.bf16.msra.mxu0 %v2429
    %3227 = vmatmul.bf16.gmra.mxu0 %v691
    %v3228 = vpop.f32.mrf.mxu0
    %v3229 = vadd.f32 %v3215, %v3228
    %v3230 = vpop.f32.mrf.mxu0
    %v3231 = vadd.f32 %v3217, %v3230
    %3232 = vdwg.mxu0
    %3233 = vmatpush.bf16.msra.mxu0 %v2102
    %3234 = vmatpush.bf16.msra.mxu0 %v2094
    %3235 = vmatpush.bf16.msra.mxu0 %v2086
    %3236 = vmatpush.bf16.msra.mxu0 %v2078
    %3237 = vmatpush.bf16.msra.mxu0 %v2070
    %3238 = vmatpush.bf16.msra.mxu0 %v2062
    %3239 = vmatpush.bf16.msra.mxu0 %v2054
    %3240 = vmatpush.bf16.msra.mxu0 %v2046
    %3241 = vmatmul.bf16.gmra.mxu0 %v685
    %v3242 = vpop.f32.mrf.mxu0
    %v3243 = vadd.f32 %v650, %v3242
    %v3244 = vpop.f32.mrf.mxu0
    %v3245 = vadd.f32 %v650, %v3244
    %3246 = vdwg.mxu0
    %3247 = vmatpush.bf16.msra.mxu0 %v2166
    %3248 = vmatpush.bf16.msra.mxu0 %v2158
    %3249 = vmatpush.bf16.msra.mxu0 %v2150
    %3250 = vmatpush.bf16.msra.mxu0 %v2142
    %3251 = vmatpush.bf16.msra.mxu0 %v2134
    %3252 = vmatpush.bf16.msra.mxu0 %v2126
    %3253 = vmatpush.bf16.msra.mxu0 %v2118
    %3254 = vmatpush.bf16.msra.mxu0 %v2110
    %3255 = vmatmul.bf16.gmra.mxu0 %v686
    %v3256 = vpop.f32.mrf.mxu0
    %v3257 = vadd.f32 %v3243, %v3256
    %v3258 = vpop.f32.mrf.mxu0
    %v3259 = vadd.f32 %v3245, %v3258
    %3260 = vdwg.mxu0
    %3261 = vmatpush.bf16.msra.mxu0 %v2230
    %3262 = vmatpush.bf16.msra.mxu0 %v2222
    %3263 = vmatpush.bf16.msra.mxu0 %v2214
    %3264 = vmatpush.bf16.msra.mxu0 %v2206
    %3265 = vmatpush.bf16.msra.mxu0 %v2198
    %3266 = vmatpush.bf16.msra.mxu0 %v2190
    %3267 = vmatpush.bf16.msra.mxu0 %v2182
    %3268 = vmatpush.bf16.msra.mxu0 %v2174
    %3269 = vmatmul.bf16.gmra.mxu0 %v687
    %v3270 = vpop.f32.mrf.mxu0
    %v3271 = vadd.f32 %v3257, %v3270
    %v3272 = vpop.f32.mrf.mxu0
    %v3273 = vadd.f32 %v3259, %v3272
    %3274 = vdwg.mxu0
    %3275 = vmatpush.bf16.msra.mxu0 %v2294
    %3276 = vmatpush.bf16.msra.mxu0 %v2286
    %3277 = vmatpush.bf16.msra.mxu0 %v2278
    %3278 = vmatpush.bf16.msra.mxu0 %v2270
    %3279 = vmatpush.bf16.msra.mxu0 %v2262
    %3280 = vmatpush.bf16.msra.mxu0 %v2254
    %3281 = vmatpush.bf16.msra.mxu0 %v2246
    %3282 = vmatpush.bf16.msra.mxu0 %v2238
    %3283 = vmatmul.bf16.gmra.mxu0 %v688
    %v3284 = vpop.f32.mrf.mxu0
    %v3285 = vadd.f32 %v3271, %v3284
    %v3286 = vpop.f32.mrf.mxu0
    %v3287 = vadd.f32 %v3273, %v3286
    %3288 = vdwg.mxu0
    %3289 = vmatpush.bf16.msra.mxu0 %v2358
    %3290 = vmatpush.bf16.msra.mxu0 %v2350
    %3291 = vmatpush.bf16.msra.mxu0 %v2342
    %3292 = vmatpush.bf16.msra.mxu0 %v2334
    %3293 = vmatpush.bf16.msra.mxu0 %v2326
    %3294 = vmatpush.bf16.msra.mxu0 %v2318
    %3295 = vmatpush.bf16.msra.mxu0 %v2310
    %3296 = vmatpush.bf16.msra.mxu0 %v2302
    %3297 = vmatmul.bf16.gmra.mxu0 %v689
    %v3298 = vpop.f32.mrf.mxu0
    %v3299 = vadd.f32 %v3285, %v3298
    %v3300 = vpop.f32.mrf.mxu0
    %v3301 = vadd.f32 %v3287, %v3300
    %3302 = vdwg.mxu0
    %3303 = vmatpush.bf16.msra.mxu0 %v2422
    %3304 = vmatpush.bf16.msra.mxu0 %v2414
    %3305 = vmatpush.bf16.msra.mxu0 %v2406
    %3306 = vmatpush.bf16.msra.mxu0 %v2398
    %3307 = vmatpush.bf16.msra.mxu0 %v2390
    %3308 = vmatpush.bf16.msra.mxu0 %v2382
    %3309 = vmatpush.bf16.msra.mxu0 %v2374
    %3310 = vmatpush.bf16.msra.mxu0 %v2366
    %3311 = vmatmul.bf16.gmra.mxu0 %v690
    %v3312 = vpop.f32.mrf.mxu0
    %v3313 = vadd.f32 %v3299, %v3312
    %v3314 = vpop.f32.mrf.mxu0
    %v3315 = vadd.f32 %v3301, %v3314
    %3316 = vdwg.mxu0
    %3317 = vmatpush.bf16.msra.mxu0 %v2486
    %3318 = vmatpush.bf16.msra.mxu0 %v2478
    %3319 = vmatpush.bf16.msra.mxu0 %v2470
    %3320 = vmatpush.bf16.msra.mxu0 %v2462
    %3321 = vmatpush.bf16.msra.mxu0 %v2454
    %3322 = vmatpush.bf16.msra.mxu0 %v2446
    %3323 = vmatpush.bf16.msra.mxu0 %v2438
    %3324 = vmatpush.bf16.msra.mxu0 %v2430
    %3325 = vmatmul.bf16.gmra.mxu0 %v691
    %v3326 = vpop.f32.mrf.mxu0
    %v3327 = vadd.f32 %v3313, %v3326
    %v3328 = vpop.f32.mrf.mxu0
    %v3329 = vadd.f32 %v3315, %v3328
    %3330 = vdwg.mxu0
    %3331 = vmatpush.bf16.msra.mxu0 %v2103
    %3332 = vmatpush.bf16.msra.mxu0 %v2095
    %3333 = vmatpush.bf16.msra.mxu0 %v2087
    %3334 = vmatpush.bf16.msra.mxu0 %v2079
    %3335 = vmatpush.bf16.msra.mxu0 %v2071
    %3336 = vmatpush.bf16.msra.mxu0 %v2063
    %3337 = vmatpush.bf16.msra.mxu0 %v2055
    %3338 = vmatpush.bf16.msra.mxu0 %v2047
    %3339 = vmatmul.bf16.gmra.mxu0 %v685
    %v3340 = vpop.f32.mrf.mxu0
    %v3341 = vadd.f32 %v651, %v3340
    %v3342 = vpop.f32.mrf.mxu0
    %v3343 = vadd.f32 %v651, %v3342
    %3344 = vdwg.mxu0
    %3345 = vmatpush.bf16.msra.mxu0 %v2167
    %3346 = vmatpush.bf16.msra.mxu0 %v2159
    %3347 = vmatpush.bf16.msra.mxu0 %v2151
    %3348 = vmatpush.bf16.msra.mxu0 %v2143
    %3349 = vmatpush.bf16.msra.mxu0 %v2135
    %3350 = vmatpush.bf16.msra.mxu0 %v2127
    %3351 = vmatpush.bf16.msra.mxu0 %v2119
    %3352 = vmatpush.bf16.msra.mxu0 %v2111
    %3353 = vmatmul.bf16.gmra.mxu0 %v686
    %v3354 = vpop.f32.mrf.mxu0
    %v3355 = vadd.f32 %v3341, %v3354
    %v3356 = vpop.f32.mrf.mxu0
    %v3357 = vadd.f32 %v3343, %v3356
    %3358 = vdwg.mxu0
    %3359 = vmatpush.bf16.msra.mxu0 %v2231
    %3360 = vmatpush.bf16.msra.mxu0 %v2223
    %3361 = vmatpush.bf16.msra.mxu0 %v2215
    %3362 = vmatpush.bf16.msra.mxu0 %v2207
    %3363 = vmatpush.bf16.msra.mxu0 %v2199
    %3364 = vmatpush.bf16.msra.mxu0 %v2191
    %3365 = vmatpush.bf16.msra.mxu0 %v2183
    %3366 = vmatpush.bf16.msra.mxu0 %v2175
    %3367 = vmatmul.bf16.gmra.mxu0 %v687
    %v3368 = vpop.f32.mrf.mxu0
    %v3369 = vadd.f32 %v3355, %v3368
    %v3370 = vpop.f32.mrf.mxu0
    %v3371 = vadd.f32 %v3357, %v3370
    %3372 = vdwg.mxu0
    %3373 = vmatpush.bf16.msra.mxu0 %v2295
    %3374 = vmatpush.bf16.msra.mxu0 %v2287
    %3375 = vmatpush.bf16.msra.mxu0 %v2279
    %3376 = vmatpush.bf16.msra.mxu0 %v2271
    %3377 = vmatpush.bf16.msra.mxu0 %v2263
    %3378 = vmatpush.bf16.msra.mxu0 %v2255
    %3379 = vmatpush.bf16.msra.mxu0 %v2247
    %3380 = vmatpush.bf16.msra.mxu0 %v2239
    %3381 = vmatmul.bf16.gmra.mxu0 %v688
    %v3382 = vpop.f32.mrf.mxu0
    %v3383 = vadd.f32 %v3369, %v3382
    %v3384 = vpop.f32.mrf.mxu0
    %v3385 = vadd.f32 %v3371, %v3384
    %3386 = vdwg.mxu0
    %3387 = vmatpush.bf16.msra.mxu0 %v2359
    %3388 = vmatpush.bf16.msra.mxu0 %v2351
    %3389 = vmatpush.bf16.msra.mxu0 %v2343
    %3390 = vmatpush.bf16.msra.mxu0 %v2335
    %3391 = vmatpush.bf16.msra.mxu0 %v2327
    %3392 = vmatpush.bf16.msra.mxu0 %v2319
    %3393 = vmatpush.bf16.msra.mxu0 %v2311
    %3394 = vmatpush.bf16.msra.mxu0 %v2303
    %3395 = vmatmul.bf16.gmra.mxu0 %v689
    %v3396 = vpop.f32.mrf.mxu0
    %v3397 = vadd.f32 %v3383, %v3396
    %v3398 = vpop.f32.mrf.mxu0
    %v3399 = vadd.f32 %v3385, %v3398
    %3400 = vdwg.mxu0
    %3401 = vmatpush.bf16.msra.mxu0 %v2423
    %3402 = vmatpush.bf16.msra.mxu0 %v2415
    %3403 = vmatpush.bf16.msra.mxu0 %v2407
    %3404 = vmatpush.bf16.msra.mxu0 %v2399
    %3405 = vmatpush.bf16.msra.mxu0 %v2391
    %3406 = vmatpush.bf16.msra.mxu0 %v2383
    %3407 = vmatpush.bf16.msra.mxu0 %v2375
    %3408 = vmatpush.bf16.msra.mxu0 %v2367
    %3409 = vmatmul.bf16.gmra.mxu0 %v690
    %v3410 = vpop.f32.mrf.mxu0
    %v3411 = vadd.f32 %v3397, %v3410
    %v3412 = vpop.f32.mrf.mxu0
    %v3413 = vadd.f32 %v3399, %v3412
    %3414 = vdwg.mxu0
    %3415 = vmatpush.bf16.msra.mxu0 %v2487
    %3416 = vmatpush.bf16.msra.mxu0 %v2479
    %3417 = vmatpush.bf16.msra.mxu0 %v2471
    %3418 = vmatpush.bf16.msra.mxu0 %v2463
    %3419 = vmatpush.bf16.msra.mxu0 %v2455
    %3420 = vmatpush.bf16.msra.mxu0 %v2447
    %3421 = vmatpush.bf16.msra.mxu0 %v2439
    %3422 = vmatpush.bf16.msra.mxu0 %v2431
    %3423 = vmatmul.bf16.gmra.mxu0 %v691
    %v3424 = vpop.f32.mrf.mxu0
    %v3425 = vadd.f32 %v3411, %v3424
    %v3426 = vpop.f32.mrf.mxu0
    %v3427 = vadd.f32 %v3413, %v3426
    %3428 = vdwg.mxu0
    %3429 = vmatpush.bf16.msra.mxu0 %v2104
    %3430 = vmatpush.bf16.msra.mxu0 %v2096
    %3431 = vmatpush.bf16.msra.mxu0 %v2088
    %3432 = vmatpush.bf16.msra.mxu0 %v2080
    %3433 = vmatpush.bf16.msra.mxu0 %v2072
    %3434 = vmatpush.bf16.msra.mxu0 %v2064
    %3435 = vmatpush.bf16.msra.mxu0 %v2056
    %3436 = vmatpush.bf16.msra.mxu0 %v2048
    %3437 = vmatmul.bf16.gmra.mxu0 %v685
    %v3438 = vpop.f32.mrf.mxu0
    %v3439 = vadd.f32 %v652, %v3438
    %v3440 = vpop.f32.mrf.mxu0
    %v3441 = vadd.f32 %v652, %v3440
    %3442 = vdwg.mxu0
    %3443 = vmatpush.bf16.msra.mxu0 %v2168
    %3444 = vmatpush.bf16.msra.mxu0 %v2160
    %3445 = vmatpush.bf16.msra.mxu0 %v2152
    %3446 = vmatpush.bf16.msra.mxu0 %v2144
    %3447 = vmatpush.bf16.msra.mxu0 %v2136
    %3448 = vmatpush.bf16.msra.mxu0 %v2128
    %3449 = vmatpush.bf16.msra.mxu0 %v2120
    %3450 = vmatpush.bf16.msra.mxu0 %v2112
    %3451 = vmatmul.bf16.gmra.mxu0 %v686
    %v3452 = vpop.f32.mrf.mxu0
    %v3453 = vadd.f32 %v3439, %v3452
    %v3454 = vpop.f32.mrf.mxu0
    %v3455 = vadd.f32 %v3441, %v3454
    %3456 = vdwg.mxu0
    %3457 = vmatpush.bf16.msra.mxu0 %v2232
    %3458 = vmatpush.bf16.msra.mxu0 %v2224
    %3459 = vmatpush.bf16.msra.mxu0 %v2216
    %3460 = vmatpush.bf16.msra.mxu0 %v2208
    %3461 = vmatpush.bf16.msra.mxu0 %v2200
    %3462 = vmatpush.bf16.msra.mxu0 %v2192
    %3463 = vmatpush.bf16.msra.mxu0 %v2184
    %3464 = vmatpush.bf16.msra.mxu0 %v2176
    %3465 = vmatmul.bf16.gmra.mxu0 %v687
    %v3466 = vpop.f32.mrf.mxu0
    %v3467 = vadd.f32 %v3453, %v3466
    %v3468 = vpop.f32.mrf.mxu0
    %v3469 = vadd.f32 %v3455, %v3468
    %3470 = vdwg.mxu0
    %3471 = vmatpush.bf16.msra.mxu0 %v2296
    %3472 = vmatpush.bf16.msra.mxu0 %v2288
    %3473 = vmatpush.bf16.msra.mxu0 %v2280
    %3474 = vmatpush.bf16.msra.mxu0 %v2272
    %3475 = vmatpush.bf16.msra.mxu0 %v2264
    %3476 = vmatpush.bf16.msra.mxu0 %v2256
    %3477 = vmatpush.bf16.msra.mxu0 %v2248
    %3478 = vmatpush.bf16.msra.mxu0 %v2240
    %3479 = vmatmul.bf16.gmra.mxu0 %v688
    %v3480 = vpop.f32.mrf.mxu0
    %v3481 = vadd.f32 %v3467, %v3480
    %v3482 = vpop.f32.mrf.mxu0
    %v3483 = vadd.f32 %v3469, %v3482
    %3484 = vdwg.mxu0
    %3485 = vmatpush.bf16.msra.mxu0 %v2360
    %3486 = vmatpush.bf16.msra.mxu0 %v2352
    %3487 = vmatpush.bf16.msra.mxu0 %v2344
    %3488 = vmatpush.bf16.msra.mxu0 %v2336
    %3489 = vmatpush.bf16.msra.mxu0 %v2328
    %3490 = vmatpush.bf16.msra.mxu0 %v2320
    %3491 = vmatpush.bf16.msra.mxu0 %v2312
    %3492 = vmatpush.bf16.msra.mxu0 %v2304
    %3493 = vmatmul.bf16.gmra.mxu0 %v689
    %v3494 = vpop.f32.mrf.mxu0
    %v3495 = vadd.f32 %v3481, %v3494
    %v3496 = vpop.f32.mrf.mxu0
    %v3497 = vadd.f32 %v3483, %v3496
    %3498 = vdwg.mxu0
    %3499 = vmatpush.bf16.msra.mxu0 %v2424
    %3500 = vmatpush.bf16.msra.mxu0 %v2416
    %3501 = vmatpush.bf16.msra.mxu0 %v2408
    %3502 = vmatpush.bf16.msra.mxu0 %v2400
    %3503 = vmatpush.bf16.msra.mxu0 %v2392
    %3504 = vmatpush.bf16.msra.mxu0 %v2384
    %3505 = vmatpush.bf16.msra.mxu0 %v2376
    %3506 = vmatpush.bf16.msra.mxu0 %v2368
    %3507 = vmatmul.bf16.gmra.mxu0 %v690
    %v3508 = vpop.f32.mrf.mxu0
    %v3509 = vadd.f32 %v3495, %v3508
    %v3510 = vpop.f32.mrf.mxu0
    %v3511 = vadd.f32 %v3497, %v3510
    %3512 = vdwg.mxu0
    %3513 = vmatpush.bf16.msra.mxu0 %v2488
    %3514 = vmatpush.bf16.msra.mxu0 %v2480
    %3515 = vmatpush.bf16.msra.mxu0 %v2472
    %3516 = vmatpush.bf16.msra.mxu0 %v2464
    %3517 = vmatpush.bf16.msra.mxu0 %v2456
    %3518 = vmatpush.bf16.msra.mxu0 %v2448
    %3519 = vmatpush.bf16.msra.mxu0 %v2440
    %3520 = vmatpush.bf16.msra.mxu0 %v2432
    %3521 = vmatmul.bf16.gmra.mxu0 %v691
    %v3522 = vpop.f32.mrf.mxu0
    %v3523 = vadd.f32 %v3509, %v3522
    %v3524 = vpop.f32.mrf.mxu0
    %v3525 = vadd.f32 %v3511, %v3524
    %3526 = vdwg.mxu0
    %3527 = vmatpush.bf16.msra.mxu0 %v2105
    %3528 = vmatpush.bf16.msra.mxu0 %v2097
    %3529 = vmatpush.bf16.msra.mxu0 %v2089
    %3530 = vmatpush.bf16.msra.mxu0 %v2081
    %3531 = vmatpush.bf16.msra.mxu0 %v2073
    %3532 = vmatpush.bf16.msra.mxu0 %v2065
    %3533 = vmatpush.bf16.msra.mxu0 %v2057
    %3534 = vmatpush.bf16.msra.mxu0 %v2049
    %3535 = vmatmul.bf16.gmra.mxu0 %v685
    %v3536 = vpop.f32.mrf.mxu0
    %v3537 = vadd.f32 %v653, %v3536
    %v3538 = vpop.f32.mrf.mxu0
    %v3539 = vadd.f32 %v653, %v3538
    %3540 = vdwg.mxu0
    %3541 = vmatpush.bf16.msra.mxu0 %v2169
    %3542 = vmatpush.bf16.msra.mxu0 %v2161
    %3543 = vmatpush.bf16.msra.mxu0 %v2153
    %3544 = vmatpush.bf16.msra.mxu0 %v2145
    %3545 = vmatpush.bf16.msra.mxu0 %v2137
    %3546 = vmatpush.bf16.msra.mxu0 %v2129
    %3547 = vmatpush.bf16.msra.mxu0 %v2121
    %3548 = vmatpush.bf16.msra.mxu0 %v2113
    %3549 = vmatmul.bf16.gmra.mxu0 %v686
    %v3550 = vpop.f32.mrf.mxu0
    %v3551 = vadd.f32 %v3537, %v3550
    %v3552 = vpop.f32.mrf.mxu0
    %v3553 = vadd.f32 %v3539, %v3552
    %3554 = vdwg.mxu0
    %3555 = vmatpush.bf16.msra.mxu0 %v2233
    %3556 = vmatpush.bf16.msra.mxu0 %v2225
    %3557 = vmatpush.bf16.msra.mxu0 %v2217
    %3558 = vmatpush.bf16.msra.mxu0 %v2209
    %3559 = vmatpush.bf16.msra.mxu0 %v2201
    %3560 = vmatpush.bf16.msra.mxu0 %v2193
    %3561 = vmatpush.bf16.msra.mxu0 %v2185
    %3562 = vmatpush.bf16.msra.mxu0 %v2177
    %3563 = vmatmul.bf16.gmra.mxu0 %v687
    %v3564 = vpop.f32.mrf.mxu0
    %v3565 = vadd.f32 %v3551, %v3564
    %v3566 = vpop.f32.mrf.mxu0
    %v3567 = vadd.f32 %v3553, %v3566
    %3568 = vdwg.mxu0
    %3569 = vmatpush.bf16.msra.mxu0 %v2297
    %3570 = vmatpush.bf16.msra.mxu0 %v2289
    %3571 = vmatpush.bf16.msra.mxu0 %v2281
    %3572 = vmatpush.bf16.msra.mxu0 %v2273
    %3573 = vmatpush.bf16.msra.mxu0 %v2265
    %3574 = vmatpush.bf16.msra.mxu0 %v2257
    %3575 = vmatpush.bf16.msra.mxu0 %v2249
    %3576 = vmatpush.bf16.msra.mxu0 %v2241
    %3577 = vmatmul.bf16.gmra.mxu0 %v688
    %v3578 = vpop.f32.mrf.mxu0
    %v3579 = vadd.f32 %v3565, %v3578
    %v3580 = vpop.f32.mrf.mxu0
    %v3581 = vadd.f32 %v3567, %v3580
    %3582 = vdwg.mxu0
    %3583 = vmatpush.bf16.msra.mxu0 %v2361
    %3584 = vmatpush.bf16.msra.mxu0 %v2353
    %3585 = vmatpush.bf16.msra.mxu0 %v2345
    %3586 = vmatpush.bf16.msra.mxu0 %v2337
    %3587 = vmatpush.bf16.msra.mxu0 %v2329
    %3588 = vmatpush.bf16.msra.mxu0 %v2321
    %3589 = vmatpush.bf16.msra.mxu0 %v2313
    %3590 = vmatpush.bf16.msra.mxu0 %v2305
    %3591 = vmatmul.bf16.gmra.mxu0 %v689
    %v3592 = vpop.f32.mrf.mxu0
    %v3593 = vadd.f32 %v3579, %v3592
    %v3594 = vpop.f32.mrf.mxu0
    %v3595 = vadd.f32 %v3581, %v3594
    %3596 = vdwg.mxu0
    %3597 = vmatpush.bf16.msra.mxu0 %v2425
    %3598 = vmatpush.bf16.msra.mxu0 %v2417
    %3599 = vmatpush.bf16.msra.mxu0 %v2409
    %3600 = vmatpush.bf16.msra.mxu0 %v2401
    %3601 = vmatpush.bf16.msra.mxu0 %v2393
    %3602 = vmatpush.bf16.msra.mxu0 %v2385
    %3603 = vmatpush.bf16.msra.mxu0 %v2377
    %3604 = vmatpush.bf16.msra.mxu0 %v2369
    %3605 = vmatmul.bf16.gmra.mxu0 %v690
    %v3606 = vpop.f32.mrf.mxu0
    %v3607 = vadd.f32 %v3593, %v3606
    %v3608 = vpop.f32.mrf.mxu0
    %v3609 = vadd.f32 %v3595, %v3608
    %3610 = vdwg.mxu0
    %3611 = vmatpush.bf16.msra.mxu0 %v2489
    %3612 = vmatpush.bf16.msra.mxu0 %v2481
    %3613 = vmatpush.bf16.msra.mxu0 %v2473
    %3614 = vmatpush.bf16.msra.mxu0 %v2465
    %3615 = vmatpush.bf16.msra.mxu0 %v2457
    %3616 = vmatpush.bf16.msra.mxu0 %v2449
    %3617 = vmatpush.bf16.msra.mxu0 %v2441
    %3618 = vmatpush.bf16.msra.mxu0 %v2433
    %3619 = vmatmul.bf16.gmra.mxu0 %v691
    %v3620 = vpop.f32.mrf.mxu0
    %v3621 = vadd.f32 %v3607, %v3620
    %v3622 = vpop.f32.mrf.mxu0
    %v3623 = vadd.f32 %v3609, %v3622
    %3624 = vdwg.mxu0
    %3625 = vmatpush.bf16.msra.mxu0 %v2106
    %3626 = vmatpush.bf16.msra.mxu0 %v2098
    %3627 = vmatpush.bf16.msra.mxu0 %v2090
    %3628 = vmatpush.bf16.msra.mxu0 %v2082
    %3629 = vmatpush.bf16.msra.mxu0 %v2074
    %3630 = vmatpush.bf16.msra.mxu0 %v2066
    %3631 = vmatpush.bf16.msra.mxu0 %v2058
    %3632 = vmatpush.bf16.msra.mxu0 %v2050
    %3633 = vmatmul.bf16.gmra.mxu0 %v685
    %v3634 = vpop.f32.mrf.mxu0
    %v3635 = vadd.f32 %v654, %v3634
    %v3636 = vpop.f32.mrf.mxu0
    %v3637 = vadd.f32 %v654, %v3636
    %3638 = vdwg.mxu0
    %3639 = vmatpush.bf16.msra.mxu0 %v2170
    %3640 = vmatpush.bf16.msra.mxu0 %v2162
    %3641 = vmatpush.bf16.msra.mxu0 %v2154
    %3642 = vmatpush.bf16.msra.mxu0 %v2146
    %3643 = vmatpush.bf16.msra.mxu0 %v2138
    %3644 = vmatpush.bf16.msra.mxu0 %v2130
    %3645 = vmatpush.bf16.msra.mxu0 %v2122
    %3646 = vmatpush.bf16.msra.mxu0 %v2114
    %3647 = vmatmul.bf16.gmra.mxu0 %v686
    %v3648 = vpop.f32.mrf.mxu0
    %v3649 = vadd.f32 %v3635, %v3648
    %v3650 = vpop.f32.mrf.mxu0
    %v3651 = vadd.f32 %v3637, %v3650
    %3652 = vdwg.mxu0
    %3653 = vmatpush.bf16.msra.mxu0 %v2234
    %3654 = vmatpush.bf16.msra.mxu0 %v2226
    %3655 = vmatpush.bf16.msra.mxu0 %v2218
    %3656 = vmatpush.bf16.msra.mxu0 %v2210
    %3657 = vmatpush.bf16.msra.mxu0 %v2202
    %3658 = vmatpush.bf16.msra.mxu0 %v2194
    %3659 = vmatpush.bf16.msra.mxu0 %v2186
    %3660 = vmatpush.bf16.msra.mxu0 %v2178
    %3661 = vmatmul.bf16.gmra.mxu0 %v687
    %v3662 = vpop.f32.mrf.mxu0
    %v3663 = vadd.f32 %v3649, %v3662
    %v3664 = vpop.f32.mrf.mxu0
    %v3665 = vadd.f32 %v3651, %v3664
    %3666 = vdwg.mxu0
    %3667 = vmatpush.bf16.msra.mxu0 %v2298
    %3668 = vmatpush.bf16.msra.mxu0 %v2290
    %3669 = vmatpush.bf16.msra.mxu0 %v2282
    %3670 = vmatpush.bf16.msra.mxu0 %v2274
    %3671 = vmatpush.bf16.msra.mxu0 %v2266
    %3672 = vmatpush.bf16.msra.mxu0 %v2258
    %3673 = vmatpush.bf16.msra.mxu0 %v2250
    %3674 = vmatpush.bf16.msra.mxu0 %v2242
    %3675 = vmatmul.bf16.gmra.mxu0 %v688
    %v3676 = vpop.f32.mrf.mxu0
    %v3677 = vadd.f32 %v3663, %v3676
    %v3678 = vpop.f32.mrf.mxu0
    %v3679 = vadd.f32 %v3665, %v3678
    %3680 = vdwg.mxu0
    %3681 = vmatpush.bf16.msra.mxu0 %v2362
    %3682 = vmatpush.bf16.msra.mxu0 %v2354
    %3683 = vmatpush.bf16.msra.mxu0 %v2346
    %3684 = vmatpush.bf16.msra.mxu0 %v2338
    %3685 = vmatpush.bf16.msra.mxu0 %v2330
    %3686 = vmatpush.bf16.msra.mxu0 %v2322
    %3687 = vmatpush.bf16.msra.mxu0 %v2314
    %3688 = vmatpush.bf16.msra.mxu0 %v2306
    %3689 = vmatmul.bf16.gmra.mxu0 %v689
    %v3690 = vpop.f32.mrf.mxu0
    %v3691 = vadd.f32 %v3677, %v3690
    %v3692 = vpop.f32.mrf.mxu0
    %v3693 = vadd.f32 %v3679, %v3692
    %3694 = vdwg.mxu0
    %3695 = vmatpush.bf16.msra.mxu0 %v2426
    %3696 = vmatpush.bf16.msra.mxu0 %v2418
    %3697 = vmatpush.bf16.msra.mxu0 %v2410
    %3698 = vmatpush.bf16.msra.mxu0 %v2402
    %3699 = vmatpush.bf16.msra.mxu0 %v2394
    %3700 = vmatpush.bf16.msra.mxu0 %v2386
    %3701 = vmatpush.bf16.msra.mxu0 %v2378
    %3702 = vmatpush.bf16.msra.mxu0 %v2370
    %3703 = vmatmul.bf16.gmra.mxu0 %v690
    %v3704 = vpop.f32.mrf.mxu0
    %v3705 = vadd.f32 %v3691, %v3704
    %v3706 = vpop.f32.mrf.mxu0
    %v3707 = vadd.f32 %v3693, %v3706
    %3708 = vdwg.mxu0
    %3709 = vmatpush.bf16.msra.mxu0 %v2490
    %3710 = vmatpush.bf16.msra.mxu0 %v2482
    %3711 = vmatpush.bf16.msra.mxu0 %v2474
    %3712 = vmatpush.bf16.msra.mxu0 %v2466
    %3713 = vmatpush.bf16.msra.mxu0 %v2458
    %3714 = vmatpush.bf16.msra.mxu0 %v2450
    %3715 = vmatpush.bf16.msra.mxu0 %v2442
    %3716 = vmatpush.bf16.msra.mxu0 %v2434
    %3717 = vmatmul.bf16.gmra.mxu0 %v691
    %v3718 = vpop.f32.mrf.mxu0
    %v3719 = vadd.f32 %v3705, %v3718
    %v3720 = vpop.f32.mrf.mxu0
    %v3721 = vadd.f32 %v3707, %v3720
    %3722 = vdwg.mxu0
    %vm3723 = vcmp.gt.f32.partialorder %v3033, 0.0
    %vm3724 = vcmp.gt.f32.partialorder %v3131, 0.0
    %vm3725 = vcmp.gt.f32.partialorder %v3229, 0.0
    %vm3726 = vcmp.gt.f32.partialorder %v3327, 0.0
    %vm3727 = vcmp.gt.f32.partialorder %v3425, 0.0
    %vm3728 = vcmp.gt.f32.partialorder %v3523, 0.0
    %vm3729 = vcmp.gt.f32.partialorder %v3621, 0.0
    %vm3730 = vcmp.gt.f32.partialorder %v3719, 0.0
    %vm3731 = vcmp.gt.f32.partialorder %v3035, 0.0
    %vm3732 = vcmp.gt.f32.partialorder %v3133, 0.0
    %vm3733 = vcmp.gt.f32.partialorder %v3231, 0.0
    %vm3734 = vcmp.gt.f32.partialorder %v3329, 0.0
    %vm3735 = vcmp.gt.f32.partialorder %v3427, 0.0
    %vm3736 = vcmp.gt.f32.partialorder %v3525, 0.0
    %vm3737 = vcmp.gt.f32.partialorder %v3623, 0.0
    %vm3738 = vcmp.gt.f32.partialorder %v3721, 0.0
    %v3739 = vmul.f32 %v3033, 0.2
    %v3740 = vmul.f32 %v3131, 0.2
    %v3741 = vmul.f32 %v3229, 0.2
    %v3742 = vmul.f32 %v3327, 0.2
    %v3743 = vmul.f32 %v3425, 0.2
    %v3744 = vmul.f32 %v3523, 0.2
    %v3745 = vmul.f32 %v3621, 0.2
    %v3746 = vmul.f32 %v3719, 0.2
    %v3747 = vmul.f32 %v3035, 0.2
    %v3748 = vmul.f32 %v3133, 0.2
    %v3749 = vmul.f32 %v3231, 0.2
    %v3750 = vmul.f32 %v3329, 0.2
    %v3751 = vmul.f32 %v3427, 0.2
    %v3752 = vmul.f32 %v3525, 0.2
    %v3753 = vmul.f32 %v3623, 0.2
    %v3754 = vmul.f32 %v3721, 0.2
    %v3755 = vsel %vm3723, %v3033, %v3739
    %v3756 = vsel %vm3724, %v3131, %v3740
    %v3757 = vsel %vm3725, %v3229, %v3741
    %v3758 = vsel %vm3726, %v3327, %v3742
    %v3759 = vsel %vm3727, %v3425, %v3743
    %v3760 = vsel %vm3728, %v3523, %v3744
    %v3761 = vsel %vm3729, %v3621, %v3745
    %v3762 = vsel %vm3730, %v3719, %v3746
    %v3763 = vsel %vm3731, %v3035, %v3747
    %v3764 = vsel %vm3732, %v3133, %v3748
    %v3765 = vsel %vm3733, %v3231, %v3749
    %v3766 = vsel %vm3734, %v3329, %v3750
    %v3767 = vsel %vm3735, %v3427, %v3751
    %v3768 = vsel %vm3736, %v3525, %v3752
    %v3769 = vsel %vm3737, %v3623, %v3753
    %v3770 = vsel %vm3738, %v3721, %v3754
    %v3771 = vpack.c.bf16 %v3763, %v3755
    %v3772 = vpack.c.bf16 %v3764, %v3756
    %v3773 = vpack.c.bf16 %v3765, %v3757
    %v3774 = vpack.c.bf16 %v3766, %v3758
    %v3775 = vpack.c.bf16 %v3767, %v3759
    %v3776 = vpack.c.bf16 %v3768, %v3760
    %v3777 = vpack.c.bf16 %v3769, %v3761
    %v3778 = vpack.c.bf16 %v3770, %v3762
    %v3779 = vld [vmem:[#allocation8] sm:$0xff]
    %v3780 = vld [vmem:[#allocation8 + $0x8] sm:$0xff]
    %v3781 = vld [vmem:[#allocation8 + $0x10] sm:$0xff]
    %v3782 = vld [vmem:[#allocation8 + $0x18] sm:$0xff]
    %v3783 = vld [vmem:[#allocation8 + $0x20] sm:$0xff]
    %v3784 = vld [vmem:[#allocation8 + $0x28] sm:$0xff]
    %v3785 = vld [vmem:[#allocation8 + $0x30] sm:$0xff]
    %v3786 = vld [vmem:[#allocation8 + $0x38] sm:$0xff]
    %v3787 = vld [vmem:[#allocation8 + $0x40] sm:$0xff]
    %v3788 = vld [vmem:[#allocation8 + $0x48] sm:$0xff]
    %v3789 = vld [vmem:[#allocation8 + $0x50] sm:$0xff]
    %v3790 = vld [vmem:[#allocation8 + $0x58] sm:$0xff]
    %v3791 = vld [vmem:[#allocation8 + $0x60] sm:$0xff]
    %v3792 = vld [vmem:[#allocation8 + $0x68] sm:$0xff]
    %v3793 = vld [vmem:[#allocation8 + $0x70] sm:$0xff]
    %v3794 = vld [vmem:[#allocation8 + $0x78] sm:$0xff]
    %v3795 = vld [vmem:[#allocation8 + $0x80] sm:$0xff]
    %v3796 = vld [vmem:[#allocation8 + $0x88] sm:$0xff]
    %v3797 = vld [vmem:[#allocation8 + $0x90] sm:$0xff]
    %v3798 = vld [vmem:[#allocation8 + $0x98] sm:$0xff]
    %v3799 = vld [vmem:[#allocation8 + $0xa0] sm:$0xff]
    %v3800 = vld [vmem:[#allocation8 + $0xa8] sm:$0xff]
    %v3801 = vld [vmem:[#allocation8 + $0xb0] sm:$0xff]
    %v3802 = vld [vmem:[#allocation8 + $0xb8] sm:$0xff]
    %v3803 = vld [vmem:[#allocation8 + $0xc0] sm:$0xff]
    %v3804 = vld [vmem:[#allocation8 + $0xc8] sm:$0xff]
    %v3805 = vld [vmem:[#allocation8 + $0xd0] sm:$0xff]
    %v3806 = vld [vmem:[#allocation8 + $0xd8] sm:$0xff]
    %v3807 = vld [vmem:[#allocation8 + $0xe0] sm:$0xff]
    %v3808 = vld [vmem:[#allocation8 + $0xe8] sm:$0xff]
    %v3809 = vld [vmem:[#allocation8 + $0xf0] sm:$0xff]
    %v3810 = vld [vmem:[#allocation8 + $0xf8] sm:$0xff]
    %v3811 = vld [vmem:[#allocation8 + $0x100] sm:$0xff]
    %v3812 = vld [vmem:[#allocation8 + $0x108] sm:$0xff]
    %v3813 = vld [vmem:[#allocation8 + $0x110] sm:$0xff]
    %v3814 = vld [vmem:[#allocation8 + $0x118] sm:$0xff]
    %v3815 = vld [vmem:[#allocation8 + $0x120] sm:$0xff]
    %v3816 = vld [vmem:[#allocation8 + $0x128] sm:$0xff]
    %v3817 = vld [vmem:[#allocation8 + $0x130] sm:$0xff]
    %v3818 = vld [vmem:[#allocation8 + $0x138] sm:$0xff]
    %v3819 = vld [vmem:[#allocation8 + $0x140] sm:$0xff]
    %v3820 = vld [vmem:[#allocation8 + $0x148] sm:$0xff]
    %v3821 = vld [vmem:[#allocation8 + $0x150] sm:$0xff]
    %v3822 = vld [vmem:[#allocation8 + $0x158] sm:$0xff]
    %v3823 = vld [vmem:[#allocation8 + $0x160] sm:$0xff]
    %v3824 = vld [vmem:[#allocation8 + $0x168] sm:$0xff]
    %v3825 = vld [vmem:[#allocation8 + $0x170] sm:$0xff]
    %v3826 = vld [vmem:[#allocation8 + $0x178] sm:$0xff]
    %v3827 = vld [vmem:[#allocation8 + $0x180] sm:$0xff]
    %v3828 = vld [vmem:[#allocation8 + $0x188] sm:$0xff]
    %v3829 = vld [vmem:[#allocation8 + $0x190] sm:$0xff]
    %v3830 = vld [vmem:[#allocation8 + $0x198] sm:$0xff]
    %v3831 = vld [vmem:[#allocation8 + $0x1a0] sm:$0xff]
    %v3832 = vld [vmem:[#allocation8 + $0x1a8] sm:$0xff]
    %v3833 = vld [vmem:[#allocation8 + $0x1b0] sm:$0xff]
    %v3834 = vld [vmem:[#allocation8 + $0x1b8] sm:$0xff]
    %v3835 = vld [vmem:[#allocation8 + $0x1c0] sm:$0xff]
    %v3836 = vld [vmem:[#allocation8 + $0x1c8] sm:$0xff]
    %v3837 = vld [vmem:[#allocation8 + $0x1d0] sm:$0xff]
    %v3838 = vld [vmem:[#allocation8 + $0x1d8] sm:$0xff]
    %v3839 = vld [vmem:[#allocation8 + $0x1e0] sm:$0xff]
    %v3840 = vld [vmem:[#allocation8 + $0x1e8] sm:$0xff]
    %v3841 = vld [vmem:[#allocation8 + $0x1f0] sm:$0xff]
    %v3842 = vld [vmem:[#allocation8 + $0x1f8] sm:$0xff]
    %v3843 = vld [vmem:[#allocation8 + $0x200] sm:$0xff]
    %v3844 = vld [vmem:[#allocation8 + $0x208] sm:$0xff]
    %v3845 = vld [vmem:[#allocation8 + $0x210] sm:$0xff]
    %v3846 = vld [vmem:[#allocation8 + $0x218] sm:$0xff]
    %v3847 = vld [vmem:[#allocation8 + $0x220] sm:$0xff]
    %v3848 = vld [vmem:[#allocation8 + $0x228] sm:$0xff]
    %v3849 = vld [vmem:[#allocation8 + $0x230] sm:$0xff]
    %v3850 = vld [vmem:[#allocation8 + $0x238] sm:$0xff]
    %v3851 = vld [vmem:[#allocation8 + $0x240] sm:$0xff]
    %v3852 = vld [vmem:[#allocation8 + $0x248] sm:$0xff]
    %v3853 = vld [vmem:[#allocation8 + $0x250] sm:$0xff]
    %v3854 = vld [vmem:[#allocation8 + $0x258] sm:$0xff]
    %v3855 = vld [vmem:[#allocation8 + $0x260] sm:$0xff]
    %v3856 = vld [vmem:[#allocation8 + $0x268] sm:$0xff]
    %v3857 = vld [vmem:[#allocation8 + $0x270] sm:$0xff]
    %v3858 = vld [vmem:[#allocation8 + $0x278] sm:$0xff]
    %v3859 = vld [vmem:[#allocation8 + $0x280] sm:$0xff]
    %v3860 = vld [vmem:[#allocation8 + $0x288] sm:$0xff]
    %v3861 = vld [vmem:[#allocation8 + $0x290] sm:$0xff]
    %v3862 = vld [vmem:[#allocation8 + $0x298] sm:$0xff]
    %v3863 = vld [vmem:[#allocation8 + $0x2a0] sm:$0xff]
    %v3864 = vld [vmem:[#allocation8 + $0x2a8] sm:$0xff]
    %v3865 = vld [vmem:[#allocation8 + $0x2b0] sm:$0xff]
    %v3866 = vld [vmem:[#allocation8 + $0x2b8] sm:$0xff]
    %v3867 = vld [vmem:[#allocation8 + $0x2c0] sm:$0xff]
    %v3868 = vld [vmem:[#allocation8 + $0x2c8] sm:$0xff]
    %v3869 = vld [vmem:[#allocation8 + $0x2d0] sm:$0xff]
    %v3870 = vld [vmem:[#allocation8 + $0x2d8] sm:$0xff]
    %v3871 = vld [vmem:[#allocation8 + $0x2e0] sm:$0xff]
    %v3872 = vld [vmem:[#allocation8 + $0x2e8] sm:$0xff]
    %v3873 = vld [vmem:[#allocation8 + $0x2f0] sm:$0xff]
    %v3874 = vld [vmem:[#allocation8 + $0x2f8] sm:$0xff]
    %v3875 = vld [vmem:[#allocation8 + $0x300] sm:$0xff]
    %v3876 = vld [vmem:[#allocation8 + $0x308] sm:$0xff]
    %v3877 = vld [vmem:[#allocation8 + $0x310] sm:$0xff]
    %v3878 = vld [vmem:[#allocation8 + $0x318] sm:$0xff]
    %v3879 = vld [vmem:[#allocation8 + $0x320] sm:$0xff]
    %v3880 = vld [vmem:[#allocation8 + $0x328] sm:$0xff]
    %v3881 = vld [vmem:[#allocation8 + $0x330] sm:$0xff]
    %v3882 = vld [vmem:[#allocation8 + $0x338] sm:$0xff]
    %v3883 = vld [vmem:[#allocation8 + $0x340] sm:$0xff]
    %v3884 = vld [vmem:[#allocation8 + $0x348] sm:$0xff]
    %v3885 = vld [vmem:[#allocation8 + $0x350] sm:$0xff]
    %v3886 = vld [vmem:[#allocation8 + $0x358] sm:$0xff]
    %v3887 = vld [vmem:[#allocation8 + $0x360] sm:$0xff]
    %v3888 = vld [vmem:[#allocation8 + $0x368] sm:$0xff]
    %v3889 = vld [vmem:[#allocation8 + $0x370] sm:$0xff]
    %v3890 = vld [vmem:[#allocation8 + $0x378] sm:$0xff]
    %v3891 = vld [vmem:[#allocation8 + $0x380] sm:$0xff]
    %v3892 = vld [vmem:[#allocation8 + $0x388] sm:$0xff]
    %v3893 = vld [vmem:[#allocation8 + $0x390] sm:$0xff]
    %v3894 = vld [vmem:[#allocation8 + $0x398] sm:$0xff]
    %v3895 = vld [vmem:[#allocation8 + $0x3a0] sm:$0xff]
    %v3896 = vld [vmem:[#allocation8 + $0x3a8] sm:$0xff]
    %v3897 = vld [vmem:[#allocation8 + $0x3b0] sm:$0xff]
    %v3898 = vld [vmem:[#allocation8 + $0x3b8] sm:$0xff]
    %v3899 = vld [vmem:[#allocation8 + $0x3c0] sm:$0xff]
    %v3900 = vld [vmem:[#allocation8 + $0x3c8] sm:$0xff]
    %v3901 = vld [vmem:[#allocation8 + $0x3d0] sm:$0xff]
    %v3902 = vld [vmem:[#allocation8 + $0x3d8] sm:$0xff]
    %v3903 = vld [vmem:[#allocation8 + $0x3e0] sm:$0xff]
    %v3904 = vld [vmem:[#allocation8 + $0x3e8] sm:$0xff]
    %v3905 = vld [vmem:[#allocation8 + $0x3f0] sm:$0xff]
    %v3906 = vld [vmem:[#allocation8 + $0x3f8] sm:$0xff]
    %v3907 = vld [vmem:[#allocation8 + $0x400] sm:$0xff]
    %v3908 = vld [vmem:[#allocation8 + $0x408] sm:$0xff]
    %v3909 = vld [vmem:[#allocation8 + $0x410] sm:$0xff]
    %v3910 = vld [vmem:[#allocation8 + $0x418] sm:$0xff]
    %v3911 = vld [vmem:[#allocation8 + $0x420] sm:$0xff]
    %v3912 = vld [vmem:[#allocation8 + $0x428] sm:$0xff]
    %v3913 = vld [vmem:[#allocation8 + $0x430] sm:$0xff]
    %v3914 = vld [vmem:[#allocation8 + $0x438] sm:$0xff]
    %v3915 = vld [vmem:[#allocation8 + $0x440] sm:$0xff]
    %v3916 = vld [vmem:[#allocation8 + $0x448] sm:$0xff]
    %v3917 = vld [vmem:[#allocation8 + $0x450] sm:$0xff]
    %v3918 = vld [vmem:[#allocation8 + $0x458] sm:$0xff]
    %v3919 = vld [vmem:[#allocation8 + $0x460] sm:$0xff]
    %v3920 = vld [vmem:[#allocation8 + $0x468] sm:$0xff]
    %v3921 = vld [vmem:[#allocation8 + $0x470] sm:$0xff]
    %v3922 = vld [vmem:[#allocation8 + $0x478] sm:$0xff]
    %v3923 = vld [vmem:[#allocation8 + $0x480] sm:$0xff]
    %v3924 = vld [vmem:[#allocation8 + $0x488] sm:$0xff]
    %v3925 = vld [vmem:[#allocation8 + $0x490] sm:$0xff]
    %v3926 = vld [vmem:[#allocation8 + $0x498] sm:$0xff]
    %v3927 = vld [vmem:[#allocation8 + $0x4a0] sm:$0xff]
    %v3928 = vld [vmem:[#allocation8 + $0x4a8] sm:$0xff]
    %v3929 = vld [vmem:[#allocation8 + $0x4b0] sm:$0xff]
    %v3930 = vld [vmem:[#allocation8 + $0x4b8] sm:$0xff]
    %v3931 = vld [vmem:[#allocation8 + $0x4c0] sm:$0xff]
    %v3932 = vld [vmem:[#allocation8 + $0x4c8] sm:$0xff]
    %v3933 = vld [vmem:[#allocation8 + $0x4d0] sm:$0xff]
    %v3934 = vld [vmem:[#allocation8 + $0x4d8] sm:$0xff]
    %v3935 = vld [vmem:[#allocation8 + $0x4e0] sm:$0xff]
    %v3936 = vld [vmem:[#allocation8 + $0x4e8] sm:$0xff]
    %v3937 = vld [vmem:[#allocation8 + $0x4f0] sm:$0xff]
    %v3938 = vld [vmem:[#allocation8 + $0x4f8] sm:$0xff]
    %v3939 = vld [vmem:[#allocation8 + $0x500] sm:$0xff]
    %v3940 = vld [vmem:[#allocation8 + $0x508] sm:$0xff]
    %v3941 = vld [vmem:[#allocation8 + $0x510] sm:$0xff]
    %v3942 = vld [vmem:[#allocation8 + $0x518] sm:$0xff]
    %v3943 = vld [vmem:[#allocation8 + $0x520] sm:$0xff]
    %v3944 = vld [vmem:[#allocation8 + $0x528] sm:$0xff]
    %v3945 = vld [vmem:[#allocation8 + $0x530] sm:$0xff]
    %v3946 = vld [vmem:[#allocation8 + $0x538] sm:$0xff]
    %v3947 = vld [vmem:[#allocation8 + $0x540] sm:$0xff]
    %v3948 = vld [vmem:[#allocation8 + $0x548] sm:$0xff]
    %v3949 = vld [vmem:[#allocation8 + $0x550] sm:$0xff]
    %v3950 = vld [vmem:[#allocation8 + $0x558] sm:$0xff]
    %v3951 = vld [vmem:[#allocation8 + $0x560] sm:$0xff]
    %v3952 = vld [vmem:[#allocation8 + $0x568] sm:$0xff]
    %v3953 = vld [vmem:[#allocation8 + $0x570] sm:$0xff]
    %v3954 = vld [vmem:[#allocation8 + $0x578] sm:$0xff]
    %v3955 = vld [vmem:[#allocation8 + $0x580] sm:$0xff]
    %v3956 = vld [vmem:[#allocation8 + $0x588] sm:$0xff]
    %v3957 = vld [vmem:[#allocation8 + $0x590] sm:$0xff]
    %v3958 = vld [vmem:[#allocation8 + $0x598] sm:$0xff]
    %v3959 = vld [vmem:[#allocation8 + $0x5a0] sm:$0xff]
    %v3960 = vld [vmem:[#allocation8 + $0x5a8] sm:$0xff]
    %v3961 = vld [vmem:[#allocation8 + $0x5b0] sm:$0xff]
    %v3962 = vld [vmem:[#allocation8 + $0x5b8] sm:$0xff]
    %v3963 = vld [vmem:[#allocation8 + $0x5c0] sm:$0xff]
    %v3964 = vld [vmem:[#allocation8 + $0x5c8] sm:$0xff]
    %v3965 = vld [vmem:[#allocation8 + $0x5d0] sm:$0xff]
    %v3966 = vld [vmem:[#allocation8 + $0x5d8] sm:$0xff]
    %v3967 = vld [vmem:[#allocation8 + $0x5e0] sm:$0xff]
    %v3968 = vld [vmem:[#allocation8 + $0x5e8] sm:$0xff]
    %v3969 = vld [vmem:[#allocation8 + $0x5f0] sm:$0xff]
    %v3970 = vld [vmem:[#allocation8 + $0x5f8] sm:$0xff]
    %v3971 = vld [vmem:[#allocation8 + $0x600] sm:$0xff]
    %v3972 = vld [vmem:[#allocation8 + $0x608] sm:$0xff]
    %v3973 = vld [vmem:[#allocation8 + $0x610] sm:$0xff]
    %v3974 = vld [vmem:[#allocation8 + $0x618] sm:$0xff]
    %v3975 = vld [vmem:[#allocation8 + $0x620] sm:$0xff]
    %v3976 = vld [vmem:[#allocation8 + $0x628] sm:$0xff]
    %v3977 = vld [vmem:[#allocation8 + $0x630] sm:$0xff]
    %v3978 = vld [vmem:[#allocation8 + $0x638] sm:$0xff]
    %v3979 = vld [vmem:[#allocation8 + $0x640] sm:$0xff]
    %v3980 = vld [vmem:[#allocation8 + $0x648] sm:$0xff]
    %v3981 = vld [vmem:[#allocation8 + $0x650] sm:$0xff]
    %v3982 = vld [vmem:[#allocation8 + $0x658] sm:$0xff]
    %v3983 = vld [vmem:[#allocation8 + $0x660] sm:$0xff]
    %v3984 = vld [vmem:[#allocation8 + $0x668] sm:$0xff]
    %v3985 = vld [vmem:[#allocation8 + $0x670] sm:$0xff]
    %v3986 = vld [vmem:[#allocation8 + $0x678] sm:$0xff]
    %v3987 = vld [vmem:[#allocation8 + $0x680] sm:$0xff]
    %v3988 = vld [vmem:[#allocation8 + $0x688] sm:$0xff]
    %v3989 = vld [vmem:[#allocation8 + $0x690] sm:$0xff]
    %v3990 = vld [vmem:[#allocation8 + $0x698] sm:$0xff]
    %v3991 = vld [vmem:[#allocation8 + $0x6a0] sm:$0xff]
    %v3992 = vld [vmem:[#allocation8 + $0x6a8] sm:$0xff]
    %v3993 = vld [vmem:[#allocation8 + $0x6b0] sm:$0xff]
    %v3994 = vld [vmem:[#allocation8 + $0x6b8] sm:$0xff]
    %v3995 = vld [vmem:[#allocation8 + $0x6c0] sm:$0xff]
    %v3996 = vld [vmem:[#allocation8 + $0x6c8] sm:$0xff]
    %v3997 = vld [vmem:[#allocation8 + $0x6d0] sm:$0xff]
    %v3998 = vld [vmem:[#allocation8 + $0x6d8] sm:$0xff]
    %v3999 = vld [vmem:[#allocation8 + $0x6e0] sm:$0xff]
    %v4000 = vld [vmem:[#allocation8 + $0x6e8] sm:$0xff]
    %v4001 = vld [vmem:[#allocation8 + $0x6f0] sm:$0xff]
    %v4002 = vld [vmem:[#allocation8 + $0x6f8] sm:$0xff]
    %v4003 = vld [vmem:[#allocation8 + $0x700] sm:$0xff]
    %v4004 = vld [vmem:[#allocation8 + $0x708] sm:$0xff]
    %v4005 = vld [vmem:[#allocation8 + $0x710] sm:$0xff]
    %v4006 = vld [vmem:[#allocation8 + $0x718] sm:$0xff]
    %v4007 = vld [vmem:[#allocation8 + $0x720] sm:$0xff]
    %v4008 = vld [vmem:[#allocation8 + $0x728] sm:$0xff]
    %v4009 = vld [vmem:[#allocation8 + $0x730] sm:$0xff]
    %v4010 = vld [vmem:[#allocation8 + $0x738] sm:$0xff]
    %v4011 = vld [vmem:[#allocation8 + $0x740] sm:$0xff]
    %v4012 = vld [vmem:[#allocation8 + $0x748] sm:$0xff]
    %v4013 = vld [vmem:[#allocation8 + $0x750] sm:$0xff]
    %v4014 = vld [vmem:[#allocation8 + $0x758] sm:$0xff]
    %v4015 = vld [vmem:[#allocation8 + $0x760] sm:$0xff]
    %v4016 = vld [vmem:[#allocation8 + $0x768] sm:$0xff]
    %v4017 = vld [vmem:[#allocation8 + $0x770] sm:$0xff]
    %v4018 = vld [vmem:[#allocation8 + $0x778] sm:$0xff]
    %v4019 = vld [vmem:[#allocation8 + $0x780] sm:$0xff]
    %v4020 = vld [vmem:[#allocation8 + $0x788] sm:$0xff]
    %v4021 = vld [vmem:[#allocation8 + $0x790] sm:$0xff]
    %v4022 = vld [vmem:[#allocation8 + $0x798] sm:$0xff]
    %v4023 = vld [vmem:[#allocation8 + $0x7a0] sm:$0xff]
    %v4024 = vld [vmem:[#allocation8 + $0x7a8] sm:$0xff]
    %v4025 = vld [vmem:[#allocation8 + $0x7b0] sm:$0xff]
    %v4026 = vld [vmem:[#allocation8 + $0x7b8] sm:$0xff]
    %v4027 = vld [vmem:[#allocation8 + $0x7c0] sm:$0xff]
    %v4028 = vld [vmem:[#allocation8 + $0x7c8] sm:$0xff]
    %v4029 = vld [vmem:[#allocation8 + $0x7d0] sm:$0xff]
    %v4030 = vld [vmem:[#allocation8 + $0x7d8] sm:$0xff]
    %v4031 = vld [vmem:[#allocation8 + $0x7e0] sm:$0xff]
    %v4032 = vld [vmem:[#allocation8 + $0x7e8] sm:$0xff]
    %v4033 = vld [vmem:[#allocation8 + $0x7f0] sm:$0xff]
    %v4034 = vld [vmem:[#allocation8 + $0x7f8] sm:$0xff]
    %v4035 = vld [vmem:[#allocation9] sm:$0xf]
    %v4037 = vperm.slane %v4035, 0
    %v4038 = vperm.slane %v4035, 1
    %v4039 = vperm.slane %v4035, 2
    %v4040 = vperm.slane %v4035, 3
    %v4301 = vunpack.c.l.b16 %v3779
    %v4302 = vunpack.c.h.b16 %v3779
    %v4303 = vunpack.c.l.b16 %v3780
    %v4304 = vunpack.c.h.b16 %v3780
    %v4305 = vunpack.c.l.b16 %v3781
    %v4306 = vunpack.c.h.b16 %v3781
    %v4307 = vunpack.c.l.b16 %v3782
    %v4308 = vunpack.c.h.b16 %v3782
    %v4309 = vunpack.c.l.b16 %v3783
    %v4310 = vunpack.c.h.b16 %v3783
    %v4311 = vunpack.c.l.b16 %v3784
    %v4312 = vunpack.c.h.b16 %v3784
    %v4313 = vunpack.c.l.b16 %v3785
    %v4314 = vunpack.c.h.b16 %v3785
    %v4315 = vunpack.c.l.b16 %v3786
    %v4316 = vunpack.c.h.b16 %v3786
    %v4317 = vunpack.c.l.b16 %v3787
    %v4318 = vunpack.c.h.b16 %v3787
    %v4319 = vunpack.c.l.b16 %v3788
    %v4320 = vunpack.c.h.b16 %v3788
    %v4321 = vunpack.c.l.b16 %v3789
    %v4322 = vunpack.c.h.b16 %v3789
    %v4323 = vunpack.c.l.b16 %v3790
    %v4324 = vunpack.c.h.b16 %v3790
    %v4325 = vunpack.c.l.b16 %v3791
    %v4326 = vunpack.c.h.b16 %v3791
    %v4327 = vunpack.c.l.b16 %v3792
    %v4328 = vunpack.c.h.b16 %v3792
    %v4329 = vunpack.c.l.b16 %v3793
    %v4330 = vunpack.c.h.b16 %v3793
    %v4331 = vunpack.c.l.b16 %v3794
    %v4332 = vunpack.c.h.b16 %v3794
    %v4333 = vunpack.c.l.b16 %v3795
    %v4334 = vunpack.c.h.b16 %v3795
    %v4335 = vunpack.c.l.b16 %v3796
    %v4336 = vunpack.c.h.b16 %v3796
    %v4337 = vunpack.c.l.b16 %v3797
    %v4338 = vunpack.c.h.b16 %v3797
    %v4339 = vunpack.c.l.b16 %v3798
    %v4340 = vunpack.c.h.b16 %v3798
    %v4341 = vunpack.c.l.b16 %v3799
    %v4342 = vunpack.c.h.b16 %v3799
    %v4343 = vunpack.c.l.b16 %v3800
    %v4344 = vunpack.c.h.b16 %v3800
    %v4345 = vunpack.c.l.b16 %v3801
    %v4346 = vunpack.c.h.b16 %v3801
    %v4347 = vunpack.c.l.b16 %v3802
    %v4348 = vunpack.c.h.b16 %v3802
    %v4349 = vunpack.c.l.b16 %v3803
    %v4350 = vunpack.c.h.b16 %v3803
    %v4351 = vunpack.c.l.b16 %v3804
    %v4352 = vunpack.c.h.b16 %v3804
    %v4353 = vunpack.c.l.b16 %v3805
    %v4354 = vunpack.c.h.b16 %v3805
    %v4355 = vunpack.c.l.b16 %v3806
    %v4356 = vunpack.c.h.b16 %v3806
    %v4357 = vunpack.c.l.b16 %v3807
    %v4358 = vunpack.c.h.b16 %v3807
    %v4359 = vunpack.c.l.b16 %v3808
    %v4360 = vunpack.c.h.b16 %v3808
    %v4361 = vunpack.c.l.b16 %v3809
    %v4362 = vunpack.c.h.b16 %v3809
    %v4363 = vunpack.c.l.b16 %v3810
    %v4364 = vunpack.c.h.b16 %v3810
    %v4365 = vunpack.c.l.b16 %v3811
    %v4366 = vunpack.c.h.b16 %v3811
    %v4367 = vunpack.c.l.b16 %v3812
    %v4368 = vunpack.c.h.b16 %v3812
    %v4369 = vunpack.c.l.b16 %v3813
    %v4370 = vunpack.c.h.b16 %v3813
    %v4371 = vunpack.c.l.b16 %v3814
    %v4372 = vunpack.c.h.b16 %v3814
    %v4373 = vunpack.c.l.b16 %v3815
    %v4374 = vunpack.c.h.b16 %v3815
    %v4375 = vunpack.c.l.b16 %v3816
    %v4376 = vunpack.c.h.b16 %v3816
    %v4377 = vunpack.c.l.b16 %v3817
    %v4378 = vunpack.c.h.b16 %v3817
    %v4379 = vunpack.c.l.b16 %v3818
    %v4380 = vunpack.c.h.b16 %v3818
    %v4381 = vunpack.c.l.b16 %v3819
    %v4382 = vunpack.c.h.b16 %v3819
    %v4383 = vunpack.c.l.b16 %v3820
    %v4384 = vunpack.c.h.b16 %v3820
    %v4385 = vunpack.c.l.b16 %v3821
    %v4386 = vunpack.c.h.b16 %v3821
    %v4387 = vunpack.c.l.b16 %v3822
    %v4388 = vunpack.c.h.b16 %v3822
    %v4389 = vunpack.c.l.b16 %v3823
    %v4390 = vunpack.c.h.b16 %v3823
    %v4391 = vunpack.c.l.b16 %v3824
    %v4392 = vunpack.c.h.b16 %v3824
    %v4393 = vunpack.c.l.b16 %v3825
    %v4394 = vunpack.c.h.b16 %v3825
    %v4395 = vunpack.c.l.b16 %v3826
    %v4396 = vunpack.c.h.b16 %v3826
    %v4397 = vunpack.c.l.b16 %v3827
    %v4398 = vunpack.c.h.b16 %v3827
    %v4399 = vunpack.c.l.b16 %v3828
    %v4400 = vunpack.c.h.b16 %v3828
    %v4401 = vunpack.c.l.b16 %v3829
    %v4402 = vunpack.c.h.b16 %v3829
    %v4403 = vunpack.c.l.b16 %v3830
    %v4404 = vunpack.c.h.b16 %v3830
    %v4405 = vunpack.c.l.b16 %v3831
    %v4406 = vunpack.c.h.b16 %v3831
    %v4407 = vunpack.c.l.b16 %v3832
    %v4408 = vunpack.c.h.b16 %v3832
    %v4409 = vunpack.c.l.b16 %v3833
    %v4410 = vunpack.c.h.b16 %v3833
    %v4411 = vunpack.c.l.b16 %v3834
    %v4412 = vunpack.c.h.b16 %v3834
    %v4413 = vunpack.c.l.b16 %v3835
    %v4414 = vunpack.c.h.b16 %v3835
    %v4415 = vunpack.c.l.b16 %v3836
    %v4416 = vunpack.c.h.b16 %v3836
    %v4417 = vunpack.c.l.b16 %v3837
    %v4418 = vunpack.c.h.b16 %v3837
    %v4419 = vunpack.c.l.b16 %v3838
    %v4420 = vunpack.c.h.b16 %v3838
    %v4421 = vunpack.c.l.b16 %v3839
    %v4422 = vunpack.c.h.b16 %v3839
    %v4423 = vunpack.c.l.b16 %v3840
    %v4424 = vunpack.c.h.b16 %v3840
    %v4425 = vunpack.c.l.b16 %v3841
    %v4426 = vunpack.c.h.b16 %v3841
    %v4427 = vunpack.c.l.b16 %v3842
    %v4428 = vunpack.c.h.b16 %v3842
    %v4429 = vunpack.c.l.b16 %v3843
    %v4430 = vunpack.c.h.b16 %v3843
    %v4431 = vunpack.c.l.b16 %v3844
    %v4432 = vunpack.c.h.b16 %v3844
    %v4433 = vunpack.c.l.b16 %v3845
    %v4434 = vunpack.c.h.b16 %v3845
    %v4435 = vunpack.c.l.b16 %v3846
    %v4436 = vunpack.c.h.b16 %v3846
    %v4437 = vunpack.c.l.b16 %v3847
    %v4438 = vunpack.c.h.b16 %v3847
    %v4439 = vunpack.c.l.b16 %v3848
    %v4440 = vunpack.c.h.b16 %v3848
    %v4441 = vunpack.c.l.b16 %v3849
    %v4442 = vunpack.c.h.b16 %v3849
    %v4443 = vunpack.c.l.b16 %v3850
    %v4444 = vunpack.c.h.b16 %v3850
    %v4445 = vunpack.c.l.b16 %v3851
    %v4446 = vunpack.c.h.b16 %v3851
    %v4447 = vunpack.c.l.b16 %v3852
    %v4448 = vunpack.c.h.b16 %v3852
    %v4449 = vunpack.c.l.b16 %v3853
    %v4450 = vunpack.c.h.b16 %v3853
    %v4451 = vunpack.c.l.b16 %v3854
    %v4452 = vunpack.c.h.b16 %v3854
    %v4453 = vunpack.c.l.b16 %v3855
    %v4454 = vunpack.c.h.b16 %v3855
    %v4455 = vunpack.c.l.b16 %v3856
    %v4456 = vunpack.c.h.b16 %v3856
    %v4457 = vunpack.c.l.b16 %v3857
    %v4458 = vunpack.c.h.b16 %v3857
    %v4459 = vunpack.c.l.b16 %v3858
    %v4460 = vunpack.c.h.b16 %v3858
    %v4461 = vunpack.c.l.b16 %v3859
    %v4462 = vunpack.c.h.b16 %v3859
    %v4463 = vunpack.c.l.b16 %v3860
    %v4464 = vunpack.c.h.b16 %v3860
    %v4465 = vunpack.c.l.b16 %v3861
    %v4466 = vunpack.c.h.b16 %v3861
    %v4467 = vunpack.c.l.b16 %v3862
    %v4468 = vunpack.c.h.b16 %v3862
    %v4469 = vunpack.c.l.b16 %v3863
    %v4470 = vunpack.c.h.b16 %v3863
    %v4471 = vunpack.c.l.b16 %v3864
    %v4472 = vunpack.c.h.b16 %v3864
    %v4473 = vunpack.c.l.b16 %v3865
    %v4474 = vunpack.c.h.b16 %v3865
    %v4475 = vunpack.c.l.b16 %v3866
    %v4476 = vunpack.c.h.b16 %v3866
    %v4477 = vunpack.c.l.b16 %v3867
    %v4478 = vunpack.c.h.b16 %v3867
    %v4479 = vunpack.c.l.b16 %v3868
    %v4480 = vunpack.c.h.b16 %v3868
    %v4481 = vunpack.c.l.b16 %v3869
    %v4482 = vunpack.c.h.b16 %v3869
    %v4483 = vunpack.c.l.b16 %v3870
    %v4484 = vunpack.c.h.b16 %v3870
    %v4485 = vunpack.c.l.b16 %v3871
    %v4486 = vunpack.c.h.b16 %v3871
    %v4487 = vunpack.c.l.b16 %v3872
    %v4488 = vunpack.c.h.b16 %v3872
    %v4489 = vunpack.c.l.b16 %v3873
    %v4490 = vunpack.c.h.b16 %v3873
    %v4491 = vunpack.c.l.b16 %v3874
    %v4492 = vunpack.c.h.b16 %v3874
    %v4493 = vunpack.c.l.b16 %v3875
    %v4494 = vunpack.c.h.b16 %v3875
    %v4495 = vunpack.c.l.b16 %v3876
    %v4496 = vunpack.c.h.b16 %v3876
    %v4497 = vunpack.c.l.b16 %v3877
    %v4498 = vunpack.c.h.b16 %v3877
    %v4499 = vunpack.c.l.b16 %v3878
    %v4500 = vunpack.c.h.b16 %v3878
    %v4501 = vunpack.c.l.b16 %v3879
    %v4502 = vunpack.c.h.b16 %v3879
    %v4503 = vunpack.c.l.b16 %v3880
    %v4504 = vunpack.c.h.b16 %v3880
    %v4505 = vunpack.c.l.b16 %v3881
    %v4506 = vunpack.c.h.b16 %v3881
    %v4507 = vunpack.c.l.b16 %v3882
    %v4508 = vunpack.c.h.b16 %v3882
    %v4509 = vunpack.c.l.b16 %v3883
    %v4510 = vunpack.c.h.b16 %v3883
    %v4511 = vunpack.c.l.b16 %v3884
    %v4512 = vunpack.c.h.b16 %v3884
    %v4513 = vunpack.c.l.b16 %v3885
    %v4514 = vunpack.c.h.b16 %v3885
    %v4515 = vunpack.c.l.b16 %v3886
    %v4516 = vunpack.c.h.b16 %v3886
    %v4517 = vunpack.c.l.b16 %v3887
    %v4518 = vunpack.c.h.b16 %v3887
    %v4519 = vunpack.c.l.b16 %v3888
    %v4520 = vunpack.c.h.b16 %v3888
    %v4521 = vunpack.c.l.b16 %v3889
    %v4522 = vunpack.c.h.b16 %v3889
    %v4523 = vunpack.c.l.b16 %v3890
    %v4524 = vunpack.c.h.b16 %v3890
    %v4525 = vunpack.c.l.b16 %v3891
    %v4526 = vunpack.c.h.b16 %v3891
    %v4527 = vunpack.c.l.b16 %v3892
    %v4528 = vunpack.c.h.b16 %v3892
    %v4529 = vunpack.c.l.b16 %v3893
    %v4530 = vunpack.c.h.b16 %v3893
    %v4531 = vunpack.c.l.b16 %v3894
    %v4532 = vunpack.c.h.b16 %v3894
    %v4533 = vunpack.c.l.b16 %v3895
    %v4534 = vunpack.c.h.b16 %v3895
    %v4535 = vunpack.c.l.b16 %v3896
    %v4536 = vunpack.c.h.b16 %v3896
    %v4537 = vunpack.c.l.b16 %v3897
    %v4538 = vunpack.c.h.b16 %v3897
    %v4539 = vunpack.c.l.b16 %v3898
    %v4540 = vunpack.c.h.b16 %v3898
    %v4541 = vunpack.c.l.b16 %v3899
    %v4542 = vunpack.c.h.b16 %v3899
    %v4543 = vunpack.c.l.b16 %v3900
    %v4544 = vunpack.c.h.b16 %v3900
    %v4545 = vunpack.c.l.b16 %v3901
    %v4546 = vunpack.c.h.b16 %v3901
    %v4547 = vunpack.c.l.b16 %v3902
    %v4548 = vunpack.c.h.b16 %v3902
    %v4549 = vunpack.c.l.b16 %v3903
    %v4550 = vunpack.c.h.b16 %v3903
    %v4551 = vunpack.c.l.b16 %v3904
    %v4552 = vunpack.c.h.b16 %v3904
    %v4553 = vunpack.c.l.b16 %v3905
    %v4554 = vunpack.c.h.b16 %v3905
    %v4555 = vunpack.c.l.b16 %v3906
    %v4556 = vunpack.c.h.b16 %v3906
    %v4557 = vunpack.c.l.b16 %v3907
    %v4558 = vunpack.c.h.b16 %v3907
    %v4559 = vunpack.c.l.b16 %v3908
    %v4560 = vunpack.c.h.b16 %v3908
    %v4561 = vunpack.c.l.b16 %v3909
    %v4562 = vunpack.c.h.b16 %v3909
    %v4563 = vunpack.c.l.b16 %v3910
    %v4564 = vunpack.c.h.b16 %v3910
    %v4565 = vunpack.c.l.b16 %v3911
    %v4566 = vunpack.c.h.b16 %v3911
    %v4567 = vunpack.c.l.b16 %v3912
    %v4568 = vunpack.c.h.b16 %v3912
    %v4569 = vunpack.c.l.b16 %v3913
    %v4570 = vunpack.c.h.b16 %v3913
    %v4571 = vunpack.c.l.b16 %v3914
    %v4572 = vunpack.c.h.b16 %v3914
    %v4573 = vunpack.c.l.b16 %v3915
    %v4574 = vunpack.c.h.b16 %v3915
    %v4575 = vunpack.c.l.b16 %v3916
    %v4576 = vunpack.c.h.b16 %v3916
    %v4577 = vunpack.c.l.b16 %v3917
    %v4578 = vunpack.c.h.b16 %v3917
    %v4579 = vunpack.c.l.b16 %v3918
    %v4580 = vunpack.c.h.b16 %v3918
    %v4581 = vunpack.c.l.b16 %v3919
    %v4582 = vunpack.c.h.b16 %v3919
    %v4583 = vunpack.c.l.b16 %v3920
    %v4584 = vunpack.c.h.b16 %v3920
    %v4585 = vunpack.c.l.b16 %v3921
    %v4586 = vunpack.c.h.b16 %v3921
    %v4587 = vunpack.c.l.b16 %v3922
    %v4588 = vunpack.c.h.b16 %v3922
    %v4589 = vunpack.c.l.b16 %v3923
    %v4590 = vunpack.c.h.b16 %v3923
    %v4591 = vunpack.c.l.b16 %v3924
    %v4592 = vunpack.c.h.b16 %v3924
    %v4593 = vunpack.c.l.b16 %v3925
    %v4594 = vunpack.c.h.b16 %v3925
    %v4595 = vunpack.c.l.b16 %v3926
    %v4596 = vunpack.c.h.b16 %v3926
    %v4597 = vunpack.c.l.b16 %v3927
    %v4598 = vunpack.c.h.b16 %v3927
    %v4599 = vunpack.c.l.b16 %v3928
    %v4600 = vunpack.c.h.b16 %v3928
    %v4601 = vunpack.c.l.b16 %v3929
    %v4602 = vunpack.c.h.b16 %v3929
    %v4603 = vunpack.c.l.b16 %v3930
    %v4604 = vunpack.c.h.b16 %v3930
    %v4605 = vunpack.c.l.b16 %v3931
    %v4606 = vunpack.c.h.b16 %v3931
    %v4607 = vunpack.c.l.b16 %v3932
    %v4608 = vunpack.c.h.b16 %v3932
    %v4609 = vunpack.c.l.b16 %v3933
    %v4610 = vunpack.c.h.b16 %v3933
    %v4611 = vunpack.c.l.b16 %v3934
    %v4612 = vunpack.c.h.b16 %v3934
    %v4613 = vunpack.c.l.b16 %v3935
    %v4614 = vunpack.c.h.b16 %v3935
    %v4615 = vunpack.c.l.b16 %v3936
    %v4616 = vunpack.c.h.b16 %v3936
    %v4617 = vunpack.c.l.b16 %v3937
    %v4618 = vunpack.c.h.b16 %v3937
    %v4619 = vunpack.c.l.b16 %v3938
    %v4620 = vunpack.c.h.b16 %v3938
    %v4621 = vunpack.c.l.b16 %v3939
    %v4622 = vunpack.c.h.b16 %v3939
    %v4623 = vunpack.c.l.b16 %v3940
    %v4624 = vunpack.c.h.b16 %v3940
    %v4625 = vunpack.c.l.b16 %v3941
    %v4626 = vunpack.c.h.b16 %v3941
    %v4627 = vunpack.c.l.b16 %v3942
    %v4628 = vunpack.c.h.b16 %v3942
    %v4629 = vunpack.c.l.b16 %v3943
    %v4630 = vunpack.c.h.b16 %v3943
    %v4631 = vunpack.c.l.b16 %v3944
    %v4632 = vunpack.c.h.b16 %v3944
    %v4633 = vunpack.c.l.b16 %v3945
    %v4634 = vunpack.c.h.b16 %v3945
    %v4635 = vunpack.c.l.b16 %v3946
    %v4636 = vunpack.c.h.b16 %v3946
    %v4637 = vunpack.c.l.b16 %v3947
    %v4638 = vunpack.c.h.b16 %v3947
    %v4639 = vunpack.c.l.b16 %v3948
    %v4640 = vunpack.c.h.b16 %v3948
    %v4641 = vunpack.c.l.b16 %v3949
    %v4642 = vunpack.c.h.b16 %v3949
    %v4643 = vunpack.c.l.b16 %v3950
    %v4644 = vunpack.c.h.b16 %v3950
    %v4645 = vunpack.c.l.b16 %v3951
    %v4646 = vunpack.c.h.b16 %v3951
    %v4647 = vunpack.c.l.b16 %v3952
    %v4648 = vunpack.c.h.b16 %v3952
    %v4649 = vunpack.c.l.b16 %v3953
    %v4650 = vunpack.c.h.b16 %v3953
    %v4651 = vunpack.c.l.b16 %v3954
    %v4652 = vunpack.c.h.b16 %v3954
    %v4653 = vunpack.c.l.b16 %v3955
    %v4654 = vunpack.c.h.b16 %v3955
    %v4655 = vunpack.c.l.b16 %v3956
    %v4656 = vunpack.c.h.b16 %v3956
    %v4657 = vunpack.c.l.b16 %v3957
    %v4658 = vunpack.c.h.b16 %v3957
    %v4659 = vunpack.c.l.b16 %v3958
    %v4660 = vunpack.c.h.b16 %v3958
    %v4661 = vunpack.c.l.b16 %v3959
    %v4662 = vunpack.c.h.b16 %v3959
    %v4663 = vunpack.c.l.b16 %v3960
    %v4664 = vunpack.c.h.b16 %v3960
    %v4665 = vunpack.c.l.b16 %v3961
    %v4666 = vunpack.c.h.b16 %v3961
    %v4667 = vunpack.c.l.b16 %v3962
    %v4668 = vunpack.c.h.b16 %v3962
    %v4669 = vunpack.c.l.b16 %v3963
    %v4670 = vunpack.c.h.b16 %v3963
    %v4671 = vunpack.c.l.b16 %v3964
    %v4672 = vunpack.c.h.b16 %v3964
    %v4673 = vunpack.c.l.b16 %v3965
    %v4674 = vunpack.c.h.b16 %v3965
    %v4675 = vunpack.c.l.b16 %v3966
    %v4676 = vunpack.c.h.b16 %v3966
    %v4677 = vunpack.c.l.b16 %v3967
    %v4678 = vunpack.c.h.b16 %v3967
    %v4679 = vunpack.c.l.b16 %v3968
    %v4680 = vunpack.c.h.b16 %v3968
    %v4681 = vunpack.c.l.b16 %v3969
    %v4682 = vunpack.c.h.b16 %v3969
    %v4683 = vunpack.c.l.b16 %v3970
    %v4684 = vunpack.c.h.b16 %v3970
    %v4685 = vunpack.c.l.b16 %v3971
    %v4686 = vunpack.c.h.b16 %v3971
    %v4687 = vunpack.c.l.b16 %v3972
    %v4688 = vunpack.c.h.b16 %v3972
    %v4689 = vunpack.c.l.b16 %v3973
    %v4690 = vunpack.c.h.b16 %v3973
    %v4691 = vunpack.c.l.b16 %v3974
    %v4692 = vunpack.c.h.b16 %v3974
    %v4693 = vunpack.c.l.b16 %v3975
    %v4694 = vunpack.c.h.b16 %v3975
    %v4695 = vunpack.c.l.b16 %v3976
    %v4696 = vunpack.c.h.b16 %v3976
    %v4697 = vunpack.c.l.b16 %v3977
    %v4698 = vunpack.c.h.b16 %v3977
    %v4699 = vunpack.c.l.b16 %v3978
    %v4700 = vunpack.c.h.b16 %v3978
    %v4701 = vunpack.c.l.b16 %v3979
    %v4702 = vunpack.c.h.b16 %v3979
    %v4703 = vunpack.c.l.b16 %v3980
    %v4704 = vunpack.c.h.b16 %v3980
    %v4705 = vunpack.c.l.b16 %v3981
    %v4706 = vunpack.c.h.b16 %v3981
    %v4707 = vunpack.c.l.b16 %v3982
    %v4708 = vunpack.c.h.b16 %v3982
    %v4709 = vunpack.c.l.b16 %v3983
    %v4710 = vunpack.c.h.b16 %v3983
    %v4711 = vunpack.c.l.b16 %v3984
    %v4712 = vunpack.c.h.b16 %v3984
    %v4713 = vunpack.c.l.b16 %v3985
    %v4714 = vunpack.c.h.b16 %v3985
    %v4715 = vunpack.c.l.b16 %v3986
    %v4716 = vunpack.c.h.b16 %v3986
    %v4717 = vunpack.c.l.b16 %v3987
    %v4718 = vunpack.c.h.b16 %v3987
    %v4719 = vunpack.c.l.b16 %v3988
    %v4720 = vunpack.c.h.b16 %v3988
    %v4721 = vunpack.c.l.b16 %v3989
    %v4722 = vunpack.c.h.b16 %v3989
    %v4723 = vunpack.c.l.b16 %v3990
    %v4724 = vunpack.c.h.b16 %v3990
    %v4725 = vunpack.c.l.b16 %v3991
    %v4726 = vunpack.c.h.b16 %v3991
    %v4727 = vunpack.c.l.b16 %v3992
    %v4728 = vunpack.c.h.b16 %v3992
    %v4729 = vunpack.c.l.b16 %v3993
    %v4730 = vunpack.c.h.b16 %v3993
    %v4731 = vunpack.c.l.b16 %v3994
    %v4732 = vunpack.c.h.b16 %v3994
    %v4733 = vunpack.c.l.b16 %v3995
    %v4734 = vunpack.c.h.b16 %v3995
    %v4735 = vunpack.c.l.b16 %v3996
    %v4736 = vunpack.c.h.b16 %v3996
    %v4737 = vunpack.c.l.b16 %v3997
    %v4738 = vunpack.c.h.b16 %v3997
    %v4739 = vunpack.c.l.b16 %v3998
    %v4740 = vunpack.c.h.b16 %v3998
    %v4741 = vunpack.c.l.b16 %v3999
    %v4742 = vunpack.c.h.b16 %v3999
    %v4743 = vunpack.c.l.b16 %v4000
    %v4744 = vunpack.c.h.b16 %v4000
    %v4745 = vunpack.c.l.b16 %v4001
    %v4746 = vunpack.c.h.b16 %v4001
    %v4747 = vunpack.c.l.b16 %v4002
    %v4748 = vunpack.c.h.b16 %v4002
    %v4749 = vunpack.c.l.b16 %v4003
    %v4750 = vunpack.c.h.b16 %v4003
    %v4751 = vunpack.c.l.b16 %v4004
    %v4752 = vunpack.c.h.b16 %v4004
    %v4753 = vunpack.c.l.b16 %v4005
    %v4754 = vunpack.c.h.b16 %v4005
    %v4755 = vunpack.c.l.b16 %v4006
    %v4756 = vunpack.c.h.b16 %v4006
    %v4757 = vunpack.c.l.b16 %v4007
    %v4758 = vunpack.c.h.b16 %v4007
    %v4759 = vunpack.c.l.b16 %v4008
    %v4760 = vunpack.c.h.b16 %v4008
    %v4761 = vunpack.c.l.b16 %v4009
    %v4762 = vunpack.c.h.b16 %v4009
    %v4763 = vunpack.c.l.b16 %v4010
    %v4764 = vunpack.c.h.b16 %v4010
    %v4765 = vunpack.c.l.b16 %v4011
    %v4766 = vunpack.c.h.b16 %v4011
    %v4767 = vunpack.c.l.b16 %v4012
    %v4768 = vunpack.c.h.b16 %v4012
    %v4769 = vunpack.c.l.b16 %v4013
    %v4770 = vunpack.c.h.b16 %v4013
    %v4771 = vunpack.c.l.b16 %v4014
    %v4772 = vunpack.c.h.b16 %v4014
    %v4773 = vunpack.c.l.b16 %v4015
    %v4774 = vunpack.c.h.b16 %v4015
    %v4775 = vunpack.c.l.b16 %v4016
    %v4776 = vunpack.c.h.b16 %v4016
    %v4777 = vunpack.c.l.b16 %v4017
    %v4778 = vunpack.c.h.b16 %v4017
    %v4779 = vunpack.c.l.b16 %v4018
    %v4780 = vunpack.c.h.b16 %v4018
    %v4781 = vunpack.c.l.b16 %v4019
    %v4782 = vunpack.c.h.b16 %v4019
    %v4783 = vunpack.c.l.b16 %v4020
    %v4784 = vunpack.c.h.b16 %v4020
    %v4785 = vunpack.c.l.b16 %v4021
    %v4786 = vunpack.c.h.b16 %v4021
    %v4787 = vunpack.c.l.b16 %v4022
    %v4788 = vunpack.c.h.b16 %v4022
    %v4789 = vunpack.c.l.b16 %v4023
    %v4790 = vunpack.c.h.b16 %v4023
    %v4791 = vunpack.c.l.b16 %v4024
    %v4792 = vunpack.c.h.b16 %v4024
    %v4793 = vunpack.c.l.b16 %v4025
    %v4794 = vunpack.c.h.b16 %v4025
    %v4795 = vunpack.c.l.b16 %v4026
    %v4796 = vunpack.c.h.b16 %v4026
    %v4797 = vunpack.c.l.b16 %v4027
    %v4798 = vunpack.c.h.b16 %v4027
    %v4799 = vunpack.c.l.b16 %v4028
    %v4800 = vunpack.c.h.b16 %v4028
    %v4801 = vunpack.c.l.b16 %v4029
    %v4802 = vunpack.c.h.b16 %v4029
    %v4803 = vunpack.c.l.b16 %v4030
    %v4804 = vunpack.c.h.b16 %v4030
    %v4805 = vunpack.c.l.b16 %v4031
    %v4806 = vunpack.c.h.b16 %v4031
    %v4807 = vunpack.c.l.b16 %v4032
    %v4808 = vunpack.c.h.b16 %v4032
    %v4809 = vunpack.c.l.b16 %v4033
    %v4810 = vunpack.c.h.b16 %v4033
    %v4811 = vunpack.c.l.b16 %v4034
    %v4812 = vunpack.c.h.b16 %v4034
    %v4813 = vpack.c.b16 %v4305, %v4301
    %v4814 = vpack.c.b16 %v4306, %v4302
    %v4815 = vpack.c.b16 %v4307, %v4303
    %v4816 = vpack.c.b16 %v4308, %v4304
    %v4817 = vpack.c.b16 %v4313, %v4309
    %v4818 = vpack.c.b16 %v4314, %v4310
    %v4819 = vpack.c.b16 %v4315, %v4311
    %v4820 = vpack.c.b16 %v4316, %v4312
    %v4821 = vpack.c.b16 %v4321, %v4317
    %v4822 = vpack.c.b16 %v4322, %v4318
    %v4823 = vpack.c.b16 %v4323, %v4319
    %v4824 = vpack.c.b16 %v4324, %v4320
    %v4825 = vpack.c.b16 %v4329, %v4325
    %v4826 = vpack.c.b16 %v4330, %v4326
    %v4827 = vpack.c.b16 %v4331, %v4327
    %v4828 = vpack.c.b16 %v4332, %v4328
    %v4829 = vpack.c.b16 %v4337, %v4333
    %v4830 = vpack.c.b16 %v4338, %v4334
    %v4831 = vpack.c.b16 %v4339, %v4335
    %v4832 = vpack.c.b16 %v4340, %v4336
    %v4833 = vpack.c.b16 %v4345, %v4341
    %v4834 = vpack.c.b16 %v4346, %v4342
    %v4835 = vpack.c.b16 %v4347, %v4343
    %v4836 = vpack.c.b16 %v4348, %v4344
    %v4837 = vpack.c.b16 %v4353, %v4349
    %v4838 = vpack.c.b16 %v4354, %v4350
    %v4839 = vpack.c.b16 %v4355, %v4351
    %v4840 = vpack.c.b16 %v4356, %v4352
    %v4841 = vpack.c.b16 %v4361, %v4357
    %v4842 = vpack.c.b16 %v4362, %v4358
    %v4843 = vpack.c.b16 %v4363, %v4359
    %v4844 = vpack.c.b16 %v4364, %v4360
    %v4845 = vpack.c.b16 %v4369, %v4365
    %v4846 = vpack.c.b16 %v4370, %v4366
    %v4847 = vpack.c.b16 %v4371, %v4367
    %v4848 = vpack.c.b16 %v4372, %v4368
    %v4849 = vpack.c.b16 %v4377, %v4373
    %v4850 = vpack.c.b16 %v4378, %v4374
    %v4851 = vpack.c.b16 %v4379, %v4375
    %v4852 = vpack.c.b16 %v4380, %v4376
    %v4853 = vpack.c.b16 %v4385, %v4381
    %v4854 = vpack.c.b16 %v4386, %v4382
    %v4855 = vpack.c.b16 %v4387, %v4383
    %v4856 = vpack.c.b16 %v4388, %v4384
    %v4857 = vpack.c.b16 %v4393, %v4389
    %v4858 = vpack.c.b16 %v4394, %v4390
    %v4859 = vpack.c.b16 %v4395, %v4391
    %v4860 = vpack.c.b16 %v4396, %v4392
    %v4861 = vpack.c.b16 %v4401, %v4397
    %v4862 = vpack.c.b16 %v4402, %v4398
    %v4863 = vpack.c.b16 %v4403, %v4399
    %v4864 = vpack.c.b16 %v4404, %v4400
    %v4865 = vpack.c.b16 %v4409, %v4405
    %v4866 = vpack.c.b16 %v4410, %v4406
    %v4867 = vpack.c.b16 %v4411, %v4407
    %v4868 = vpack.c.b16 %v4412, %v4408
    %v4869 = vpack.c.b16 %v4417, %v4413
    %v4870 = vpack.c.b16 %v4418, %v4414
    %v4871 = vpack.c.b16 %v4419, %v4415
    %v4872 = vpack.c.b16 %v4420, %v4416
    %v4873 = vpack.c.b16 %v4425, %v4421
    %v4874 = vpack.c.b16 %v4426, %v4422
    %v4875 = vpack.c.b16 %v4427, %v4423
    %v4876 = vpack.c.b16 %v4428, %v4424
    %v4877 = vpack.c.b16 %v4433, %v4429
    %v4878 = vpack.c.b16 %v4434, %v4430
    %v4879 = vpack.c.b16 %v4435, %v4431
    %v4880 = vpack.c.b16 %v4436, %v4432
    %v4881 = vpack.c.b16 %v4441, %v4437
    %v4882 = vpack.c.b16 %v4442, %v4438
    %v4883 = vpack.c.b16 %v4443, %v4439
    %v4884 = vpack.c.b16 %v4444, %v4440
    %v4885 = vpack.c.b16 %v4449, %v4445
    %v4886 = vpack.c.b16 %v4450, %v4446
    %v4887 = vpack.c.b16 %v4451, %v4447
    %v4888 = vpack.c.b16 %v4452, %v4448
    %v4889 = vpack.c.b16 %v4457, %v4453
    %v4890 = vpack.c.b16 %v4458, %v4454
    %v4891 = vpack.c.b16 %v4459, %v4455
    %v4892 = vpack.c.b16 %v4460, %v4456
    %v4893 = vpack.c.b16 %v4465, %v4461
    %v4894 = vpack.c.b16 %v4466, %v4462
    %v4895 = vpack.c.b16 %v4467, %v4463
    %v4896 = vpack.c.b16 %v4468, %v4464
    %v4897 = vpack.c.b16 %v4473, %v4469
    %v4898 = vpack.c.b16 %v4474, %v4470
    %v4899 = vpack.c.b16 %v4475, %v4471
    %v4900 = vpack.c.b16 %v4476, %v4472
    %v4901 = vpack.c.b16 %v4481, %v4477
    %v4902 = vpack.c.b16 %v4482, %v4478
    %v4903 = vpack.c.b16 %v4483, %v4479
    %v4904 = vpack.c.b16 %v4484, %v4480
    %v4905 = vpack.c.b16 %v4489, %v4485
    %v4906 = vpack.c.b16 %v4490, %v4486
    %v4907 = vpack.c.b16 %v4491, %v4487
    %v4908 = vpack.c.b16 %v4492, %v4488
    %v4909 = vpack.c.b16 %v4497, %v4493
    %v4910 = vpack.c.b16 %v4498, %v4494
    %v4911 = vpack.c.b16 %v4499, %v4495
    %v4912 = vpack.c.b16 %v4500, %v4496
    %v4913 = vpack.c.b16 %v4505, %v4501
    %v4914 = vpack.c.b16 %v4506, %v4502
    %v4915 = vpack.c.b16 %v4507, %v4503
    %v4916 = vpack.c.b16 %v4508, %v4504
    %v4917 = vpack.c.b16 %v4513, %v4509
    %v4918 = vpack.c.b16 %v4514, %v4510
    %v4919 = vpack.c.b16 %v4515, %v4511
    %v4920 = vpack.c.b16 %v4516, %v4512
    %v4921 = vpack.c.b16 %v4521, %v4517
    %v4922 = vpack.c.b16 %v4522, %v4518
    %v4923 = vpack.c.b16 %v4523, %v4519
    %v4924 = vpack.c.b16 %v4524, %v4520
    %v4925 = vpack.c.b16 %v4529, %v4525
    %v4926 = vpack.c.b16 %v4530, %v4526
    %v4927 = vpack.c.b16 %v4531, %v4527
    %v4928 = vpack.c.b16 %v4532, %v4528
    %v4929 = vpack.c.b16 %v4537, %v4533
    %v4930 = vpack.c.b16 %v4538, %v4534
    %v4931 = vpack.c.b16 %v4539, %v4535
    %v4932 = vpack.c.b16 %v4540, %v4536
    %v4933 = vpack.c.b16 %v4545, %v4541
    %v4934 = vpack.c.b16 %v4546, %v4542
    %v4935 = vpack.c.b16 %v4547, %v4543
    %v4936 = vpack.c.b16 %v4548, %v4544
    %v4937 = vpack.c.b16 %v4553, %v4549
    %v4938 = vpack.c.b16 %v4554, %v4550
    %v4939 = vpack.c.b16 %v4555, %v4551
    %v4940 = vpack.c.b16 %v4556, %v4552
    %v4941 = vpack.c.b16 %v4561, %v4557
    %v4942 = vpack.c.b16 %v4562, %v4558
    %v4943 = vpack.c.b16 %v4563, %v4559
    %v4944 = vpack.c.b16 %v4564, %v4560
    %v4945 = vpack.c.b16 %v4569, %v4565
    %v4946 = vpack.c.b16 %v4570, %v4566
    %v4947 = vpack.c.b16 %v4571, %v4567
    %v4948 = vpack.c.b16 %v4572, %v4568
    %v4949 = vpack.c.b16 %v4577, %v4573
    %v4950 = vpack.c.b16 %v4578, %v4574
    %v4951 = vpack.c.b16 %v4579, %v4575
    %v4952 = vpack.c.b16 %v4580, %v4576
    %v4953 = vpack.c.b16 %v4585, %v4581
    %v4954 = vpack.c.b16 %v4586, %v4582
    %v4955 = vpack.c.b16 %v4587, %v4583
    %v4956 = vpack.c.b16 %v4588, %v4584
    %v4957 = vpack.c.b16 %v4593, %v4589
    %v4958 = vpack.c.b16 %v4594, %v4590
    %v4959 = vpack.c.b16 %v4595, %v4591
    %v4960 = vpack.c.b16 %v4596, %v4592
    %v4961 = vpack.c.b16 %v4601, %v4597
    %v4962 = vpack.c.b16 %v4602, %v4598
    %v4963 = vpack.c.b16 %v4603, %v4599
    %v4964 = vpack.c.b16 %v4604, %v4600
    %v4965 = vpack.c.b16 %v4609, %v4605
    %v4966 = vpack.c.b16 %v4610, %v4606
    %v4967 = vpack.c.b16 %v4611, %v4607
    %v4968 = vpack.c.b16 %v4612, %v4608
    %v4969 = vpack.c.b16 %v4617, %v4613
    %v4970 = vpack.c.b16 %v4618, %v4614
    %v4971 = vpack.c.b16 %v4619, %v4615
    %v4972 = vpack.c.b16 %v4620, %v4616
    %v4973 = vpack.c.b16 %v4625, %v4621
    %v4974 = vpack.c.b16 %v4626, %v4622
    %v4975 = vpack.c.b16 %v4627, %v4623
    %v4976 = vpack.c.b16 %v4628, %v4624
    %v4977 = vpack.c.b16 %v4633, %v4629
    %v4978 = vpack.c.b16 %v4634, %v4630
    %v4979 = vpack.c.b16 %v4635, %v4631
    %v4980 = vpack.c.b16 %v4636, %v4632
    %v4981 = vpack.c.b16 %v4641, %v4637
    %v4982 = vpack.c.b16 %v4642, %v4638
    %v4983 = vpack.c.b16 %v4643, %v4639
    %v4984 = vpack.c.b16 %v4644, %v4640
    %v4985 = vpack.c.b16 %v4649, %v4645
    %v4986 = vpack.c.b16 %v4650, %v4646
    %v4987 = vpack.c.b16 %v4651, %v4647
    %v4988 = vpack.c.b16 %v4652, %v4648
    %v4989 = vpack.c.b16 %v4657, %v4653
    %v4990 = vpack.c.b16 %v4658, %v4654
    %v4991 = vpack.c.b16 %v4659, %v4655
    %v4992 = vpack.c.b16 %v4660, %v4656
    %v4993 = vpack.c.b16 %v4665, %v4661
    %v4994 = vpack.c.b16 %v4666, %v4662
    %v4995 = vpack.c.b16 %v4667, %v4663
    %v4996 = vpack.c.b16 %v4668, %v4664
    %v4997 = vpack.c.b16 %v4673, %v4669
    %v4998 = vpack.c.b16 %v4674, %v4670
    %v4999 = vpack.c.b16 %v4675, %v4671
    %v5000 = vpack.c.b16 %v4676, %v4672
    %v5001 = vpack.c.b16 %v4681, %v4677
    %v5002 = vpack.c.b16 %v4682, %v4678
    %v5003 = vpack.c.b16 %v4683, %v4679
    %v5004 = vpack.c.b16 %v4684, %v4680
    %v5005 = vpack.c.b16 %v4689, %v4685
    %v5006 = vpack.c.b16 %v4690, %v4686
    %v5007 = vpack.c.b16 %v4691, %v4687
    %v5008 = vpack.c.b16 %v4692, %v4688
    %v5009 = vpack.c.b16 %v4697, %v4693
    %v5010 = vpack.c.b16 %v4698, %v4694
    %v5011 = vpack.c.b16 %v4699, %v4695
    %v5012 = vpack.c.b16 %v4700, %v4696
    %v5013 = vpack.c.b16 %v4705, %v4701
    %v5014 = vpack.c.b16 %v4706, %v4702
    %v5015 = vpack.c.b16 %v4707, %v4703
    %v5016 = vpack.c.b16 %v4708, %v4704
    %v5017 = vpack.c.b16 %v4713, %v4709
    %v5018 = vpack.c.b16 %v4714, %v4710
    %v5019 = vpack.c.b16 %v4715, %v4711
    %v5020 = vpack.c.b16 %v4716, %v4712
    %v5021 = vpack.c.b16 %v4721, %v4717
    %v5022 = vpack.c.b16 %v4722, %v4718
    %v5023 = vpack.c.b16 %v4723, %v4719
    %v5024 = vpack.c.b16 %v4724, %v4720
    %v5025 = vpack.c.b16 %v4729, %v4725
    %v5026 = vpack.c.b16 %v4730, %v4726
    %v5027 = vpack.c.b16 %v4731, %v4727
    %v5028 = vpack.c.b16 %v4732, %v4728
    %v5029 = vpack.c.b16 %v4737, %v4733
    %v5030 = vpack.c.b16 %v4738, %v4734
    %v5031 = vpack.c.b16 %v4739, %v4735
    %v5032 = vpack.c.b16 %v4740, %v4736
    %v5033 = vpack.c.b16 %v4745, %v4741
    %v5034 = vpack.c.b16 %v4746, %v4742
    %v5035 = vpack.c.b16 %v4747, %v4743
    %v5036 = vpack.c.b16 %v4748, %v4744
    %v5037 = vpack.c.b16 %v4753, %v4749
    %v5038 = vpack.c.b16 %v4754, %v4750
    %v5039 = vpack.c.b16 %v4755, %v4751
    %v5040 = vpack.c.b16 %v4756, %v4752
    %v5041 = vpack.c.b16 %v4761, %v4757
    %v5042 = vpack.c.b16 %v4762, %v4758
    %v5043 = vpack.c.b16 %v4763, %v4759
    %v5044 = vpack.c.b16 %v4764, %v4760
    %v5045 = vpack.c.b16 %v4769, %v4765
    %v5046 = vpack.c.b16 %v4770, %v4766
    %v5047 = vpack.c.b16 %v4771, %v4767
    %v5048 = vpack.c.b16 %v4772, %v4768
    %v5049 = vpack.c.b16 %v4777, %v4773
    %v5050 = vpack.c.b16 %v4778, %v4774
    %v5051 = vpack.c.b16 %v4779, %v4775
    %v5052 = vpack.c.b16 %v4780, %v4776
    %v5053 = vpack.c.b16 %v4785, %v4781
    %v5054 = vpack.c.b16 %v4786, %v4782
    %v5055 = vpack.c.b16 %v4787, %v4783
    %v5056 = vpack.c.b16 %v4788, %v4784
    %v5057 = vpack.c.b16 %v4793, %v4789
    %v5058 = vpack.c.b16 %v4794, %v4790
    %v5059 = vpack.c.b16 %v4795, %v4791
    %v5060 = vpack.c.b16 %v4796, %v4792
    %v5061 = vpack.c.b16 %v4801, %v4797
    %v5062 = vpack.c.b16 %v4802, %v4798
    %v5063 = vpack.c.b16 %v4803, %v4799
    %v5064 = vpack.c.b16 %v4804, %v4800
    %v5065 = vpack.c.b16 %v4809, %v4805
    %v5066 = vpack.c.b16 %v4810, %v4806
    %v5067 = vpack.c.b16 %v4811, %v4807
    %v5068 = vpack.c.b16 %v4812, %v4808
    %5325 = vmatpush.bf16.msra.mxu0 %v4841
    %5326 = vmatpush.bf16.msra.mxu0 %v4837
    %5327 = vmatpush.bf16.msra.mxu0 %v4833
    %5328 = vmatpush.bf16.msra.mxu0 %v4829
    %5329 = vmatpush.bf16.msra.mxu0 %v4825
    %5330 = vmatpush.bf16.msra.mxu0 %v4821
    %5331 = vmatpush.bf16.msra.mxu0 %v4817
    %5332 = vmatpush.bf16.msra.mxu0 %v4813
    %5333 = vmatmul.bf16.gmra.mxu0 %v3771
    %v5334 = vpop.f32.mrf.mxu0
    %v5335 = vadd.f32 %v4037, %v5334
    %v5336 = vpop.f32.mrf.mxu0
    %v5337 = vadd.f32 %v4037, %v5336
    %5338 = vdwg.mxu0
    %5339 = vmatpush.bf16.msra.mxu0 %v4873
    %5340 = vmatpush.bf16.msra.mxu0 %v4869
    %5341 = vmatpush.bf16.msra.mxu0 %v4865
    %5342 = vmatpush.bf16.msra.mxu0 %v4861
    %5343 = vmatpush.bf16.msra.mxu0 %v4857
    %5344 = vmatpush.bf16.msra.mxu0 %v4853
    %5345 = vmatpush.bf16.msra.mxu0 %v4849
    %5346 = vmatpush.bf16.msra.mxu0 %v4845
    %5347 = vmatmul.bf16.gmra.mxu0 %v3772
    %v5348 = vpop.f32.mrf.mxu0
    %v5349 = vadd.f32 %v5335, %v5348
    %v5350 = vpop.f32.mrf.mxu0
    %v5351 = vadd.f32 %v5337, %v5350
    %5352 = vdwg.mxu0
    %5353 = vmatpush.bf16.msra.mxu0 %v4905
    %5354 = vmatpush.bf16.msra.mxu0 %v4901
    %5355 = vmatpush.bf16.msra.mxu0 %v4897
    %5356 = vmatpush.bf16.msra.mxu0 %v4893
    %5357 = vmatpush.bf16.msra.mxu0 %v4889
    %5358 = vmatpush.bf16.msra.mxu0 %v4885
    %5359 = vmatpush.bf16.msra.mxu0 %v4881
    %5360 = vmatpush.bf16.msra.mxu0 %v4877
    %5361 = vmatmul.bf16.gmra.mxu0 %v3773
    %v5362 = vpop.f32.mrf.mxu0
    %v5363 = vadd.f32 %v5349, %v5362
    %v5364 = vpop.f32.mrf.mxu0
    %v5365 = vadd.f32 %v5351, %v5364
    %5366 = vdwg.mxu0
    %5367 = vmatpush.bf16.msra.mxu0 %v4937
    %5368 = vmatpush.bf16.msra.mxu0 %v4933
    %5369 = vmatpush.bf16.msra.mxu0 %v4929
    %5370 = vmatpush.bf16.msra.mxu0 %v4925
    %5371 = vmatpush.bf16.msra.mxu0 %v4921
    %5372 = vmatpush.bf16.msra.mxu0 %v4917
    %5373 = vmatpush.bf16.msra.mxu0 %v4913
    %5374 = vmatpush.bf16.msra.mxu0 %v4909
    %5375 = vmatmul.bf16.gmra.mxu0 %v3774
    %v5376 = vpop.f32.mrf.mxu0
    %v5377 = vadd.f32 %v5363, %v5376
    %v5378 = vpop.f32.mrf.mxu0
    %v5379 = vadd.f32 %v5365, %v5378
    %5380 = vdwg.mxu0
    %5381 = vmatpush.bf16.msra.mxu0 %v4969
    %5382 = vmatpush.bf16.msra.mxu0 %v4965
    %5383 = vmatpush.bf16.msra.mxu0 %v4961
    %5384 = vmatpush.bf16.msra.mxu0 %v4957
    %5385 = vmatpush.bf16.msra.mxu0 %v4953
    %5386 = vmatpush.bf16.msra.mxu0 %v4949
    %5387 = vmatpush.bf16.msra.mxu0 %v4945
    %5388 = vmatpush.bf16.msra.mxu0 %v4941
    %5389 = vmatmul.bf16.gmra.mxu0 %v3775
    %v5390 = vpop.f32.mrf.mxu0
    %v5391 = vadd.f32 %v5377, %v5390
    %v5392 = vpop.f32.mrf.mxu0
    %v5393 = vadd.f32 %v5379, %v5392
    %5394 = vdwg.mxu0
    %5395 = vmatpush.bf16.msra.mxu0 %v5001
    %5396 = vmatpush.bf16.msra.mxu0 %v4997
    %5397 = vmatpush.bf16.msra.mxu0 %v4993
    %5398 = vmatpush.bf16.msra.mxu0 %v4989
    %5399 = vmatpush.bf16.msra.mxu0 %v4985
    %5400 = vmatpush.bf16.msra.mxu0 %v4981
    %5401 = vmatpush.bf16.msra.mxu0 %v4977
    %5402 = vmatpush.bf16.msra.mxu0 %v4973
    %5403 = vmatmul.bf16.gmra.mxu0 %v3776
    %v5404 = vpop.f32.mrf.mxu0
    %v5405 = vadd.f32 %v5391, %v5404
    %v5406 = vpop.f32.mrf.mxu0
    %v5407 = vadd.f32 %v5393, %v5406
    %5408 = vdwg.mxu0
    %5409 = vmatpush.bf16.msra.mxu0 %v5033
    %5410 = vmatpush.bf16.msra.mxu0 %v5029
    %5411 = vmatpush.bf16.msra.mxu0 %v5025
    %5412 = vmatpush.bf16.msra.mxu0 %v5021
    %5413 = vmatpush.bf16.msra.mxu0 %v5017
    %5414 = vmatpush.bf16.msra.mxu0 %v5013
    %5415 = vmatpush.bf16.msra.mxu0 %v5009
    %5416 = vmatpush.bf16.msra.mxu0 %v5005
    %5417 = vmatmul.bf16.gmra.mxu0 %v3777
    %v5418 = vpop.f32.mrf.mxu0
    %v5419 = vadd.f32 %v5405, %v5418
    %v5420 = vpop.f32.mrf.mxu0
    %v5421 = vadd.f32 %v5407, %v5420
    %5422 = vdwg.mxu0
    %5423 = vmatpush.bf16.msra.mxu0 %v5065
    %5424 = vmatpush.bf16.msra.mxu0 %v5061
    %5425 = vmatpush.bf16.msra.mxu0 %v5057
    %5426 = vmatpush.bf16.msra.mxu0 %v5053
    %5427 = vmatpush.bf16.msra.mxu0 %v5049
    %5428 = vmatpush.bf16.msra.mxu0 %v5045
    %5429 = vmatpush.bf16.msra.mxu0 %v5041
    %5430 = vmatpush.bf16.msra.mxu0 %v5037
    %5431 = vmatmul.bf16.gmra.mxu0 %v3778
    %v5432 = vpop.f32.mrf.mxu0
    %v5433 = vadd.f32 %v5419, %v5432
    %v5434 = vpop.f32.mrf.mxu0
    %v5435 = vadd.f32 %v5421, %v5434
    %5436 = vdwg.mxu0
    %5437 = vmatpush.bf16.msra.mxu0 %v4842
    %5438 = vmatpush.bf16.msra.mxu0 %v4838
    %5439 = vmatpush.bf16.msra.mxu0 %v4834
    %5440 = vmatpush.bf16.msra.mxu0 %v4830
    %5441 = vmatpush.bf16.msra.mxu0 %v4826
    %5442 = vmatpush.bf16.msra.mxu0 %v4822
    %5443 = vmatpush.bf16.msra.mxu0 %v4818
    %5444 = vmatpush.bf16.msra.mxu0 %v4814
    %5445 = vmatmul.bf16.gmra.mxu0 %v3771
    %v5446 = vpop.f32.mrf.mxu0
    %v5447 = vadd.f32 %v4038, %v5446
    %v5448 = vpop.f32.mrf.mxu0
    %v5449 = vadd.f32 %v4038, %v5448
    %5450 = vdwg.mxu0
    %5451 = vmatpush.bf16.msra.mxu0 %v4874
    %5452 = vmatpush.bf16.msra.mxu0 %v4870
    %5453 = vmatpush.bf16.msra.mxu0 %v4866
    %5454 = vmatpush.bf16.msra.mxu0 %v4862
    %5455 = vmatpush.bf16.msra.mxu0 %v4858
    %5456 = vmatpush.bf16.msra.mxu0 %v4854
    %5457 = vmatpush.bf16.msra.mxu0 %v4850
    %5458 = vmatpush.bf16.msra.mxu0 %v4846
    %5459 = vmatmul.bf16.gmra.mxu0 %v3772
    %v5460 = vpop.f32.mrf.mxu0
    %v5461 = vadd.f32 %v5447, %v5460
    %v5462 = vpop.f32.mrf.mxu0
    %v5463 = vadd.f32 %v5449, %v5462
    %5464 = vdwg.mxu0
    %5465 = vmatpush.bf16.msra.mxu0 %v4906
    %5466 = vmatpush.bf16.msra.mxu0 %v4902
    %5467 = vmatpush.bf16.msra.mxu0 %v4898
    %5468 = vmatpush.bf16.msra.mxu0 %v4894
    %5469 = vmatpush.bf16.msra.mxu0 %v4890
    %5470 = vmatpush.bf16.msra.mxu0 %v4886
    %5471 = vmatpush.bf16.msra.mxu0 %v4882
    %5472 = vmatpush.bf16.msra.mxu0 %v4878
    %5473 = vmatmul.bf16.gmra.mxu0 %v3773
    %v5474 = vpop.f32.mrf.mxu0
    %v5475 = vadd.f32 %v5461, %v5474
    %v5476 = vpop.f32.mrf.mxu0
    %v5477 = vadd.f32 %v5463, %v5476
    %5478 = vdwg.mxu0
    %5479 = vmatpush.bf16.msra.mxu0 %v4938
    %5480 = vmatpush.bf16.msra.mxu0 %v4934
    %5481 = vmatpush.bf16.msra.mxu0 %v4930
    %5482 = vmatpush.bf16.msra.mxu0 %v4926
    %5483 = vmatpush.bf16.msra.mxu0 %v4922
    %5484 = vmatpush.bf16.msra.mxu0 %v4918
    %5485 = vmatpush.bf16.msra.mxu0 %v4914
    %5486 = vmatpush.bf16.msra.mxu0 %v4910
    %5487 = vmatmul.bf16.gmra.mxu0 %v3774
    %v5488 = vpop.f32.mrf.mxu0
    %v5489 = vadd.f32 %v5475, %v5488
    %v5490 = vpop.f32.mrf.mxu0
    %v5491 = vadd.f32 %v5477, %v5490
    %5492 = vdwg.mxu0
    %5493 = vmatpush.bf16.msra.mxu0 %v4970
    %5494 = vmatpush.bf16.msra.mxu0 %v4966
    %5495 = vmatpush.bf16.msra.mxu0 %v4962
    %5496 = vmatpush.bf16.msra.mxu0 %v4958
    %5497 = vmatpush.bf16.msra.mxu0 %v4954
    %5498 = vmatpush.bf16.msra.mxu0 %v4950
    %5499 = vmatpush.bf16.msra.mxu0 %v4946
    %5500 = vmatpush.bf16.msra.mxu0 %v4942
    %5501 = vmatmul.bf16.gmra.mxu0 %v3775
    %v5502 = vpop.f32.mrf.mxu0
    %v5503 = vadd.f32 %v5489, %v5502
    %v5504 = vpop.f32.mrf.mxu0
    %v5505 = vadd.f32 %v5491, %v5504
    %5506 = vdwg.mxu0
    %5507 = vmatpush.bf16.msra.mxu0 %v5002
    %5508 = vmatpush.bf16.msra.mxu0 %v4998
    %5509 = vmatpush.bf16.msra.mxu0 %v4994
    %5510 = vmatpush.bf16.msra.mxu0 %v4990
    %5511 = vmatpush.bf16.msra.mxu0 %v4986
    %5512 = vmatpush.bf16.msra.mxu0 %v4982
    %5513 = vmatpush.bf16.msra.mxu0 %v4978
    %5514 = vmatpush.bf16.msra.mxu0 %v4974
    %5515 = vmatmul.bf16.gmra.mxu0 %v3776
    %v5516 = vpop.f32.mrf.mxu0
    %v5517 = vadd.f32 %v5503, %v5516
    %v5518 = vpop.f32.mrf.mxu0
    %v5519 = vadd.f32 %v5505, %v5518
    %5520 = vdwg.mxu0
    %5521 = vmatpush.bf16.msra.mxu0 %v5034
    %5522 = vmatpush.bf16.msra.mxu0 %v5030
    %5523 = vmatpush.bf16.msra.mxu0 %v5026
    %5524 = vmatpush.bf16.msra.mxu0 %v5022
    %5525 = vmatpush.bf16.msra.mxu0 %v5018
    %5526 = vmatpush.bf16.msra.mxu0 %v5014
    %5527 = vmatpush.bf16.msra.mxu0 %v5010
    %5528 = vmatpush.bf16.msra.mxu0 %v5006
    %5529 = vmatmul.bf16.gmra.mxu0 %v3777
    %v5530 = vpop.f32.mrf.mxu0
    %v5531 = vadd.f32 %v5517, %v5530
    %v5532 = vpop.f32.mrf.mxu0
    %v5533 = vadd.f32 %v5519, %v5532
    %5534 = vdwg.mxu0
    %5535 = vmatpush.bf16.msra.mxu0 %v5066
    %5536 = vmatpush.bf16.msra.mxu0 %v5062
    %5537 = vmatpush.bf16.msra.mxu0 %v5058
    %5538 = vmatpush.bf16.msra.mxu0 %v5054
    %5539 = vmatpush.bf16.msra.mxu0 %v5050
    %5540 = vmatpush.bf16.msra.mxu0 %v5046
    %5541 = vmatpush.bf16.msra.mxu0 %v5042
    %5542 = vmatpush.bf16.msra.mxu0 %v5038
    %5543 = vmatmul.bf16.gmra.mxu0 %v3778
    %v5544 = vpop.f32.mrf.mxu0
    %v5545 = vadd.f32 %v5531, %v5544
    %v5546 = vpop.f32.mrf.mxu0
    %v5547 = vadd.f32 %v5533, %v5546
    %5548 = vdwg.mxu0
    %5549 = vmatpush.bf16.msra.mxu0 %v4843
    %5550 = vmatpush.bf16.msra.mxu0 %v4839
    %5551 = vmatpush.bf16.msra.mxu0 %v4835
    %5552 = vmatpush.bf16.msra.mxu0 %v4831
    %5553 = vmatpush.bf16.msra.mxu0 %v4827
    %5554 = vmatpush.bf16.msra.mxu0 %v4823
    %5555 = vmatpush.bf16.msra.mxu0 %v4819
    %5556 = vmatpush.bf16.msra.mxu0 %v4815
    %5557 = vmatmul.bf16.gmra.mxu0 %v3771
    %v5558 = vpop.f32.mrf.mxu0
    %v5559 = vadd.f32 %v4039, %v5558
    %v5560 = vpop.f32.mrf.mxu0
    %v5561 = vadd.f32 %v4039, %v5560
    %5562 = vdwg.mxu0
    %5563 = vmatpush.bf16.msra.mxu0 %v4875
    %5564 = vmatpush.bf16.msra.mxu0 %v4871
    %5565 = vmatpush.bf16.msra.mxu0 %v4867
    %5566 = vmatpush.bf16.msra.mxu0 %v4863
    %5567 = vmatpush.bf16.msra.mxu0 %v4859
    %5568 = vmatpush.bf16.msra.mxu0 %v4855
    %5569 = vmatpush.bf16.msra.mxu0 %v4851
    %5570 = vmatpush.bf16.msra.mxu0 %v4847
    %5571 = vmatmul.bf16.gmra.mxu0 %v3772
    %v5572 = vpop.f32.mrf.mxu0
    %v5573 = vadd.f32 %v5559, %v5572
    %v5574 = vpop.f32.mrf.mxu0
    %v5575 = vadd.f32 %v5561, %v5574
    %5576 = vdwg.mxu0
    %5577 = vmatpush.bf16.msra.mxu0 %v4907
    %5578 = vmatpush.bf16.msra.mxu0 %v4903
    %5579 = vmatpush.bf16.msra.mxu0 %v4899
    %5580 = vmatpush.bf16.msra.mxu0 %v4895
    %5581 = vmatpush.bf16.msra.mxu0 %v4891
    %5582 = vmatpush.bf16.msra.mxu0 %v4887
    %5583 = vmatpush.bf16.msra.mxu0 %v4883
    %5584 = vmatpush.bf16.msra.mxu0 %v4879
    %5585 = vmatmul.bf16.gmra.mxu0 %v3773
    %v5586 = vpop.f32.mrf.mxu0
    %v5587 = vadd.f32 %v5573, %v5586
    %v5588 = vpop.f32.mrf.mxu0
    %v5589 = vadd.f32 %v5575, %v5588
    %5590 = vdwg.mxu0
    %5591 = vmatpush.bf16.msra.mxu0 %v4939
    %5592 = vmatpush.bf16.msra.mxu0 %v4935
    %5593 = vmatpush.bf16.msra.mxu0 %v4931
    %5594 = vmatpush.bf16.msra.mxu0 %v4927
    %5595 = vmatpush.bf16.msra.mxu0 %v4923
    %5596 = vmatpush.bf16.msra.mxu0 %v4919
    %5597 = vmatpush.bf16.msra.mxu0 %v4915
    %5598 = vmatpush.bf16.msra.mxu0 %v4911
    %5599 = vmatmul.bf16.gmra.mxu0 %v3774
    %v5600 = vpop.f32.mrf.mxu0
    %v5601 = vadd.f32 %v5587, %v5600
    %v5602 = vpop.f32.mrf.mxu0
    %v5603 = vadd.f32 %v5589, %v5602
    %5604 = vdwg.mxu0
    %5605 = vmatpush.bf16.msra.mxu0 %v4971
    %5606 = vmatpush.bf16.msra.mxu0 %v4967
    %5607 = vmatpush.bf16.msra.mxu0 %v4963
    %5608 = vmatpush.bf16.msra.mxu0 %v4959
    %5609 = vmatpush.bf16.msra.mxu0 %v4955
    %5610 = vmatpush.bf16.msra.mxu0 %v4951
    %5611 = vmatpush.bf16.msra.mxu0 %v4947
    %5612 = vmatpush.bf16.msra.mxu0 %v4943
    %5613 = vmatmul.bf16.gmra.mxu0 %v3775
    %v5614 = vpop.f32.mrf.mxu0
    %v5615 = vadd.f32 %v5601, %v5614
    %v5616 = vpop.f32.mrf.mxu0
    %v5617 = vadd.f32 %v5603, %v5616
    %5618 = vdwg.mxu0
    %5619 = vmatpush.bf16.msra.mxu0 %v5003
    %5620 = vmatpush.bf16.msra.mxu0 %v4999
    %5621 = vmatpush.bf16.msra.mxu0 %v4995
    %5622 = vmatpush.bf16.msra.mxu0 %v4991
    %5623 = vmatpush.bf16.msra.mxu0 %v4987
    %5624 = vmatpush.bf16.msra.mxu0 %v4983
    %5625 = vmatpush.bf16.msra.mxu0 %v4979
    %5626 = vmatpush.bf16.msra.mxu0 %v4975
    %5627 = vmatmul.bf16.gmra.mxu0 %v3776
    %v5628 = vpop.f32.mrf.mxu0
    %v5629 = vadd.f32 %v5615, %v5628
    %v5630 = vpop.f32.mrf.mxu0
    %v5631 = vadd.f32 %v5617, %v5630
    %5632 = vdwg.mxu0
    %5633 = vmatpush.bf16.msra.mxu0 %v5035
    %5634 = vmatpush.bf16.msra.mxu0 %v5031
    %5635 = vmatpush.bf16.msra.mxu0 %v5027
    %5636 = vmatpush.bf16.msra.mxu0 %v5023
    %5637 = vmatpush.bf16.msra.mxu0 %v5019
    %5638 = vmatpush.bf16.msra.mxu0 %v5015
    %5639 = vmatpush.bf16.msra.mxu0 %v5011
    %5640 = vmatpush.bf16.msra.mxu0 %v5007
    %5641 = vmatmul.bf16.gmra.mxu0 %v3777
    %v5642 = vpop.f32.mrf.mxu0
    %v5643 = vadd.f32 %v5629, %v5642
    %v5644 = vpop.f32.mrf.mxu0
    %v5645 = vadd.f32 %v5631, %v5644
    %5646 = vdwg.mxu0
    %5647 = vmatpush.bf16.msra.mxu0 %v5067
    %5648 = vmatpush.bf16.msra.mxu0 %v5063
    %5649 = vmatpush.bf16.msra.mxu0 %v5059
    %5650 = vmatpush.bf16.msra.mxu0 %v5055
    %5651 = vmatpush.bf16.msra.mxu0 %v5051
    %5652 = vmatpush.bf16.msra.mxu0 %v5047
    %5653 = vmatpush.bf16.msra.mxu0 %v5043
    %5654 = vmatpush.bf16.msra.mxu0 %v5039
    %5655 = vmatmul.bf16.gmra.mxu0 %v3778
    %v5656 = vpop.f32.mrf.mxu0
    %v5657 = vadd.f32 %v5643, %v5656
    %v5658 = vpop.f32.mrf.mxu0
    %v5659 = vadd.f32 %v5645, %v5658
    %5660 = vdwg.mxu0
    %5661 = vmatpush.bf16.msra.mxu0 %v4844
    %5662 = vmatpush.bf16.msra.mxu0 %v4840
    %5663 = vmatpush.bf16.msra.mxu0 %v4836
    %5664 = vmatpush.bf16.msra.mxu0 %v4832
    %5665 = vmatpush.bf16.msra.mxu0 %v4828
    %5666 = vmatpush.bf16.msra.mxu0 %v4824
    %5667 = vmatpush.bf16.msra.mxu0 %v4820
    %5668 = vmatpush.bf16.msra.mxu0 %v4816
    %5669 = vmatmul.bf16.gmra.mxu0 %v3771
    %v5670 = vpop.f32.mrf.mxu0
    %v5671 = vadd.f32 %v4040, %v5670
    %v5672 = vpop.f32.mrf.mxu0
    %v5673 = vadd.f32 %v4040, %v5672
    %5674 = vdwg.mxu0
    %5675 = vmatpush.bf16.msra.mxu0 %v4876
    %5676 = vmatpush.bf16.msra.mxu0 %v4872
    %5677 = vmatpush.bf16.msra.mxu0 %v4868
    %5678 = vmatpush.bf16.msra.mxu0 %v4864
    %5679 = vmatpush.bf16.msra.mxu0 %v4860
    %5680 = vmatpush.bf16.msra.mxu0 %v4856
    %5681 = vmatpush.bf16.msra.mxu0 %v4852
    %5682 = vmatpush.bf16.msra.mxu0 %v4848
    %5683 = vmatmul.bf16.gmra.mxu0 %v3772
    %v5684 = vpop.f32.mrf.mxu0
    %v5685 = vadd.f32 %v5671, %v5684
    %v5686 = vpop.f32.mrf.mxu0
    %v5687 = vadd.f32 %v5673, %v5686
    %5688 = vdwg.mxu0
    %5689 = vmatpush.bf16.msra.mxu0 %v4908
    %5690 = vmatpush.bf16.msra.mxu0 %v4904
    %5691 = vmatpush.bf16.msra.mxu0 %v4900
    %5692 = vmatpush.bf16.msra.mxu0 %v4896
    %5693 = vmatpush.bf16.msra.mxu0 %v4892
    %5694 = vmatpush.bf16.msra.mxu0 %v4888
    %5695 = vmatpush.bf16.msra.mxu0 %v4884
    %5696 = vmatpush.bf16.msra.mxu0 %v4880
    %5697 = vmatmul.bf16.gmra.mxu0 %v3773
    %v5698 = vpop.f32.mrf.mxu0
    %v5699 = vadd.f32 %v5685, %v5698
    %v5700 = vpop.f32.mrf.mxu0
    %v5701 = vadd.f32 %v5687, %v5700
    %5702 = vdwg.mxu0
    %5703 = vmatpush.bf16.msra.mxu0 %v4940
    %5704 = vmatpush.bf16.msra.mxu0 %v4936
    %5705 = vmatpush.bf16.msra.mxu0 %v4932
    %5706 = vmatpush.bf16.msra.mxu0 %v4928
    %5707 = vmatpush.bf16.msra.mxu0 %v4924
    %5708 = vmatpush.bf16.msra.mxu0 %v4920
    %5709 = vmatpush.bf16.msra.mxu0 %v4916
    %5710 = vmatpush.bf16.msra.mxu0 %v4912
    %5711 = vmatmul.bf16.gmra.mxu0 %v3774
    %v5712 = vpop.f32.mrf.mxu0
    %v5713 = vadd.f32 %v5699, %v5712
    %v5714 = vpop.f32.mrf.mxu0
    %v5715 = vadd.f32 %v5701, %v5714
    %5716 = vdwg.mxu0
    %5717 = vmatpush.bf16.msra.mxu0 %v4972
    %5718 = vmatpush.bf16.msra.mxu0 %v4968
    %5719 = vmatpush.bf16.msra.mxu0 %v4964
    %5720 = vmatpush.bf16.msra.mxu0 %v4960
    %5721 = vmatpush.bf16.msra.mxu0 %v4956
    %5722 = vmatpush.bf16.msra.mxu0 %v4952
    %5723 = vmatpush.bf16.msra.mxu0 %v4948
    %5724 = vmatpush.bf16.msra.mxu0 %v4944
    %5725 = vmatmul.bf16.gmra.mxu0 %v3775
    %v5726 = vpop.f32.mrf.mxu0
    %v5727 = vadd.f32 %v5713, %v5726
    %v5728 = vpop.f32.mrf.mxu0
    %v5729 = vadd.f32 %v5715, %v5728
    %5730 = vdwg.mxu0
    %5731 = vmatpush.bf16.msra.mxu0 %v5004
    %5732 = vmatpush.bf16.msra.mxu0 %v5000
    %5733 = vmatpush.bf16.msra.mxu0 %v4996
    %5734 = vmatpush.bf16.msra.mxu0 %v4992
    %5735 = vmatpush.bf16.msra.mxu0 %v4988
    %5736 = vmatpush.bf16.msra.mxu0 %v4984
    %5737 = vmatpush.bf16.msra.mxu0 %v4980
    %5738 = vmatpush.bf16.msra.mxu0 %v4976
    %5739 = vmatmul.bf16.gmra.mxu0 %v3776
    %v5740 = vpop.f32.mrf.mxu0
    %v5741 = vadd.f32 %v5727, %v5740
    %v5742 = vpop.f32.mrf.mxu0
    %v5743 = vadd.f32 %v5729, %v5742
    %5744 = vdwg.mxu0
    %5745 = vmatpush.bf16.msra.mxu0 %v5036
    %5746 = vmatpush.bf16.msra.mxu0 %v5032
    %5747 = vmatpush.bf16.msra.mxu0 %v5028
    %5748 = vmatpush.bf16.msra.mxu0 %v5024
    %5749 = vmatpush.bf16.msra.mxu0 %v5020
    %5750 = vmatpush.bf16.msra.mxu0 %v5016
    %5751 = vmatpush.bf16.msra.mxu0 %v5012
    %5752 = vmatpush.bf16.msra.mxu0 %v5008
    %5753 = vmatmul.bf16.gmra.mxu0 %v3777
    %v5754 = vpop.f32.mrf.mxu0
    %v5755 = vadd.f32 %v5741, %v5754
    %v5756 = vpop.f32.mrf.mxu0
    %v5757 = vadd.f32 %v5743, %v5756
    %5758 = vdwg.mxu0
    %5759 = vmatpush.bf16.msra.mxu0 %v5068
    %5760 = vmatpush.bf16.msra.mxu0 %v5064
    %5761 = vmatpush.bf16.msra.mxu0 %v5060
    %5762 = vmatpush.bf16.msra.mxu0 %v5056
    %5763 = vmatpush.bf16.msra.mxu0 %v5052
    %5764 = vmatpush.bf16.msra.mxu0 %v5048
    %5765 = vmatpush.bf16.msra.mxu0 %v5044
    %5766 = vmatpush.bf16.msra.mxu0 %v5040
    %5767 = vmatmul.bf16.gmra.mxu0 %v3778
    %v5768 = vpop.f32.mrf.mxu0
    %v5769 = vadd.f32 %v5755, %v5768
    %v5770 = vpop.f32.mrf.mxu0
    %v5771 = vadd.f32 %v5757, %v5770
    %5772 = vdwg.mxu0
    %vm5773 = vcmp.gt.f32.partialorder %v5433, 0.0
    %vm5774 = vcmp.gt.f32.partialorder %v5545, 0.0
    %vm5775 = vcmp.gt.f32.partialorder %v5657, 0.0
    %vm5776 = vcmp.gt.f32.partialorder %v5769, 0.0
    %vm5777 = vcmp.gt.f32.partialorder %v5435, 0.0
    %vm5778 = vcmp.gt.f32.partialorder %v5547, 0.0
    %vm5779 = vcmp.gt.f32.partialorder %v5659, 0.0
    %vm5780 = vcmp.gt.f32.partialorder %v5771, 0.0
    %v5781 = vmul.f32 %v5433, 0.2
    %v5782 = vmul.f32 %v5545, 0.2
    %v5783 = vmul.f32 %v5657, 0.2
    %v5784 = vmul.f32 %v5769, 0.2
    %v5785 = vmul.f32 %v5435, 0.2
    %v5786 = vmul.f32 %v5547, 0.2
    %v5787 = vmul.f32 %v5659, 0.2
    %v5788 = vmul.f32 %v5771, 0.2
    %v5789 = vsel %vm5773, %v5433, %v5781
    %v5790 = vsel %vm5774, %v5545, %v5782
    %v5791 = vsel %vm5775, %v5657, %v5783
    %v5792 = vsel %vm5776, %v5769, %v5784
    %v5793 = vsel %vm5777, %v5435, %v5785
    %v5794 = vsel %vm5778, %v5547, %v5786
    %v5795 = vsel %vm5779, %v5659, %v5787
    %v5796 = vsel %vm5780, %v5771, %v5788
    %v5797 = vpack.c.bf16 %v5793, %v5789
    %v5798 = vpack.c.bf16 %v5794, %v5790
    %v5799 = vpack.c.bf16 %v5795, %v5791
    %v5800 = vpack.c.bf16 %v5796, %v5792
    %v5801 = vld [vmem:[#allocation11] sm:$0xff]
    %v5802 = vld [vmem:[#allocation11 + $0x8] sm:$0xff]
    %v5803 = vld [vmem:[#allocation11 + $0x10] sm:$0xff]
    %v5804 = vld [vmem:[#allocation11 + $0x18] sm:$0xff]
    %v5805 = vld [vmem:[#allocation11 + $0x20] sm:$0xff]
    %v5806 = vld [vmem:[#allocation11 + $0x28] sm:$0xff]
    %v5807 = vld [vmem:[#allocation11 + $0x30] sm:$0xff]
    %v5808 = vld [vmem:[#allocation11 + $0x38] sm:$0xff]
    %v5809 = vld [vmem:[#allocation11 + $0x40] sm:$0xff]
    %v5810 = vld [vmem:[#allocation11 + $0x48] sm:$0xff]
    %v5811 = vld [vmem:[#allocation11 + $0x50] sm:$0xff]
    %v5812 = vld [vmem:[#allocation11 + $0x58] sm:$0xff]
    %v5813 = vld [vmem:[#allocation11 + $0x60] sm:$0xff]
    %v5814 = vld [vmem:[#allocation11 + $0x68] sm:$0xff]
    %v5815 = vld [vmem:[#allocation11 + $0x70] sm:$0xff]
    %v5816 = vld [vmem:[#allocation11 + $0x78] sm:$0xff]
    %v5817 = vld [vmem:[#allocation11 + $0x80] sm:$0xff]
    %v5818 = vld [vmem:[#allocation11 + $0x88] sm:$0xff]
    %v5819 = vld [vmem:[#allocation11 + $0x90] sm:$0xff]
    %v5820 = vld [vmem:[#allocation11 + $0x98] sm:$0xff]
    %v5821 = vld [vmem:[#allocation11 + $0xa0] sm:$0xff]
    %v5822 = vld [vmem:[#allocation11 + $0xa8] sm:$0xff]
    %v5823 = vld [vmem:[#allocation11 + $0xb0] sm:$0xff]
    %v5824 = vld [vmem:[#allocation11 + $0xb8] sm:$0xff]
    %v5825 = vld [vmem:[#allocation11 + $0xc0] sm:$0xff]
    %v5826 = vld [vmem:[#allocation11 + $0xc8] sm:$0xff]
    %v5827 = vld [vmem:[#allocation11 + $0xd0] sm:$0xff]
    %v5828 = vld [vmem:[#allocation11 + $0xd8] sm:$0xff]
    %v5829 = vld [vmem:[#allocation11 + $0xe0] sm:$0xff]
    %v5830 = vld [vmem:[#allocation11 + $0xe8] sm:$0xff]
    %v5831 = vld [vmem:[#allocation11 + $0xf0] sm:$0xff]
    %v5832 = vld [vmem:[#allocation11 + $0xf8] sm:$0xff]
    %v5833 = vld [vmem:[#allocation11 + $0x100] sm:$0xff]
    %v5834 = vld [vmem:[#allocation11 + $0x108] sm:$0xff]
    %v5835 = vld [vmem:[#allocation11 + $0x110] sm:$0xff]
    %v5836 = vld [vmem:[#allocation11 + $0x118] sm:$0xff]
    %v5837 = vld [vmem:[#allocation11 + $0x120] sm:$0xff]
    %v5838 = vld [vmem:[#allocation11 + $0x128] sm:$0xff]
    %v5839 = vld [vmem:[#allocation11 + $0x130] sm:$0xff]
    %v5840 = vld [vmem:[#allocation11 + $0x138] sm:$0xff]
    %v5841 = vld [vmem:[#allocation11 + $0x140] sm:$0xff]
    %v5842 = vld [vmem:[#allocation11 + $0x148] sm:$0xff]
    %v5843 = vld [vmem:[#allocation11 + $0x150] sm:$0xff]
    %v5844 = vld [vmem:[#allocation11 + $0x158] sm:$0xff]
    %v5845 = vld [vmem:[#allocation11 + $0x160] sm:$0xff]
    %v5846 = vld [vmem:[#allocation11 + $0x168] sm:$0xff]
    %v5847 = vld [vmem:[#allocation11 + $0x170] sm:$0xff]
    %v5848 = vld [vmem:[#allocation11 + $0x178] sm:$0xff]
    %v5849 = vld [vmem:[#allocation11 + $0x180] sm:$0xff]
    %v5850 = vld [vmem:[#allocation11 + $0x188] sm:$0xff]
    %v5851 = vld [vmem:[#allocation11 + $0x190] sm:$0xff]
    %v5852 = vld [vmem:[#allocation11 + $0x198] sm:$0xff]
    %v5853 = vld [vmem:[#allocation11 + $0x1a0] sm:$0xff]
    %v5854 = vld [vmem:[#allocation11 + $0x1a8] sm:$0xff]
    %v5855 = vld [vmem:[#allocation11 + $0x1b0] sm:$0xff]
    %v5856 = vld [vmem:[#allocation11 + $0x1b8] sm:$0xff]
    %v5857 = vld [vmem:[#allocation11 + $0x1c0] sm:$0xff]
    %v5858 = vld [vmem:[#allocation11 + $0x1c8] sm:$0xff]
    %v5859 = vld [vmem:[#allocation11 + $0x1d0] sm:$0xff]
    %v5860 = vld [vmem:[#allocation11 + $0x1d8] sm:$0xff]
    %v5861 = vld [vmem:[#allocation11 + $0x1e0] sm:$0xff]
    %v5862 = vld [vmem:[#allocation11 + $0x1e8] sm:$0xff]
    %v5863 = vld [vmem:[#allocation11 + $0x1f0] sm:$0xff]
    %v5864 = vld [vmem:[#allocation11 + $0x1f8] sm:$0xff]
    %v5865 = vld [vmem:[#allocation12] sm:$0x3]
    %v5867 = vperm.slane %v5865, 0
    %v5868 = vperm.slane %v5865, 1
    %v5935 = vunpack.c.l.b16 %v5801
    %v5936 = vunpack.c.h.b16 %v5801
    %v5937 = vunpack.c.l.b16 %v5802
    %v5938 = vunpack.c.h.b16 %v5802
    %v5939 = vunpack.c.l.b16 %v5803
    %v5940 = vunpack.c.h.b16 %v5803
    %v5941 = vunpack.c.l.b16 %v5804
    %v5942 = vunpack.c.h.b16 %v5804
    %v5943 = vunpack.c.l.b16 %v5805
    %v5944 = vunpack.c.h.b16 %v5805
    %v5945 = vunpack.c.l.b16 %v5806
    %v5946 = vunpack.c.h.b16 %v5806
    %v5947 = vunpack.c.l.b16 %v5807
    %v5948 = vunpack.c.h.b16 %v5807
    %v5949 = vunpack.c.l.b16 %v5808
    %v5950 = vunpack.c.h.b16 %v5808
    %v5951 = vunpack.c.l.b16 %v5809
    %v5952 = vunpack.c.h.b16 %v5809
    %v5953 = vunpack.c.l.b16 %v5810
    %v5954 = vunpack.c.h.b16 %v5810
    %v5955 = vunpack.c.l.b16 %v5811
    %v5956 = vunpack.c.h.b16 %v5811
    %v5957 = vunpack.c.l.b16 %v5812
    %v5958 = vunpack.c.h.b16 %v5812
    %v5959 = vunpack.c.l.b16 %v5813
    %v5960 = vunpack.c.h.b16 %v5813
    %v5961 = vunpack.c.l.b16 %v5814
    %v5962 = vunpack.c.h.b16 %v5814
    %v5963 = vunpack.c.l.b16 %v5815
    %v5964 = vunpack.c.h.b16 %v5815
    %v5965 = vunpack.c.l.b16 %v5816
    %v5966 = vunpack.c.h.b16 %v5816
    %v5967 = vunpack.c.l.b16 %v5817
    %v5968 = vunpack.c.h.b16 %v5817
    %v5969 = vunpack.c.l.b16 %v5818
    %v5970 = vunpack.c.h.b16 %v5818
    %v5971 = vunpack.c.l.b16 %v5819
    %v5972 = vunpack.c.h.b16 %v5819
    %v5973 = vunpack.c.l.b16 %v5820
    %v5974 = vunpack.c.h.b16 %v5820
    %v5975 = vunpack.c.l.b16 %v5821
    %v5976 = vunpack.c.h.b16 %v5821
    %v5977 = vunpack.c.l.b16 %v5822
    %v5978 = vunpack.c.h.b16 %v5822
    %v5979 = vunpack.c.l.b16 %v5823
    %v5980 = vunpack.c.h.b16 %v5823
    %v5981 = vunpack.c.l.b16 %v5824
    %v5982 = vunpack.c.h.b16 %v5824
    %v5983 = vunpack.c.l.b16 %v5825
    %v5984 = vunpack.c.h.b16 %v5825
    %v5985 = vunpack.c.l.b16 %v5826
    %v5986 = vunpack.c.h.b16 %v5826
    %v5987 = vunpack.c.l.b16 %v5827
    %v5988 = vunpack.c.h.b16 %v5827
    %v5989 = vunpack.c.l.b16 %v5828
    %v5990 = vunpack.c.h.b16 %v5828
    %v5991 = vunpack.c.l.b16 %v5829
    %v5992 = vunpack.c.h.b16 %v5829
    %v5993 = vunpack.c.l.b16 %v5830
    %v5994 = vunpack.c.h.b16 %v5830
    %v5995 = vunpack.c.l.b16 %v5831
    %v5996 = vunpack.c.h.b16 %v5831
    %v5997 = vunpack.c.l.b16 %v5832
    %v5998 = vunpack.c.h.b16 %v5832
    %v5999 = vunpack.c.l.b16 %v5833
    %v6000 = vunpack.c.h.b16 %v5833
    %v6001 = vunpack.c.l.b16 %v5834
    %v6002 = vunpack.c.h.b16 %v5834
    %v6003 = vunpack.c.l.b16 %v5835
    %v6004 = vunpack.c.h.b16 %v5835
    %v6005 = vunpack.c.l.b16 %v5836
    %v6006 = vunpack.c.h.b16 %v5836
    %v6007 = vunpack.c.l.b16 %v5837
    %v6008 = vunpack.c.h.b16 %v5837
    %v6009 = vunpack.c.l.b16 %v5838
    %v6010 = vunpack.c.h.b16 %v5838
    %v6011 = vunpack.c.l.b16 %v5839
    %v6012 = vunpack.c.h.b16 %v5839
    %v6013 = vunpack.c.l.b16 %v5840
    %v6014 = vunpack.c.h.b16 %v5840
    %v6015 = vunpack.c.l.b16 %v5841
    %v6016 = vunpack.c.h.b16 %v5841
    %v6017 = vunpack.c.l.b16 %v5842
    %v6018 = vunpack.c.h.b16 %v5842
    %v6019 = vunpack.c.l.b16 %v5843
    %v6020 = vunpack.c.h.b16 %v5843
    %v6021 = vunpack.c.l.b16 %v5844
    %v6022 = vunpack.c.h.b16 %v5844
    %v6023 = vunpack.c.l.b16 %v5845
    %v6024 = vunpack.c.h.b16 %v5845
    %v6025 = vunpack.c.l.b16 %v5846
    %v6026 = vunpack.c.h.b16 %v5846
    %v6027 = vunpack.c.l.b16 %v5847
    %v6028 = vunpack.c.h.b16 %v5847
    %v6029 = vunpack.c.l.b16 %v5848
    %v6030 = vunpack.c.h.b16 %v5848
    %v6031 = vunpack.c.l.b16 %v5849
    %v6032 = vunpack.c.h.b16 %v5849
    %v6033 = vunpack.c.l.b16 %v5850
    %v6034 = vunpack.c.h.b16 %v5850
    %v6035 = vunpack.c.l.b16 %v5851
    %v6036 = vunpack.c.h.b16 %v5851
    %v6037 = vunpack.c.l.b16 %v5852
    %v6038 = vunpack.c.h.b16 %v5852
    %v6039 = vunpack.c.l.b16 %v5853
    %v6040 = vunpack.c.h.b16 %v5853
    %v6041 = vunpack.c.l.b16 %v5854
    %v6042 = vunpack.c.h.b16 %v5854
    %v6043 = vunpack.c.l.b16 %v5855
    %v6044 = vunpack.c.h.b16 %v5855
    %v6045 = vunpack.c.l.b16 %v5856
    %v6046 = vunpack.c.h.b16 %v5856
    %v6047 = vunpack.c.l.b16 %v5857
    %v6048 = vunpack.c.h.b16 %v5857
    %v6049 = vunpack.c.l.b16 %v5858
    %v6050 = vunpack.c.h.b16 %v5858
    %v6051 = vunpack.c.l.b16 %v5859
    %v6052 = vunpack.c.h.b16 %v5859
    %v6053 = vunpack.c.l.b16 %v5860
    %v6054 = vunpack.c.h.b16 %v5860
    %v6055 = vunpack.c.l.b16 %v5861
    %v6056 = vunpack.c.h.b16 %v5861
    %v6057 = vunpack.c.l.b16 %v5862
    %v6058 = vunpack.c.h.b16 %v5862
    %v6059 = vunpack.c.l.b16 %v5863
    %v6060 = vunpack.c.h.b16 %v5863
    %v6061 = vunpack.c.l.b16 %v5864
    %v6062 = vunpack.c.h.b16 %v5864
    %v6063 = vpack.c.b16 %v5937, %v5935
    %v6064 = vpack.c.b16 %v5938, %v5936
    %v6065 = vpack.c.b16 %v5941, %v5939
    %v6066 = vpack.c.b16 %v5942, %v5940
    %v6067 = vpack.c.b16 %v5945, %v5943
    %v6068 = vpack.c.b16 %v5946, %v5944
    %v6069 = vpack.c.b16 %v5949, %v5947
    %v6070 = vpack.c.b16 %v5950, %v5948
    %v6071 = vpack.c.b16 %v5953, %v5951
    %v6072 = vpack.c.b16 %v5954, %v5952
    %v6073 = vpack.c.b16 %v5957, %v5955
    %v6074 = vpack.c.b16 %v5958, %v5956
    %v6075 = vpack.c.b16 %v5961, %v5959
    %v6076 = vpack.c.b16 %v5962, %v5960
    %v6077 = vpack.c.b16 %v5965, %v5963
    %v6078 = vpack.c.b16 %v5966, %v5964
    %v6079 = vpack.c.b16 %v5969, %v5967
    %v6080 = vpack.c.b16 %v5970, %v5968
    %v6081 = vpack.c.b16 %v5973, %v5971
    %v6082 = vpack.c.b16 %v5974, %v5972
    %v6083 = vpack.c.b16 %v5977, %v5975
    %v6084 = vpack.c.b16 %v5978, %v5976
    %v6085 = vpack.c.b16 %v5981, %v5979
    %v6086 = vpack.c.b16 %v5982, %v5980
    %v6087 = vpack.c.b16 %v5985, %v5983
    %v6088 = vpack.c.b16 %v5986, %v5984
    %v6089 = vpack.c.b16 %v5989, %v5987
    %v6090 = vpack.c.b16 %v5990, %v5988
    %v6091 = vpack.c.b16 %v5993, %v5991
    %v6092 = vpack.c.b16 %v5994, %v5992
    %v6093 = vpack.c.b16 %v5997, %v5995
    %v6094 = vpack.c.b16 %v5998, %v5996
    %v6095 = vpack.c.b16 %v6001, %v5999
    %v6096 = vpack.c.b16 %v6002, %v6000
    %v6097 = vpack.c.b16 %v6005, %v6003
    %v6098 = vpack.c.b16 %v6006, %v6004
    %v6099 = vpack.c.b16 %v6009, %v6007
    %v6100 = vpack.c.b16 %v6010, %v6008
    %v6101 = vpack.c.b16 %v6013, %v6011
    %v6102 = vpack.c.b16 %v6014, %v6012
    %v6103 = vpack.c.b16 %v6017, %v6015
    %v6104 = vpack.c.b16 %v6018, %v6016
    %v6105 = vpack.c.b16 %v6021, %v6019
    %v6106 = vpack.c.b16 %v6022, %v6020
    %v6107 = vpack.c.b16 %v6025, %v6023
    %v6108 = vpack.c.b16 %v6026, %v6024
    %v6109 = vpack.c.b16 %v6029, %v6027
    %v6110 = vpack.c.b16 %v6030, %v6028
    %v6111 = vpack.c.b16 %v6033, %v6031
    %v6112 = vpack.c.b16 %v6034, %v6032
    %v6113 = vpack.c.b16 %v6037, %v6035
    %v6114 = vpack.c.b16 %v6038, %v6036
    %v6115 = vpack.c.b16 %v6041, %v6039
    %v6116 = vpack.c.b16 %v6042, %v6040
    %v6117 = vpack.c.b16 %v6045, %v6043
    %v6118 = vpack.c.b16 %v6046, %v6044
    %v6119 = vpack.c.b16 %v6049, %v6047
    %v6120 = vpack.c.b16 %v6050, %v6048
    %v6121 = vpack.c.b16 %v6053, %v6051
    %v6122 = vpack.c.b16 %v6054, %v6052
    %v6123 = vpack.c.b16 %v6057, %v6055
    %v6124 = vpack.c.b16 %v6058, %v6056
    %v6125 = vpack.c.b16 %v6061, %v6059
    %v6126 = vpack.c.b16 %v6062, %v6060
    %6191 = vmatpush.bf16.msra.mxu0 %v6077
    %6192 = vmatpush.bf16.msra.mxu0 %v6075
    %6193 = vmatpush.bf16.msra.mxu0 %v6073
    %6194 = vmatpush.bf16.msra.mxu0 %v6071
    %6195 = vmatpush.bf16.msra.mxu0 %v6069
    %6196 = vmatpush.bf16.msra.mxu0 %v6067
    %6197 = vmatpush.bf16.msra.mxu0 %v6065
    %6198 = vmatpush.bf16.msra.mxu0 %v6063
    %6199 = vmatmul.bf16.gmra.mxu0 %v5797
    %v6200 = vpop.f32.mrf.mxu0
    %v6201 = vadd.f32 %v5867, %v6200
    %v6202 = vpop.f32.mrf.mxu0
    %v6203 = vadd.f32 %v5867, %v6202
    %6204 = vdwg.mxu0
    %6205 = vmatpush.bf16.msra.mxu0 %v6093
    %6206 = vmatpush.bf16.msra.mxu0 %v6091
    %6207 = vmatpush.bf16.msra.mxu0 %v6089
    %6208 = vmatpush.bf16.msra.mxu0 %v6087
    %6209 = vmatpush.bf16.msra.mxu0 %v6085
    %6210 = vmatpush.bf16.msra.mxu0 %v6083
    %6211 = vmatpush.bf16.msra.mxu0 %v6081
    %6212 = vmatpush.bf16.msra.mxu0 %v6079
    %6213 = vmatmul.bf16.gmra.mxu0 %v5798
    %v6214 = vpop.f32.mrf.mxu0
    %v6215 = vadd.f32 %v6201, %v6214
    %v6216 = vpop.f32.mrf.mxu0
    %v6217 = vadd.f32 %v6203, %v6216
    %6218 = vdwg.mxu0
    %6219 = vmatpush.bf16.msra.mxu0 %v6109
    %6220 = vmatpush.bf16.msra.mxu0 %v6107
    %6221 = vmatpush.bf16.msra.mxu0 %v6105
    %6222 = vmatpush.bf16.msra.mxu0 %v6103
    %6223 = vmatpush.bf16.msra.mxu0 %v6101
    %6224 = vmatpush.bf16.msra.mxu0 %v6099
    %6225 = vmatpush.bf16.msra.mxu0 %v6097
    %6226 = vmatpush.bf16.msra.mxu0 %v6095
    %6227 = vmatmul.bf16.gmra.mxu0 %v5799
    %v6228 = vpop.f32.mrf.mxu0
    %v6229 = vadd.f32 %v6215, %v6228
    %v6230 = vpop.f32.mrf.mxu0
    %v6231 = vadd.f32 %v6217, %v6230
    %6232 = vdwg.mxu0
    %6233 = vmatpush.bf16.msra.mxu0 %v6125
    %6234 = vmatpush.bf16.msra.mxu0 %v6123
    %6235 = vmatpush.bf16.msra.mxu0 %v6121
    %6236 = vmatpush.bf16.msra.mxu0 %v6119
    %6237 = vmatpush.bf16.msra.mxu0 %v6117
    %6238 = vmatpush.bf16.msra.mxu0 %v6115
    %6239 = vmatpush.bf16.msra.mxu0 %v6113
    %6240 = vmatpush.bf16.msra.mxu0 %v6111
    %6241 = vmatmul.bf16.gmra.mxu0 %v5800
    %v6242 = vpop.f32.mrf.mxu0
    %v6243 = vadd.f32 %v6229, %v6242
    %v6244 = vpop.f32.mrf.mxu0
    %v6245 = vadd.f32 %v6231, %v6244
    %6246 = vdwg.mxu0
    %6247 = vmatpush.bf16.msra.mxu0 %v6078
    %6248 = vmatpush.bf16.msra.mxu0 %v6076
    %6249 = vmatpush.bf16.msra.mxu0 %v6074
    %6250 = vmatpush.bf16.msra.mxu0 %v6072
    %6251 = vmatpush.bf16.msra.mxu0 %v6070
    %6252 = vmatpush.bf16.msra.mxu0 %v6068
    %6253 = vmatpush.bf16.msra.mxu0 %v6066
    %6254 = vmatpush.bf16.msra.mxu0 %v6064
    %6255 = vmatmul.bf16.gmra.mxu0 %v5797
    %v6256 = vpop.f32.mrf.mxu0
    %v6257 = vadd.f32 %v5868, %v6256
    %v6258 = vpop.f32.mrf.mxu0
    %v6259 = vadd.f32 %v5868, %v6258
    %6260 = vdwg.mxu0
    %6261 = vmatpush.bf16.msra.mxu0 %v6094
    %6262 = vmatpush.bf16.msra.mxu0 %v6092
    %6263 = vmatpush.bf16.msra.mxu0 %v6090
    %6264 = vmatpush.bf16.msra.mxu0 %v6088
    %6265 = vmatpush.bf16.msra.mxu0 %v6086
    %6266 = vmatpush.bf16.msra.mxu0 %v6084
    %6267 = vmatpush.bf16.msra.mxu0 %v6082
    %6268 = vmatpush.bf16.msra.mxu0 %v6080
    %6269 = vmatmul.bf16.gmra.mxu0 %v5798
    %v6270 = vpop.f32.mrf.mxu0
    %v6271 = vadd.f32 %v6257, %v6270
    %v6272 = vpop.f32.mrf.mxu0
    %v6273 = vadd.f32 %v6259, %v6272
    %6274 = vdwg.mxu0
    %6275 = vmatpush.bf16.msra.mxu0 %v6110
    %6276 = vmatpush.bf16.msra.mxu0 %v6108
    %6277 = vmatpush.bf16.msra.mxu0 %v6106
    %6278 = vmatpush.bf16.msra.mxu0 %v6104
    %6279 = vmatpush.bf16.msra.mxu0 %v6102
    %6280 = vmatpush.bf16.msra.mxu0 %v6100
    %6281 = vmatpush.bf16.msra.mxu0 %v6098
    %6282 = vmatpush.bf16.msra.mxu0 %v6096
    %6283 = vmatmul.bf16.gmra.mxu0 %v5799
    %v6284 = vpop.f32.mrf.mxu0
    %v6285 = vadd.f32 %v6271, %v6284
    %v6286 = vpop.f32.mrf.mxu0
    %v6287 = vadd.f32 %v6273, %v6286
    %6288 = vdwg.mxu0
    %6289 = vmatpush.bf16.msra.mxu0 %v6126
    %6290 = vmatpush.bf16.msra.mxu0 %v6124
    %6291 = vmatpush.bf16.msra.mxu0 %v6122
    %6292 = vmatpush.bf16.msra.mxu0 %v6120
    %6293 = vmatpush.bf16.msra.mxu0 %v6118
    %6294 = vmatpush.bf16.msra.mxu0 %v6116
    %6295 = vmatpush.bf16.msra.mxu0 %v6114
    %6296 = vmatpush.bf16.msra.mxu0 %v6112
    %6297 = vmatmul.bf16.gmra.mxu0 %v5800
    %v6298 = vpop.f32.mrf.mxu0
    %v6299 = vadd.f32 %v6285, %v6298
    %v6300 = vpop.f32.mrf.mxu0
    %v6301 = vadd.f32 %v6287, %v6300
    %6302 = vdwg.mxu0
    %vm6303 = vcmp.gt.f32.partialorder %v6243, 0.0
    %vm6304 = vcmp.gt.f32.partialorder %v6299, 0.0
    %vm6305 = vcmp.gt.f32.partialorder %v6245, 0.0
    %vm6306 = vcmp.gt.f32.partialorder %v6301, 0.0
    %v6307 = vmul.f32 %v6243, 0.2
    %v6308 = vmul.f32 %v6299, 0.2
    %v6309 = vmul.f32 %v6245, 0.2
    %v6310 = vmul.f32 %v6301, 0.2
    %v6311 = vsel %vm6303, %v6243, %v6307
    %v6312 = vsel %vm6304, %v6299, %v6308
    %v6313 = vsel %vm6305, %v6245, %v6309
    %v6314 = vsel %vm6306, %v6301, %v6310
    %v6315 = vld [vmem:[#allocation14] sm:$0x3]
    %v6317 = vperm.slane %v6315, 0
    %v6318 = vperm.slane %v6315, 1
    %v6321 = vmul.f32 %v6311, %v6317
    %v6322 = vmul.f32 %v6312, %v6318
    %v6323 = vmul.f32 %v6313, %v6317
    %v6324 = vmul.f32 %v6314, %v6318
    %v6325 = vadd.f32 %v6321, %v6322
    %6326 = vadd.xlane.f32.xlu0 %v6325
    %v6327 = vpop.xlane.xlu0 %6326
    %v6328 = vadd.f32 %v6323, %v6324
    %6329 = vadd.xlane.f32.xlu0 %v6328
    %v6330 = vpop.xlane.xlu0 %6329
    %v6331 = vld [vmem:[#allocation3] sm:$0x1]
    %6333 = vset.pattern.permute.xlu0 0
    %6334 = vperm.xlu0 %6333, %v6331
    %v6335 = vpop.permute.xlu0 %6334
    %v6337 = vperm.slane %v6335, 0
    %v6338 = vadd.f32 %v6327, %v6337
    %v6339 = vadd.f32 %v6330, %v6337
    %v6340 = vxor.u32 %v6338, 2147483648
    %v6341 = vxor.u32 %v6339, 2147483648
    %v6342 = vmul.f32 %v6340, 1.442695
    %v6343 = vpow.pop %v6342
    %v6344 = vmul.f32 %v6341, 1.442695
    %v6345 = vpow.pop %v6344
    %v6346 = vadd.f32 %v6343, 1.0
    %v6347 = vadd.f32 %v6345, 1.0
    %v6348 = vrcp.pop %v6346
    %v6349 = vmul.f32 %v6346, %v6348
    %v6350 = vsub.f32 1.0, %v6349
    %v6351 = vmul.f32 %v6348, %v6350
    %v6352 = vadd.f32 %v6348, %v6351
    %vm6353 = vweird.f32 %v6346
    %vm6354 = vweird.f32 %v6348
    %vm6355 = vmor %vm6353, %vm6354
    %v6356 = vsel %vm6355, %v6348, %v6352
    %v6357 = vand.u32 2147483647, %v6346
    %vm6358 = vcmp.eq.f32.partialorder %v6357, 8.507059e+37
    %v6359 = vand.u32 %v6346, 2147483648
    %v6360 = vor.u32 1.1754944e-38, %v6359
    %v6361 = vsel %vm6358, %v6360, %v6356
    %v6362 = vmul.f32 1.0, %v6361
    %v6363 = vrcp.pop %v6347
    %v6364 = vmul.f32 %v6347, %v6363
    %v6365 = vsub.f32 1.0, %v6364
    %v6366 = vmul.f32 %v6363, %v6365
    %v6367 = vadd.f32 %v6363, %v6366
    %vm6368 = vweird.f32 %v6347
    %vm6369 = vweird.f32 %v6363
    %vm6370 = vmor %vm6368, %vm6369
    %v6371 = vsel %vm6370, %v6363, %v6367
    %v6372 = vand.u32 2147483647, %v6347
    %vm6373 = vcmp.eq.f32.partialorder %v6372, 8.507059e+37
    %v6374 = vand.u32 %v6347, 2147483648
    %v6375 = vor.u32 1.1754944e-38, %v6374
    %v6376 = vsel %vm6373, %v6375, %v6371
    %v6377 = vmul.f32 1.0, %v6376
    %v6380 = vperm.slane %v6362, %v139
    %v6381 = vadd.s32 %v139, 4294967288
    %v6382 = vperm.slane %v6377, %v6381
    %vm6383 = vcmask 130112
    %v6384 = vsel %vm6383, %v6382, %v6380
    %vm6386 = vcmask 122880
    %6387 = vst.msk [vmem:[%s10] sm:$0x1] %vm6386, %v6384
    // Predicated region
    $region70: #{discriminator_forward.1} parent=1 // pred_check
      _
    $region71: #{discriminator_forward.1} parent=1 // pred_check_branch
      %6389 = sbr.rel (0) target = $region73
    $region72: #{discriminator_forward.1} parent=1 // pred_region
      _
    $region73: #{discriminator_forward.1} parent=1 // pred_fallthru
      _
    // Predicated region
    $region74: #{discriminator_forward.1} parent=1 // pred_check
      _
    $region75: #{discriminator_forward.1} parent=1 // pred_check_branch
      %6391 = sbr.rel (0) target = $region77
    $region76: #{discriminator_forward.1} parent=1 // pred_region
      _
    $region77: #{discriminator_forward.1} parent=1 // pred_fallthru
      _
    %6392 = vsyncpa [#allocation5], 1
    %6393 = vsyncpa [#allocation7], 1
    %6394 = vsyncpa [#allocation10], 1
    %6395 = vsyncpa [#allocation13], 1

</llo_original>
